<compile_context>
chip_gen: v6e
topology: v6e:2x2x1
jax: 0.10.0
libtpu: 0.0.40
codegen_flags: <defaults>
</compile_context>

<pallas_src>
import functools

import jax
import jax.numpy as jnp
from jax.experimental import pallas as pl
from jax.experimental.pallas import tpu as pltpu


# ----------------------------------------------------------------------------
# Kernel
# ----------------------------------------------------------------------------
def stable_model_kernel(x_ref,
                        w1_ref, b1_ref,
                        w2_ref, b2_ref,
                        w3_ref, b3_ref,
                        w4_ref, b4_ref,
                        o_ref, *, act_dtype):
    def layer(h_bf16, w_ref, b_ref):
        # bf16 MXU operands, f32 accumulation, bias add in f32.
        z = jnp.dot(h_bf16, w_ref[...], preferred_element_type=jnp.float32)
        z = (z + b_ref[...]).astype(act_dtype)
        # ELU(alpha=1): z if z > 0 else exp(z) - 1.  The select discards the
        # exp branch for z > 0, so overflow there is harmless (inf, not NaN).
        z = jnp.where(z > 0, z, jnp.exp(z) - 1)
        return z.astype(jnp.bfloat16)          # bf16 intermediates (halves VMEM)

    h = x_ref[...]                              # bf16 (tm, D) batch tile
    h = layer(h, w1_ref, b1_ref)                # (tm, 512)
    h = layer(h, w2_ref, b2_ref)                # (tm, 256)
    h = layer(h, w3_ref, b3_ref)                # (tm, 128)

    # Linear(128, 1) + Softplus, computed as w4_row (1,128) contracted against
    # h (tm,128) on the last dim -> lane-dense (1, tm) row (unmasked stores).
    y = jax.lax.dot_general(w4_ref[...], h,
                            dimension_numbers=(((1,), (1,)), ((), ())),
                            preferred_element_type=jnp.float32)
    y = y + b4_ref[...]                         # b4 is (1,1), broadcasts
    # torch.nn.Softplus(beta=1, threshold=20) — only tm elements, keep in f32.
    y = jnp.where(y > 20.0, y, jnp.log1p(jnp.exp(jnp.minimum(y, 20.0))))
    # torch.clamp(y, min=1e-4, max=1e6)
    o_ref[...] = jnp.clip(y, 1e-4, 1e6).astype(o_ref.dtype)


# ----------------------------------------------------------------------------
# Hardware-aware configuration helpers
# ----------------------------------------------------------------------------
def _tpu_generation():
    try:
        kind = jax.devices()[0].device_kind.lower()
    except Exception:
        return None
    for tag, gen in (("v7", 7), ("7x", 7), ("v6", 6), ("v5", 5),
                     ("v4", 4), ("v3", 3), ("v2", 2)):
        if tag in kind:
            return gen
    return None


def _vmem_capacity_bytes(gen):
    try:
        return int(pltpu.get_tpu_info().vmem_capacity_bytes)
    except Exception:
        # v7x has 64 MiB of VMEM per TensorCore; v5e/v6e have 128 MiB.
        return (64 if (gen is not None and gen >= 7) else 128) * 1024 * 1024


def pick_act_dtype(gen=None):
    """bf16 activations on v6e/v7x (bf16 EUP); f32 on v5e and older."""
    if gen is None:
        gen = _tpu_generation()
    return jnp.float32 if (gen is not None and gen <= 5) else jnp.bfloat16


# ----------------------------------------------------------------------------
# Wrapper
# ----------------------------------------------------------------------------
def stable_model_forward(x, params, *, tm=None, act_dtype=None):
    """x: [B, input_dim]; params: dict w1..w4 / b1..b4 (prepare_params() output
    preferred so weight casts are hoisted out of the hot path)."""
    B, D = x.shape
    gen = _tpu_generation()
    if act_dtype is None:
        act_dtype = pick_act_dtype(gen)

    vmem_cap = _vmem_capacity_bytes(gen)
    # Leave headroom for compiler scratch: 96 MiB on v5e/v6e, 48 MiB on v7x.
    vmem_limit = min(vmem_cap * 3 // 4, 96 * 1024 * 1024)

    if tm is None:
        # Big tiles amortize the ~0.35 us/step overhead on v6e/v7x; v5e is
        # already MXU-bound at 2048 rows.
        tm = 2048 if (gen is not None and gen <= 5) else 4096

    # --- tile selection (128-row units, minimal padding) ---------------------
    chunks = pl.cdiv(B, 128)
    g = max(1, min(tm // 128, chunks))
    # v7x has two TensorCores: make sure the "parallel" grid axis has >=2 tiles.
    if (gen is None or gen >= 7) and chunks >= 2:
        g = min(g, pl.cdiv(chunks, 2))
    # Rough VMEM budget: double-buffered bf16 x, f32 matmul results plus
    # bf16/f32 activations per layer, output row, resident weights.
    weight_bytes = 2 * (D * 512 + 512 * 256 + 256 * 128 + 128) \
        + 4 * (512 + 256 + 128 + 1)
    act_b = 4 if act_dtype == jnp.float32 else 2
    per_row = 4 * D + (512 + 256 + 128) * (4 + act_b) + 16
    budget_rows = max(128, (vmem_limit - 2 * weight_bytes - (2 << 20)) // per_row)
    g = max(1, min(g, budget_rows // 128))

    num_tiles = pl.cdiv(chunks, g)
    g = pl.cdiv(chunks, num_tiles)               # rebalance tiles evenly
    tm = g * 128
    Bp = num_tiles * tm

    # bf16 input tile -> half the dominant HBM->VMEM input traffic.
    if x.dtype != jnp.bfloat16:
        x = x.astype(jnp.bfloat16)
    if Bp != B:
        # TODO(synk): a ragged last tile would avoid this copy entirely; pad is
        # bounded by < num_tiles*128 rows of zeros and sliced off below.
        x = jnp.pad(x, ((0, Bp - B), (0, 0)))

    def _bf16(a):
        return a if a.dtype == jnp.bfloat16 else a.astype(jnp.bfloat16)

    def _f32(a):
        return a if a.dtype == jnp.float32 else a.astype(jnp.float32)

    w1, w2, w3, w4 = (_bf16(params[k]) for k in ("w1", "w2", "w3", "w4"))
    b1, b2, b3, b4 = (_f32(params[k]) for k in ("b1", "b2", "b3", "b4"))

    def run(single_buffer_weights, act):
        kernel = functools.partial(stable_model_kernel, act_dtype=act)

        def const_spec(arr):
            idx = lambda i: (0,) * arr.ndim
            if single_buffer_weights:
                # Constant block index -> fetched once; single buffer saves VMEM.
                return pl.BlockSpec(arr.shape, idx, pipeline_mode=pl.Buffered(1))
            return pl.BlockSpec(arr.shape, idx)

        out = pl.pallas_call(
            kernel,
            out_shape=jax.ShapeDtypeStruct((1, Bp), jnp.float32),
            grid_spec=pltpu.PrefetchScalarGridSpec(
                num_scalar_prefetch=0,
                grid=(num_tiles,),
                in_specs=[
                    pl.BlockSpec((tm, D), lambda i: (i, 0)),   # x batch tile
                    const_spec(w1), const_spec(b1),
                    const_spec(w2), const_spec(b2),
                    const_spec(w3), const_spec(b3),
                    const_spec(w4), const_spec(b4),
                ],
                # Lane-dense output: each grid step writes one (1, tm) row.
                out_specs=pl.BlockSpec((1, tm), lambda i: (0, i)),
            ),
            compiler_params=pltpu.CompilerParams(
                dimension_semantics=("parallel",),
                vmem_limit_bytes=int(vmem_limit),
            ),
        )(x, w1, b1, w2, b2, w3, b3, w4, b4)
        return jax.block_until_ready(out)

    # Graceful fallbacks: (1) single-buffered weights, (2) default buffering,
    # (3) f32 activations — numerics of all paths stay within test tolerance.
    attempts = [(True, act_dtype), (False, act_dtype)]
    if act_dtype != jnp.float32:
        attempts.append((False, jnp.float32))
    out, last_err = None, None
    for sbuf, act in attempts:
        try:
            out = run(sbuf, act)
            break
        except Exception as e:          # version/hardware dependent features
            last_err = e
    if out is None:
        raise last_err

    return out[0, :B].reshape(B, 1)


# ----------------------------------------------------------------------------
# Params / reference
# ----------------------------------------------------------------------------
def init_params(key, input_dim):
    """nn.Linear-style init (uniform +/- 1/sqrt(fan_in)), stored in f32.
    w1..w3 are [in, out]; w4 is a [1, 128] row.  Biases are [1, out]."""
    specs = [("1", input_dim, 512, False), ("2", 512, 256, False),
             ("3", 256, 128, False), ("4", 128, 1, True)]
    params = {}
    for name, fan_in, fan_out, as_row in specs:
        key, kw, kb = jax.random.split(key, 3)
        bound = 1.0 / jnp.sqrt(float(fan_in))
        wshape = (fan_out, fan_in) if as_row else (fan_in, fan_out)
        params[f"w{name}"] = jax.random.uniform(
            kw, wshape, jnp.float32, -bound, bound)
        params[f"b{name}"] = jax.random.uniform(
            kb, (1, fan_out), jnp.float32, -bound, bound)
    return params


def prepare_params(params):
    """Hoist the per-call f32->bf16 weight casts out of the hot path."""
    out = {}
    for n in ("1", "2", "3", "4"):
        out[f"w{n}"] = params[f"w{n}"].astype(jnp.bfloat16)
        out[f"b{n}"] = params[f"b{n}"].astype(jnp.float32)
    return out


def reference_forward(x, params, act_dtype=jnp.bfloat16):
    """Pure-JAX reference mirroring the kernel's bf16-operand / f32-accum math."""
    h = x.astype(jnp.bfloat16)
    for n in ("1", "2", "3"):
        z = jnp.dot(h, params[f"w{n}"].astype(jnp.bfloat16),
                    preferred_element_type=jnp.float32) \
            + params[f"b{n}"].astype(jnp.float32)
        z = z.astype(act_dtype)
        z = jnp.where(z > 0, z, jnp.exp(z) - 1)
        h = z.astype(jnp.bfloat16)
    y = jnp.dot(h, params["w4"].astype(jnp.bfloat16).T,
                preferred_element_type=jnp.float32) \
        + params["b4"].astype(jnp.float32)
    y = jnp.where(y > 20.0, y, jnp.log1p(jnp.exp(jnp.minimum(y, 20.0))))
    return jnp.clip(y, 1e-4, 1e6)


if __name__ == "__main__":
    # TODO(synk): Dropout(p=0.3) is only active in train mode; this kernel
    # implements eval/inference semantics (dropout == identity).
    key = jax.random.PRNGKey(0)
    input_dim = 32
    batch = 16

    kx, kp = jax.random.split(key)
    x = jax.random.normal(kx, (batch, input_dim), jnp.float32)
    params = init_params(kp, input_dim)
    fwd_params = prepare_params(params)          # bf16 weights cached once
    act_dtype = pick_act_dtype()

    out = stable_model_forward(x, fwd_params, act_dtype=act_dtype)
    out = jax.block_until_ready(out)

    ref = reference_forward(x, params, act_dtype=act_dtype)
    assert out.shape == (batch, 1)
    assert bool(jnp.all(jnp.isfinite(out)))
    assert bool(jnp.all((out >= 1e-4 - 1e-7) & (out <= 1e6 + 1.0)))
    assert jnp.allclose(out, ref, atol=5e-3, rtol=5e-2), (
        float(jnp.max(jnp.abs(out - ref))))

    print("KERNEL_OK")
</pallas_src>

<mosaic_0001>
module attributes {stable_mosaic.version = 11 : i64} {
  func.func @stable_model_kernel(%arg0: i32, %arg1: memref<128x32xbf16, #tpu.memory_space<vmem>>, %arg2: memref<32x512xbf16, #tpu.memory_space<vmem>>, %arg3: memref<1x512xf32, #tpu.memory_space<vmem>>, %arg4: memref<512x256xbf16, #tpu.memory_space<vmem>>, %arg5: memref<1x256xf32, #tpu.memory_space<vmem>>, %arg6: memref<256x128xbf16, #tpu.memory_space<vmem>>, %arg7: memref<1x128xf32, #tpu.memory_space<vmem>>, %arg8: memref<1x128xbf16, #tpu.memory_space<vmem>>, %arg9: memref<1x1xf32, #tpu.memory_space<vmem>>, %arg10: memref<1x128xf32, #tpu.memory_space<vmem>>) attributes {dimension_semantics = [#tpu.dimension_semantics<parallel>], iteration_bounds = array<i64: 1>, scalar_prefetch = 0 : i64, scratch_operands = 0 : i64, tpu.core_type = #tpu.core_type<tc>, window_params = [{transform_indices = @transform_0, window_bounds = array<i64: 128, 32>}, {pipeline_mode = #tpu.pipeline_mode<synchronous>, transform_indices = @transform_1, window_bounds = array<i64: 32, 512>}, {pipeline_mode = #tpu.pipeline_mode<synchronous>, transform_indices = @transform_2, window_bounds = array<i64: 1, 512>}, {pipeline_mode = #tpu.pipeline_mode<synchronous>, transform_indices = @transform_3, window_bounds = array<i64: 512, 256>}, {pipeline_mode = #tpu.pipeline_mode<synchronous>, transform_indices = @transform_4, window_bounds = array<i64: 1, 256>}, {pipeline_mode = #tpu.pipeline_mode<synchronous>, transform_indices = @transform_5, window_bounds = array<i64: 256, 128>}, {pipeline_mode = #tpu.pipeline_mode<synchronous>, transform_indices = @transform_6, window_bounds = array<i64: 1, 128>}, {pipeline_mode = #tpu.pipeline_mode<synchronous>, transform_indices = @transform_7, window_bounds = array<i64: 1, 128>}, {pipeline_mode = #tpu.pipeline_mode<synchronous>, transform_indices = @transform_8, window_bounds = array<i64: 1, 1>}, {transform_indices = @transform_9, window_bounds = array<i64: 1, 128>}]} {
    %c0 = arith.constant 0 : index
    %c0_0 = arith.constant 0 : index
    %0 = vector.load %arg1[%c0, %c0_0] : memref<128x32xbf16, #tpu.memory_space<vmem>>, vector<128x32xbf16>
    %c0_1 = arith.constant 0 : index
    %c0_2 = arith.constant 0 : index
    %1 = vector.load %arg2[%c0_1, %c0_2] : memref<32x512xbf16, #tpu.memory_space<vmem>>, vector<32x512xbf16>
    %cst = arith.constant dense<0.000000e+00> : vector<128x512xf32>
    %2 = tpu.matmul %0, %1, %cst {dimension_numbers = #tpu.dot_dimension_numbers<[1], [0], [0], [1], [0, 0, 1, 1], [], []>} : vector<128x32xbf16>, vector<32x512xbf16>, vector<128x512xf32> -> vector<128x512xf32>
    %c0_3 = arith.constant 0 : index
    %c0_4 = arith.constant 0 : index
    %3 = vector.load %arg3[%c0_3, %c0_4] : memref<1x512xf32, #tpu.memory_space<vmem>>, vector<1x512xf32>
    %4 = vector.broadcast %3 : vector<1x512xf32> to vector<128x512xf32>
    %5 = arith.addf %2, %4 : vector<128x512xf32>
    %6 = arith.truncf %5 : vector<128x512xf32> to vector<128x512xbf16>
    %cst_5 = arith.constant 0.000000e+00 : bf16
    %7 = vector.broadcast %cst_5 : bf16 to vector<128x512xbf16>
    %8 = arith.cmpf ogt, %6, %7 : vector<128x512xbf16>
    %9 = math.exp %6 : vector<128x512xbf16>
    %cst_6 = arith.constant 1.000000e+00 : bf16
    %10 = vector.broadcast %cst_6 : bf16 to vector<128x512xbf16>
    %11 = arith.subf %9, %10 : vector<128x512xbf16>
    %12 = arith.select %8, %6, %11 : vector<128x512xi1>, vector<128x512xbf16>
    %c0_7 = arith.constant 0 : index
    %c0_8 = arith.constant 0 : index
    %13 = vector.load %arg4[%c0_7, %c0_8] : memref<512x256xbf16, #tpu.memory_space<vmem>>, vector<512x256xbf16>
    %cst_9 = arith.constant dense<0.000000e+00> : vector<128x256xf32>
    %14 = tpu.matmul %12, %13, %cst_9 {dimension_numbers = #tpu.dot_dimension_numbers<[1], [0], [0], [1], [0, 0, 1, 1], [], []>} : vector<128x512xbf16>, vector<512x256xbf16>, vector<128x256xf32> -> vector<128x256xf32>
    %c0_10 = arith.constant 0 : index
    %c0_11 = arith.constant 0 : index
    %15 = vector.load %arg5[%c0_10, %c0_11] : memref<1x256xf32, #tpu.memory_space<vmem>>, vector<1x256xf32>
    %16 = vector.broadcast %15 : vector<1x256xf32> to vector<128x256xf32>
    %17 = arith.addf %14, %16 : vector<128x256xf32>
    %18 = arith.truncf %17 : vector<128x256xf32> to vector<128x256xbf16>
    %cst_12 = arith.constant 0.000000e+00 : bf16
    %19 = vector.broadcast %cst_12 : bf16 to vector<128x256xbf16>
    %20 = arith.cmpf ogt, %18, %19 : vector<128x256xbf16>
    %21 = math.exp %18 : vector<128x256xbf16>
    %cst_13 = arith.constant 1.000000e+00 : bf16
    %22 = vector.broadcast %cst_13 : bf16 to vector<128x256xbf16>
    %23 = arith.subf %21, %22 : vector<128x256xbf16>
    %24 = arith.select %20, %18, %23 : vector<128x256xi1>, vector<128x256xbf16>
    %c0_14 = arith.constant 0 : index
    %c0_15 = arith.constant 0 : index
    %25 = vector.load %arg6[%c0_14, %c0_15] : memref<256x128xbf16, #tpu.memory_space<vmem>>, vector<256x128xbf16>
    %cst_16 = arith.constant dense<0.000000e+00> : vector<128x128xf32>
    %26 = tpu.matmul %24, %25, %cst_16 {dimension_numbers = #tpu.dot_dimension_numbers<[1], [0], [0], [1], [0, 0, 1, 1], [], []>} : vector<128x256xbf16>, vector<256x128xbf16>, vector<128x128xf32> -> vector<128x128xf32>
    %c0_17 = arith.constant 0 : index
    %c0_18 = arith.constant 0 : index
    %27 = vector.load %arg7[%c0_17, %c0_18] : memref<1x128xf32, #tpu.memory_space<vmem>>, vector<1x128xf32>
    %28 = vector.broadcast %27 : vector<1x128xf32> to vector<128x128xf32>
    %29 = arith.addf %26, %28 : vector<128x128xf32>
    %30 = arith.truncf %29 : vector<128x128xf32> to vector<128x128xbf16>
    %cst_19 = arith.constant 0.000000e+00 : bf16
    %31 = vector.broadcast %cst_19 : bf16 to vector<128x128xbf16>
    %32 = arith.cmpf ogt, %30, %31 : vector<128x128xbf16>
    %33 = math.exp %30 : vector<128x128xbf16>
    %cst_20 = arith.constant 1.000000e+00 : bf16
    %34 = vector.broadcast %cst_20 : bf16 to vector<128x128xbf16>
    %35 = arith.subf %33, %34 : vector<128x128xbf16>
    %36 = arith.select %32, %30, %35 : vector<128x128xi1>, vector<128x128xbf16>
    %c0_21 = arith.constant 0 : index
    %c0_22 = arith.constant 0 : index
    %37 = vector.load %arg8[%c0_21, %c0_22] : memref<1x128xbf16, #tpu.memory_space<vmem>>, vector<1x128xbf16>
    %cst_23 = arith.constant dense<0.000000e+00> : vector<1x128xf32>
    %38 = tpu.matmul %37, %36, %cst_23 {dimension_numbers = #tpu.dot_dimension_numbers<[1], [1], [0], [0], [0, 0, 1, 0], [], []>} : vector<1x128xbf16>, vector<128x128xbf16>, vector<1x128xf32> -> vector<1x128xf32>
    %c0_24 = arith.constant 0 : index
    %c0_25 = arith.constant 0 : index
    %39 = vector.load %arg9[%c0_24, %c0_25] : memref<1x1xf32, #tpu.memory_space<vmem>>, vector<1x1xf32>
    %40 = vector.broadcast %39 : vector<1x1xf32> to vector<1x128xf32>
    %41 = arith.addf %38, %40 : vector<1x128xf32>
    %cst_26 = arith.constant 2.000000e+01 : f32
    %42 = vector.broadcast %cst_26 : f32 to vector<1x128xf32>
    %43 = arith.cmpf ogt, %41, %42 : vector<1x128xf32>
    %cst_27 = arith.constant 2.000000e+01 : f32
    %44 = vector.broadcast %cst_27 : f32 to vector<1x128xf32>
    %45 = arith.minimumf %41, %44 : vector<1x128xf32>
    %46 = math.exp %45 : vector<1x128xf32>
    %47 = math.log1p %46 : vector<1x128xf32>
    %48 = arith.select %43, %41, %47 : vector<1x128xi1>, vector<1x128xf32>
    %cst_28 = arith.constant 9.99999974E-5 : f32
    %cst_29 = arith.constant 1.000000e+06 : f32
    %49 = vector.broadcast %cst_28 : f32 to vector<1x128xf32>
    %50 = arith.maximumf %49, %48 : vector<1x128xf32>
    %51 = vector.broadcast %cst_29 : f32 to vector<1x128xf32>
    %52 = arith.minimumf %51, %50 : vector<1x128xf32>
    %c0_30 = arith.constant 0 : index
    %c0_31 = arith.constant 0 : index
    %53 = vector.load %arg10[%c0_30, %c0_31] : memref<1x128xf32, #tpu.memory_space<vmem>>, vector<1x128xf32>
    tpu.vector_store %arg10[%c0_30, %c0_31], %52 {strides = array<i32>} : memref<1x128xf32, #tpu.memory_space<vmem>>, vector<1x128xf32>,
    return
  }
  func.func @transform_0(%arg0: i32) -> (i32, i32) {
    %c0_i32 = arith.constant 0 : i32
    %c0_i32_0 = arith.constant 0 : i32
    return %arg0, %c0_i32 : i32, i32
  }
  func.func @transform_1(%arg0: i32) -> (i32, i32) {
    %c0_i32 = arith.constant 0 : i32
    %c0_i32_0 = arith.constant 0 : i32
    %c0_i32_1 = arith.constant 0 : i32
    return %c0_i32, %c0_i32_0 : i32, i32
  }
  func.func @transform_2(%arg0: i32) -> (i32, i32) {
    %c0_i32 = arith.constant 0 : i32
    %c0_i32_0 = arith.constant 0 : i32
    %c0_i32_1 = arith.constant 0 : i32
    return %c0_i32, %c0_i32_0 : i32, i32
  }
  func.func @transform_3(%arg0: i32) -> (i32, i32) {
    %c0_i32 = arith.constant 0 : i32
    %c0_i32_0 = arith.constant 0 : i32
    %c0_i32_1 = arith.constant 0 : i32
    return %c0_i32, %c0_i32_0 : i32, i32
  }
  func.func @transform_4(%arg0: i32) -> (i32, i32) {
    %c0_i32 = arith.constant 0 : i32
    %c0_i32_0 = arith.constant 0 : i32
    %c0_i32_1 = arith.constant 0 : i32
    return %c0_i32, %c0_i32_0 : i32, i32
  }
  func.func @transform_5(%arg0: i32) -> (i32, i32) {
    %c0_i32 = arith.constant 0 : i32
    %c0_i32_0 = arith.constant 0 : i32
    %c0_i32_1 = arith.constant 0 : i32
    return %c0_i32, %c0_i32_0 : i32, i32
  }
  func.func @transform_6(%arg0: i32) -> (i32, i32) {
    %c0_i32 = arith.constant 0 : i32
    %c0_i32_0 = arith.constant 0 : i32
    %c0_i32_1 = arith.constant 0 : i32
    return %c0_i32, %c0_i32_0 : i32, i32
  }
  func.func @transform_7(%arg0: i32) -> (i32, i32) {
    %c0_i32 = arith.constant 0 : i32
    %c0_i32_0 = arith.constant 0 : i32
    %c0_i32_1 = arith.constant 0 : i32
    return %c0_i32, %c0_i32_0 : i32, i32
  }
  func.func @transform_8(%arg0: i32) -> (i32, i32) {
    %c0_i32 = arith.constant 0 : i32
    %c0_i32_0 = arith.constant 0 : i32
    %c0_i32_1 = arith.constant 0 : i32
    return %c0_i32, %c0_i32_0 : i32, i32
  }
  func.func @transform_9(%arg0: i32) -> (i32, i32) {
    %c0_i32 = arith.constant 0 : i32
    %c0_i32_0 = arith.constant 0 : i32
    return %c0_i32, %arg0 : i32, i32
  }
}

module attributes {stable_mosaic.version = 11 : i64} {
  func.func @stable_model_kernel(%arg0: i32, %arg1: memref<128x32xbf16, #tpu.memory_space<vmem>>, %arg2: memref<32x512xbf16, #tpu.memory_space<vmem>>, %arg3: memref<1x512xf32, #tpu.memory_space<vmem>>, %arg4: memref<512x256xbf16, #tpu.memory_space<vmem>>, %arg5: memref<1x256xf32, #tpu.memory_space<vmem>>, %arg6: memref<256x128xbf16, #tpu.memory_space<vmem>>, %arg7: memref<1x128xf32, #tpu.memory_space<vmem>>, %arg8: memref<1x128xbf16, #tpu.memory_space<vmem>>, %arg9: memref<1x1xf32, #tpu.memory_space<vmem>>, %arg10: memref<1x128xf32, #tpu.memory_space<vmem>>) attributes {dimension_semantics = [#tpu.dimension_semantics<parallel>], iteration_bounds = array<i64: 1>, scalar_prefetch = 0 : i64, scratch_operands = 0 : i64, tpu.core_type = #tpu.core_type<tc>, window_params = [{transform_indices = @transform_0, window_bounds = array<i64: 128, 32>}, {pipeline_mode = #tpu.pipeline_mode<synchronous>, transform_indices = @transform_1, window_bounds = array<i64: 32, 512>}, {pipeline_mode = #tpu.pipeline_mode<synchronous>, transform_indices = @transform_2, window_bounds = array<i64: 1, 512>}, {pipeline_mode = #tpu.pipeline_mode<synchronous>, transform_indices = @transform_3, window_bounds = array<i64: 512, 256>}, {pipeline_mode = #tpu.pipeline_mode<synchronous>, transform_indices = @transform_4, window_bounds = array<i64: 1, 256>}, {pipeline_mode = #tpu.pipeline_mode<synchronous>, transform_indices = @transform_5, window_bounds = array<i64: 256, 128>}, {pipeline_mode = #tpu.pipeline_mode<synchronous>, transform_indices = @transform_6, window_bounds = array<i64: 1, 128>}, {pipeline_mode = #tpu.pipeline_mode<synchronous>, transform_indices = @transform_7, window_bounds = array<i64: 1, 128>}, {pipeline_mode = #tpu.pipeline_mode<synchronous>, transform_indices = @transform_8, window_bounds = array<i64: 1, 1>}, {transform_indices = @transform_9, window_bounds = array<i64: 1, 128>}]} {
    %c0 = arith.constant 0 : index
    %c0_0 = arith.constant 0 : index
    %0 = vector.load %arg1[%c0, %c0_0] : memref<128x32xbf16, #tpu.memory_space<vmem>>, vector<128x32xbf16>
    %c0_1 = arith.constant 0 : index
    %c0_2 = arith.constant 0 : index
    %1 = vector.load %arg2[%c0_1, %c0_2] : memref<32x512xbf16, #tpu.memory_space<vmem>>, vector<32x512xbf16>
    %cst = arith.constant dense<0.000000e+00> : vector<128x512xf32>
    %2 = tpu.matmul %0, %1, %cst {dimension_numbers = #tpu.dot_dimension_numbers<[1], [0], [0], [1], [0, 0, 1, 1], [], []>} : vector<128x32xbf16>, vector<32x512xbf16>, vector<128x512xf32> -> vector<128x512xf32>
    %c0_3 = arith.constant 0 : index
    %c0_4 = arith.constant 0 : index
    %3 = vector.load %arg3[%c0_3, %c0_4] : memref<1x512xf32, #tpu.memory_space<vmem>>, vector<1x512xf32>
    %4 = vector.broadcast %3 : vector<1x512xf32> to vector<128x512xf32>
    %5 = arith.addf %2, %4 : vector<128x512xf32>
    %6 = arith.truncf %5 : vector<128x512xf32> to vector<128x512xbf16>
    %cst_5 = arith.constant 0.000000e+00 : bf16
    %7 = vector.broadcast %cst_5 : bf16 to vector<128x512xbf16>
    %8 = arith.cmpf ogt, %6, %7 : vector<128x512xbf16>
    %9 = math.exp %6 : vector<128x512xbf16>
    %cst_6 = arith.constant 1.000000e+00 : bf16
    %10 = vector.broadcast %cst_6 : bf16 to vector<128x512xbf16>
    %11 = arith.subf %9, %10 : vector<128x512xbf16>
    %12 = arith.select %8, %6, %11 : vector<128x512xi1>, vector<128x512xbf16>
    %c0_7 = arith.constant 0 : index
    %c0_8 = arith.constant 0 : index
    %13 = vector.load %arg4[%c0_7, %c0_8] : memref<512x256xbf16, #tpu.memory_space<vmem>>, vector<512x256xbf16>
    %cst_9 = arith.constant dense<0.000000e+00> : vector<128x256xf32>
    %14 = tpu.matmul %12, %13, %cst_9 {dimension_numbers = #tpu.dot_dimension_numbers<[1], [0], [0], [1], [0, 0, 1, 1], [], []>} : vector<128x512xbf16>, vector<512x256xbf16>, vector<128x256xf32> -> vector<128x256xf32>
    %c0_10 = arith.constant 0 : index
    %c0_11 = arith.constant 0 : index
    %15 = vector.load %arg5[%c0_10, %c0_11] : memref<1x256xf32, #tpu.memory_space<vmem>>, vector<1x256xf32>
    %16 = vector.broadcast %15 : vector<1x256xf32> to vector<128x256xf32>
    %17 = arith.addf %14, %16 : vector<128x256xf32>
    %18 = arith.truncf %17 : vector<128x256xf32> to vector<128x256xbf16>
    %cst_12 = arith.constant 0.000000e+00 : bf16
    %19 = vector.broadcast %cst_12 : bf16 to vector<128x256xbf16>
    %20 = arith.cmpf ogt, %18, %19 : vector<128x256xbf16>
    %21 = math.exp %18 : vector<128x256xbf16>
    %cst_13 = arith.constant 1.000000e+00 : bf16
    %22 = vector.broadcast %cst_13 : bf16 to vector<128x256xbf16>
    %23 = arith.subf %21, %22 : vector<128x256xbf16>
    %24 = arith.select %20, %18, %23 : vector<128x256xi1>, vector<128x256xbf16>
    %c0_14 = arith.constant 0 : index
    %c0_15 = arith.constant 0 : index
    %25 = vector.load %arg6[%c0_14, %c0_15] : memref<256x128xbf16, #tpu.memory_space<vmem>>, vector<256x128xbf16>
    %cst_16 = arith.constant dense<0.000000e+00> : vector<128x128xf32>
    %26 = tpu.matmul %24, %25, %cst_16 {dimension_numbers = #tpu.dot_dimension_numbers<[1], [0], [0], [1], [0, 0, 1, 1], [], []>} : vector<128x256xbf16>, vector<256x128xbf16>, vector<128x128xf32> -> vector<128x128xf32>
    %c0_17 = arith.constant 0 : index
    %c0_18 = arith.constant 0 : index
    %27 = vector.load %arg7[%c0_17, %c0_18] : memref<1x128xf32, #tpu.memory_space<vmem>>, vector<1x128xf32>
    %28 = vector.broadcast %27 : vector<1x128xf32> to vector<128x128xf32>
    %29 = arith.addf %26, %28 : vector<128x128xf32>
    %30 = arith.truncf %29 : vector<128x128xf32> to vector<128x128xbf16>
    %cst_19 = arith.constant 0.000000e+00 : bf16
    %31 = vector.broadcast %cst_19 : bf16 to vector<128x128xbf16>
    %32 = arith.cmpf ogt, %30, %31 : vector<128x128xbf16>
    %33 = math.exp %30 : vector<128x128xbf16>
    %cst_20 = arith.constant 1.000000e+00 : bf16
    %34 = vector.broadcast %cst_20 : bf16 to vector<128x128xbf16>
    %35 = arith.subf %33, %34 : vector<128x128xbf16>
    %36 = arith.select %32, %30, %35 : vector<128x128xi1>, vector<128x128xbf16>
    %c0_21 = arith.constant 0 : index
    %c0_22 = arith.constant 0 : index
    %37 = vector.load %arg8[%c0_21, %c0_22] : memref<1x128xbf16, #tpu.memory_space<vmem>>, vector<1x128xbf16>
    %cst_23 = arith.constant dense<0.000000e+00> : vector<1x128xf32>
    %38 = tpu.matmul %37, %36, %cst_23 {dimension_numbers = #tpu.dot_dimension_numbers<[1], [1], [0], [0], [0, 0, 1, 0], [], []>} : vector<1x128xbf16>, vector<128x128xbf16>, vector<1x128xf32> -> vector<1x128xf32>
    %c0_24 = arith.constant 0 : index
    %c0_25 = arith.constant 0 : index
    %39 = vector.load %arg9[%c0_24, %c0_25] : memref<1x1xf32, #tpu.memory_space<vmem>>, vector<1x1xf32>
    %40 = vector.broadcast %39 : vector<1x1xf32> to vector<1x128xf32>
    %41 = arith.addf %38, %40 : vector<1x128xf32>
    %cst_26 = arith.constant 2.000000e+01 : f32
    %42 = vector.broadcast %cst_26 : f32 to vector<1x128xf32>
    %43 = arith.cmpf ogt, %41, %42 : vector<1x128xf32>
    %cst_27 = arith.constant 2.000000e+01 : f32
    %44 = vector.broadcast %cst_27 : f32 to vector<1x128xf32>
    %45 = arith.minimumf %41, %44 : vector<1x128xf32>
    %46 = math.exp %45 : vector<1x128xf32>
    %47 = math.log1p %46 : vector<1x128xf32>
    %48 = arith.select %43, %41, %47 : vector<1x128xi1>, vector<1x128xf32>
    %cst_28 = arith.constant 9.99999974E-5 : f32
    %cst_29 = arith.constant 1.000000e+06 : f32
    %49 = vector.broadcast %cst_28 : f32 to vector<1x128xf32>
    %50 = arith.maximumf %49, %48 : vector<1x128xf32>
    %51 = vector.broadcast %cst_29 : f32 to vector<1x128xf32>
    %52 = arith.minimumf %51, %50 : vector<1x128xf32>
    %c0_30 = arith.constant 0 : index
    %c0_31 = arith.constant 0 : index
    %53 = vector.load %arg10[%c0_30, %c0_31] : memref<1x128xf32, #tpu.memory_space<vmem>>, vector<1x128xf32>
    tpu.vector_store %arg10[%c0_30, %c0_31], %52 {strides = array<i32>} : memref<1x128xf32, #tpu.memory_space<vmem>>, vector<1x128xf32>,
    return
  }
  func.func @transform_0(%arg0: i32) -> (i32, i32) {
    %c0_i32 = arith.constant 0 : i32
    %c0_i32_0 = arith.constant 0 : i32
    return %arg0, %c0_i32 : i32, i32
  }
  func.func @transform_1(%arg0: i32) -> (i32, i32) {
    %c0_i32 = arith.constant 0 : i32
    %c0_i32_0 = arith.constant 0 : i32
    %c0_i32_1 = arith.constant 0 : i32
    return %c0_i32, %c0_i32_0 : i32, i32
  }
  func.func @transform_2(%arg0: i32) -> (i32, i32) {
    %c0_i32 = arith.constant 0 : i32
    %c0_i32_0 = arith.constant 0 : i32
    %c0_i32_1 = arith.constant 0 : i32
    return %c0_i32, %c0_i32_0 : i32, i32
  }
  func.func @transform_3(%arg0: i32) -> (i32, i32) {
    %c0_i32 = arith.constant 0 : i32
    %c0_i32_0 = arith.constant 0 : i32
    %c0_i32_1 = arith.constant 0 : i32
    return %c0_i32, %c0_i32_0 : i32, i32
  }
  func.func @transform_4(%arg0: i32) -> (i32, i32) {
    %c0_i32 = arith.constant 0 : i32
    %c0_i32_0 = arith.constant 0 : i32
    %c0_i32_1 = arith.constant 0 : i32
    return %c0_i32, %c0_i32_0 : i32, i32
  }
  func.func @transform_5(%arg0: i32) -> (i32, i32) {
    %c0_i32 = arith.constant 0 : i32
    %c0_i32_0 = arith.constant 0 : i32
    %c0_i32_1 = arith.constant 0 : i32
    return %c0_i32, %c0_i32_0 : i32, i32
  }
  func.func @transform_6(%arg0: i32) -> (i32, i32) {
    %c0_i32 = arith.constant 0 : i32
    %c0_i32_0 = arith.constant 0 : i32
    %c0_i32_1 = arith.constant 0 : i32
    return %c0_i32, %c0_i32_0 : i32, i32
  }
  func.func @transform_7(%arg0: i32) -> (i32, i32) {
    %c0_i32 = arith.constant 0 : i32
    %c0_i32_0 = arith.constant 0 : i32
    %c0_i32_1 = arith.constant 0 : i32
    return %c0_i32, %c0_i32_0 : i32, i32
  }
  func.func @transform_8(%arg0: i32) -> (i32, i32) {
    %c0_i32 = arith.constant 0 : i32
    %c0_i32_0 = arith.constant 0 : i32
    %c0_i32_1 = arith.constant 0 : i32
    return %c0_i32, %c0_i32_0 : i32, i32
  }
  func.func @transform_9(%arg0: i32) -> (i32, i32) {
    %c0_i32 = arith.constant 0 : i32
    %c0_i32_0 = arith.constant 0 : i32
    return %c0_i32, %arg0 : i32, i32
  }
}

module attributes {stable_mosaic.version = 11 : i64} {
  func.func @stable_model_kernel(%arg0: i32, %arg1: memref<128x32xbf16, #tpu.memory_space<vmem>>, %arg2: memref<32x512xbf16, #tpu.memory_space<vmem>>, %arg3: memref<1x512xf32, #tpu.memory_space<vmem>>, %arg4: memref<512x256xbf16, #tpu.memory_space<vmem>>, %arg5: memref<1x256xf32, #tpu.memory_space<vmem>>, %arg6: memref<256x128xbf16, #tpu.memory_space<vmem>>, %arg7: memref<1x128xf32, #tpu.memory_space<vmem>>, %arg8: memref<1x128xbf16, #tpu.memory_space<vmem>>, %arg9: memref<1x1xf32, #tpu.memory_space<vmem>>, %arg10: memref<1x128xf32, #tpu.memory_space<vmem>>) attributes {dimension_semantics = [#tpu.dimension_semantics<parallel>], iteration_bounds = array<i64: 1>, scalar_prefetch = 0 : i64, scratch_operands = 0 : i64, tpu.core_type = #tpu.core_type<tc>, window_params = [{transform_indices = @transform_0, window_bounds = array<i64: 128, 32>}, {pipeline_mode = #tpu.pipeline_mode<synchronous>, transform_indices = @transform_1, window_bounds = array<i64: 32, 512>}, {pipeline_mode = #tpu.pipeline_mode<synchronous>, transform_indices = @transform_2, window_bounds = array<i64: 1, 512>}, {pipeline_mode = #tpu.pipeline_mode<synchronous>, transform_indices = @transform_3, window_bounds = array<i64: 512, 256>}, {pipeline_mode = #tpu.pipeline_mode<synchronous>, transform_indices = @transform_4, window_bounds = array<i64: 1, 256>}, {pipeline_mode = #tpu.pipeline_mode<synchronous>, transform_indices = @transform_5, window_bounds = array<i64: 256, 128>}, {pipeline_mode = #tpu.pipeline_mode<synchronous>, transform_indices = @transform_6, window_bounds = array<i64: 1, 128>}, {pipeline_mode = #tpu.pipeline_mode<synchronous>, transform_indices = @transform_7, window_bounds = array<i64: 1, 128>}, {pipeline_mode = #tpu.pipeline_mode<synchronous>, transform_indices = @transform_8, window_bounds = array<i64: 1, 1>}, {transform_indices = @transform_9, window_bounds = array<i64: 1, 128>}]} {
    %c0 = arith.constant 0 : index
    %c0_0 = arith.constant 0 : index
    %0 = vector.load %arg1[%c0, %c0_0] : memref<128x32xbf16, #tpu.memory_space<vmem>>, vector<128x32xbf16>
    %c0_1 = arith.constant 0 : index
    %c0_2 = arith.constant 0 : index
    %1 = vector.load %arg2[%c0_1, %c0_2] : memref<32x512xbf16, #tpu.memory_space<vmem>>, vector<32x512xbf16>
    %cst = arith.constant dense<0.000000e+00> : vector<128x512xf32>
    %2 = tpu.matmul %0, %1, %cst {dimension_numbers = #tpu.dot_dimension_numbers<[1], [0], [0], [1], [0, 0, 1, 1], [], []>} : vector<128x32xbf16>, vector<32x512xbf16>, vector<128x512xf32> -> vector<128x512xf32>
    %c0_3 = arith.constant 0 : index
    %c0_4 = arith.constant 0 : index
    %3 = vector.load %arg3[%c0_3, %c0_4] : memref<1x512xf32, #tpu.memory_space<vmem>>, vector<1x512xf32>
    %4 = vector.broadcast %3 : vector<1x512xf32> to vector<128x512xf32>
    %5 = arith.addf %2, %4 : vector<128x512xf32>
    %cst_5 = arith.constant 0.000000e+00 : f32
    %6 = vector.broadcast %cst_5 : f32 to vector<128x512xf32>
    %7 = arith.cmpf ogt, %5, %6 : vector<128x512xf32>
    %8 = math.exp %5 : vector<128x512xf32>
    %cst_6 = arith.constant 1.000000e+00 : f32
    %9 = vector.broadcast %cst_6 : f32 to vector<128x512xf32>
    %10 = arith.subf %8, %9 : vector<128x512xf32>
    %11 = arith.select %7, %5, %10 : vector<128x512xi1>, vector<128x512xf32>
    %12 = arith.truncf %11 : vector<128x512xf32> to vector<128x512xbf16>
    %c0_7 = arith.constant 0 : index
    %c0_8 = arith.constant 0 : index
    %13 = vector.load %arg4[%c0_7, %c0_8] : memref<512x256xbf16, #tpu.memory_space<vmem>>, vector<512x256xbf16>
    %cst_9 = arith.constant dense<0.000000e+00> : vector<128x256xf32>
    %14 = tpu.matmul %12, %13, %cst_9 {dimension_numbers = #tpu.dot_dimension_numbers<[1], [0], [0], [1], [0, 0, 1, 1], [], []>} : vector<128x512xbf16>, vector<512x256xbf16>, vector<128x256xf32> -> vector<128x256xf32>
    %c0_10 = arith.constant 0 : index
    %c0_11 = arith.constant 0 : index
    %15 = vector.load %arg5[%c0_10, %c0_11] : memref<1x256xf32, #tpu.memory_space<vmem>>, vector<1x256xf32>
    %16 = vector.broadcast %15 : vector<1x256xf32> to vector<128x256xf32>
    %17 = arith.addf %14, %16 : vector<128x256xf32>
    %cst_12 = arith.constant 0.000000e+00 : f32
    %18 = vector.broadcast %cst_12 : f32 to vector<128x256xf32>
    %19 = arith.cmpf ogt, %17, %18 : vector<128x256xf32>
    %20 = math.exp %17 : vector<128x256xf32>
    %cst_13 = arith.constant 1.000000e+00 : f32
    %21 = vector.broadcast %cst_13 : f32 to vector<128x256xf32>
    %22 = arith.subf %20, %21 : vector<128x256xf32>
    %23 = arith.select %19, %17, %22 : vector<128x256xi1>, vector<128x256xf32>
    %24 = arith.truncf %23 : vector<128x256xf32> to vector<128x256xbf16>
    %c0_14 = arith.constant 0 : index
    %c0_15 = arith.constant 0 : index
    %25 = vector.load %arg6[%c0_14, %c0_15] : memref<256x128xbf16, #tpu.memory_space<vmem>>, vector<256x128xbf16>
    %cst_16 = arith.constant dense<0.000000e+00> : vector<128x128xf32>
    %26 = tpu.matmul %24, %25, %cst_16 {dimension_numbers = #tpu.dot_dimension_numbers<[1], [0], [0], [1], [0, 0, 1, 1], [], []>} : vector<128x256xbf16>, vector<256x128xbf16>, vector<128x128xf32> -> vector<128x128xf32>
    %c0_17 = arith.constant 0 : index
    %c0_18 = arith.constant 0 : index
    %27 = vector.load %arg7[%c0_17, %c0_18] : memref<1x128xf32, #tpu.memory_space<vmem>>, vector<1x128xf32>
    %28 = vector.broadcast %27 : vector<1x128xf32> to vector<128x128xf32>
    %29 = arith.addf %26, %28 : vector<128x128xf32>
    %cst_19 = arith.constant 0.000000e+00 : f32
    %30 = vector.broadcast %cst_19 : f32 to vector<128x128xf32>
    %31 = arith.cmpf ogt, %29, %30 : vector<128x128xf32>
    %32 = math.exp %29 : vector<128x128xf32>
    %cst_20 = arith.constant 1.000000e+00 : f32
    %33 = vector.broadcast %cst_20 : f32 to vector<128x128xf32>
    %34 = arith.subf %32, %33 : vector<128x128xf32>
    %35 = arith.select %31, %29, %34 : vector<128x128xi1>, vector<128x128xf32>
    %36 = arith.truncf %35 : vector<128x128xf32> to vector<128x128xbf16>
    %c0_21 = arith.constant 0 : index
    %c0_22 = arith.constant 0 : index
    %37 = vector.load %arg8[%c0_21, %c0_22] : memref<1x128xbf16, #tpu.memory_space<vmem>>, vector<1x128xbf16>
    %cst_23 = arith.constant dense<0.000000e+00> : vector<1x128xf32>
    %38 = tpu.matmul %37, %36, %cst_23 {dimension_numbers = #tpu.dot_dimension_numbers<[1], [1], [0], [0], [0, 0, 1, 0], [], []>} : vector<1x128xbf16>, vector<128x128xbf16>, vector<1x128xf32> -> vector<1x128xf32>
    %c0_24 = arith.constant 0 : index
    %c0_25 = arith.constant 0 : index
    %39 = vector.load %arg9[%c0_24, %c0_25] : memref<1x1xf32, #tpu.memory_space<vmem>>, vector<1x1xf32>
    %40 = vector.broadcast %39 : vector<1x1xf32> to vector<1x128xf32>
    %41 = arith.addf %38, %40 : vector<1x128xf32>
    %cst_26 = arith.constant 2.000000e+01 : f32
    %42 = vector.broadcast %cst_26 : f32 to vector<1x128xf32>
    %43 = arith.cmpf ogt, %41, %42 : vector<1x128xf32>
    %cst_27 = arith.constant 2.000000e+01 : f32
    %44 = vector.broadcast %cst_27 : f32 to vector<1x128xf32>
    %45 = arith.minimumf %41, %44 : vector<1x128xf32>
    %46 = math.exp %45 : vector<1x128xf32>
    %47 = math.log1p %46 : vector<1x128xf32>
    %48 = arith.select %43, %41, %47 : vector<1x128xi1>, vector<1x128xf32>
    %cst_28 = arith.constant 9.99999974E-5 : f32
    %cst_29 = arith.constant 1.000000e+06 : f32
    %49 = vector.broadcast %cst_28 : f32 to vector<1x128xf32>
    %50 = arith.maximumf %49, %48 : vector<1x128xf32>
    %51 = vector.broadcast %cst_29 : f32 to vector<1x128xf32>
    %52 = arith.minimumf %51, %50 : vector<1x128xf32>
    %c0_30 = arith.constant 0 : index
    %c0_31 = arith.constant 0 : index
    %53 = vector.load %arg10[%c0_30, %c0_31] : memref<1x128xf32, #tpu.memory_space<vmem>>, vector<1x128xf32>
    tpu.vector_store %arg10[%c0_30, %c0_31], %52 {strides = array<i32>} : memref<1x128xf32, #tpu.memory_space<vmem>>, vector<1x128xf32>,
    return
  }
  func.func @transform_0(%arg0: i32) -> (i32, i32) {
    %c0_i32 = arith.constant 0 : i32
    %c0_i32_0 = arith.constant 0 : i32
    return %arg0, %c0_i32 : i32, i32
  }
  func.func @transform_1(%arg0: i32) -> (i32, i32) {
    %c0_i32 = arith.constant 0 : i32
    %c0_i32_0 = arith.constant 0 : i32
    %c0_i32_1 = arith.constant 0 : i32
    return %c0_i32, %c0_i32_0 : i32, i32
  }
  func.func @transform_2(%arg0: i32) -> (i32, i32) {
    %c0_i32 = arith.constant 0 : i32
    %c0_i32_0 = arith.constant 0 : i32
    %c0_i32_1 = arith.constant 0 : i32
    return %c0_i32, %c0_i32_0 : i32, i32
  }
  func.func @transform_3(%arg0: i32) -> (i32, i32) {
    %c0_i32 = arith.constant 0 : i32
    %c0_i32_0 = arith.constant 0 : i32
    %c0_i32_1 = arith.constant 0 : i32
    return %c0_i32, %c0_i32_0 : i32, i32
  }
  func.func @transform_4(%arg0: i32) -> (i32, i32) {
    %c0_i32 = arith.constant 0 : i32
    %c0_i32_0 = arith.constant 0 : i32
    %c0_i32_1 = arith.constant 0 : i32
    return %c0_i32, %c0_i32_0 : i32, i32
  }
  func.func @transform_5(%arg0: i32) -> (i32, i32) {
    %c0_i32 = arith.constant 0 : i32
    %c0_i32_0 = arith.constant 0 : i32
    %c0_i32_1 = arith.constant 0 : i32
    return %c0_i32, %c0_i32_0 : i32, i32
  }
  func.func @transform_6(%arg0: i32) -> (i32, i32) {
    %c0_i32 = arith.constant 0 : i32
    %c0_i32_0 = arith.constant 0 : i32
    %c0_i32_1 = arith.constant 0 : i32
    return %c0_i32, %c0_i32_0 : i32, i32
  }
  func.func @transform_7(%arg0: i32) -> (i32, i32) {
    %c0_i32 = arith.constant 0 : i32
    %c0_i32_0 = arith.constant 0 : i32
    %c0_i32_1 = arith.constant 0 : i32
    return %c0_i32, %c0_i32_0 : i32, i32
  }
  func.func @transform_8(%arg0: i32) -> (i32, i32) {
    %c0_i32 = arith.constant 0 : i32
    %c0_i32_0 = arith.constant 0 : i32
    %c0_i32_1 = arith.constant 0 : i32
    return %c0_i32, %c0_i32_0 : i32, i32
  }
  func.func @transform_9(%arg0: i32) -> (i32, i32) {
    %c0_i32 = arith.constant 0 : i32
    %c0_i32_0 = arith.constant 0 : i32
    return %c0_i32, %arg0 : i32, i32
  }
}

</mosaic_0001>

<llo_original>
// kernel: tpu_custom_call.1
$region0: #{tpu_custom_call.1}
  #allocation0 [shape = 'u32[]', space=smem, size = 0x4, offset = 0x4, fixed_abs, tag = 'smem constant byte address 0x4 - core index']
  #allocation1 [shape = 'u32[144,128]{1,0:T(1,128)}', space=vmem, size = 0x12000, scoped, tag = 'internal scratch']
  #allocation2 [shape = 'f32[1,1]{1,0:T(1,128)S(1)}', space=vmem, size = 0x200, scoped, tag = 'scoped memory for tpu_custom_call.1']
  %s0 = inlined_call_operand.vmem [shape: bf16[128,32], index: 0, kind: input, shape index: {}]
  %s1 = inlined_call_operand.vmem [shape: bf16[32,512], index: 1, kind: input, shape index: {}]
  %s2 = inlined_call_operand.vmem [shape: f32[1,512], index: 2, kind: input, shape index: {}]
  %s3 = inlined_call_operand.hbm [shape: bf16[512,256], index: 3, kind: input, shape index: {}]
  %s4 = inlined_call_operand.vmem [shape: f32[1,256], index: 4, kind: input, shape index: {}]
  %s5 = inlined_call_operand.hbm [shape: bf16[256,128], index: 5, kind: input, shape index: {}]
  %s6 = inlined_call_operand.vmem [shape: f32[1,128], index: 6, kind: input, shape index: {}]
  %s7 = inlined_call_operand.vmem [shape: bf16[1,128], index: 7, kind: input, shape index: {}]
  %s8 = inlined_call_operand.<no memory space> [shape: f32[1,1], index: 8, kind: input, shape index: {}]
  %s9 = inlined_call_operand.hbm [shape: f32[1,128], index: 9, kind: output, shape index: {}]
  %s10 = sld [smem:[#allocation0]]
  $region54: #{tpu_custom_call.1} parent=0
    _
  %s12 = ssub.s32 1, %s10
  %s13 = scalar_select 0, %s12, %s10
  %v14 = vstv %s8
  %15 = vst [vmem:[#allocation2] sm:$0x1] %v14
  $region1: #{tpu_custom_call.1} parent=0
    #allocation3 [shape = 'u8[262144]{0}', space=vmem, size = 0x40000, scoped, tag = 'input window, operand 3, single buffered']
    #allocation4 [shape = 's32[1]{0}', space=sflag, size = 0x4, scoped, tag = 'scoped memory for tpu_custom_call.1']
    #allocation5 [shape = 's32[1]{0}', space=sflag, size = 0x4, scoped, tag = 'scoped memory for tpu_custom_call.1']
    #allocation6 [shape = 'u8[65536]{0}', space=vmem, size = 0x10000, scoped, tag = 'input window, operand 5, single buffered']
    #allocation7 [shape = 's32[1]{0}', space=sflag, size = 0x4, scoped, tag = 'scoped memory for tpu_custom_call.1']
    #allocation8 [shape = 'u8[512]{0}', space=vmem, size = 0x400, scoped, tag = 'output window, operand 0, single buffered']
    %16 = vsyncpa [#allocation4], 0
    %17 = vsyncpa [#allocation7], 0
    %18 = vsyncpa [#allocation5], 0
    // Predicated region
    $region2: #{tpu_custom_call.1} parent=1 // pred_check
      _
    $region3: #{tpu_custom_call.1} parent=1 // pred_check_branch
      %20 = sbr.rel (0) target = $region5
    $region4: #{tpu_custom_call.1} parent=1 // pred_region
      _
    $region5: #{tpu_custom_call.1} parent=1 // pred_fallthru
      _
    // Predicated region
    $region6: #{tpu_custom_call.1} parent=1 // pred_check
      _
    $region7: #{tpu_custom_call.1} parent=1 // pred_check_branch
      %22 = sbr.rel (0) target = $region9
    $region8: #{tpu_custom_call.1} parent=1 // pred_region
      _
    $region9: #{tpu_custom_call.1} parent=1 // pred_fallthru
      _
    // Predicated region
    $region10: #{tpu_custom_call.1} parent=1 // pred_check
      _
    $region11: #{tpu_custom_call.1} parent=1 // pred_check_branch
      %24 = sbr.rel (0) target = $region13
    $region12: #{tpu_custom_call.1} parent=1 // pred_region
      _
    $region13: #{tpu_custom_call.1} parent=1 // pred_fallthru
      _
    // Predicated region
    $region14: #{tpu_custom_call.1} parent=1 // pred_check
      _
    $region15: #{tpu_custom_call.1} parent=1 // pred_check_branch
      %26 = sbr.rel (0) target = $region17
    $region16: #{tpu_custom_call.1} parent=1 // pred_region
      %s28 = ssub.s32 8192, 8192
      %29 = vsyncadd [#allocation4], %s28
      %s30 = sshll.u32 [#allocation3], 4
      %s31 = int_to_ptr.vmem [resolvable:$true] %s30
      %36 = dma.hbm_to_vmem [thread:$0]  %s3, 8192, %s31, [#allocation4], 128, 128, 8
    $region17: #{tpu_custom_call.1} parent=1 // pred_fallthru
      _
    // Predicated region
    $region18: #{tpu_custom_call.1} parent=1 // pred_check
      _
    $region19: #{tpu_custom_call.1} parent=1 // pred_check_branch
      %38 = sbr.rel (0) target = $region21
    $region20: #{tpu_custom_call.1} parent=1 // pred_region
      _
    $region21: #{tpu_custom_call.1} parent=1 // pred_fallthru
      _
    // Predicated region
    $region22: #{tpu_custom_call.1} parent=1 // pred_check
      _
    $region23: #{tpu_custom_call.1} parent=1 // pred_check_branch
      %40 = sbr.rel (0) target = $region25
    $region24: #{tpu_custom_call.1} parent=1 // pred_region
      %s42 = ssub.s32 2048, 2048
      %43 = vsyncadd [#allocation7], %s42
      %s44 = sshll.u32 [#allocation6], 4
      %s45 = int_to_ptr.vmem [resolvable:$true] %s44
      %50 = dma.hbm_to_vmem [thread:$0]  %s5, 2048, %s45, [#allocation7], 64, 64, 4
    $region25: #{tpu_custom_call.1} parent=1 // pred_fallthru
      _
    // Predicated region
    $region26: #{tpu_custom_call.1} parent=1 // pred_check
      _
    $region27: #{tpu_custom_call.1} parent=1 // pred_check_branch
      %52 = sbr.rel (0) target = $region29
    $region28: #{tpu_custom_call.1} parent=1 // pred_region
      _
    $region29: #{tpu_custom_call.1} parent=1 // pred_fallthru
      _
    // Predicated region
    $region30: #{tpu_custom_call.1} parent=1 // pred_check
      _
    $region31: #{tpu_custom_call.1} parent=1 // pred_check_branch
      %54 = sbr.rel (0) target = $region33
    $region32: #{tpu_custom_call.1} parent=1 // pred_region
      _
    $region33: #{tpu_custom_call.1} parent=1 // pred_fallthru
      _
    // Predicated region
    $region34: #{tpu_custom_call.1} parent=1 // pred_check
      _
    $region35: #{tpu_custom_call.1} parent=1 // pred_check_branch
      %56 = sbr.rel (0) target = $region37
    $region36: #{tpu_custom_call.1} parent=1 // pred_region
      _
    $region37: #{tpu_custom_call.1} parent=1 // pred_fallthru
      _
    // Predicated region
    $region38: #{tpu_custom_call.1} parent=1 // pred_check
      _
    $region39: #{tpu_custom_call.1} parent=1 // pred_check_branch
      %58 = sbr.rel (0) target = $region41
    $region40: #{tpu_custom_call.1} parent=1 // pred_region
      %59 = dma.done [#allocation4], 8192
    $region41: #{tpu_custom_call.1} parent=1 // pred_fallthru
      _
    // Predicated region
    $region42: #{tpu_custom_call.1} parent=1 // pred_check
      _
    $region43: #{tpu_custom_call.1} parent=1 // pred_check_branch
      %61 = sbr.rel (0) target = $region45
    $region44: #{tpu_custom_call.1} parent=1 // pred_region
      %62 = dma.done [#allocation7], 2048
    $region45: #{tpu_custom_call.1} parent=1 // pred_fallthru
      _
    %v65 = vld [vmem:[%s0] sm:$0xf]
    %v66 = vld [vmem:[%s0 + $0x4] sm:$0xf]
    %v67 = vld [vmem:[%s0 + $0x8] sm:$0xf]
    %v68 = vld [vmem:[%s0 + $0xc] sm:$0xf]
    %v69 = vld [vmem:[%s0 + $0x10] sm:$0xf]
    %v70 = vld [vmem:[%s0 + $0x14] sm:$0xf]
    %v71 = vld [vmem:[%s0 + $0x18] sm:$0xf]
    %v72 = vld [vmem:[%s0 + $0x1c] sm:$0xf]
    %v73 = vld [vmem:[%s0 + $0x20] sm:$0xf]
    %v74 = vld [vmem:[%s0 + $0x24] sm:$0xf]
    %v75 = vld [vmem:[%s0 + $0x28] sm:$0xf]
    %v76 = vld [vmem:[%s0 + $0x2c] sm:$0xf]
    %v77 = vld [vmem:[%s0 + $0x30] sm:$0xf]
    %v78 = vld [vmem:[%s0 + $0x34] sm:$0xf]
    %v79 = vld [vmem:[%s0 + $0x38] sm:$0xf]
    %v80 = vld [vmem:[%s0 + $0x3c] sm:$0xf]
    %v81 = vld [vmem:[%s1] sm:$0xff]
    %v82 = vld [vmem:[%s1 + $0x8] sm:$0xff]
    %v83 = vld [vmem:[%s1 + $0x10] sm:$0xff]
    %v84 = vld [vmem:[%s1 + $0x18] sm:$0xff]
    %v85 = vld [vmem:[%s1 + $0x20] sm:$0xff]
    %v86 = vld [vmem:[%s1 + $0x28] sm:$0xff]
    %v87 = vld [vmem:[%s1 + $0x30] sm:$0xff]
    %v88 = vld [vmem:[%s1 + $0x38] sm:$0xff]
    %v89 = vld [vmem:[%s2] sm:$0xf]
    %v91 = vlaneseq
    %v92 = vshrl.u32 %v91, 7
    %v93 = vsub.s32 0, %v92
    %v94 = vrot.slane %v89, %v93
    %v95 = vlaneseq
    %v96 = vshrl.u32 %v95, 7
    %v97 = vsub.s32 1, %v96
    %v98 = vrot.slane %v89, %v97
    %v99 = vlaneseq
    %v100 = vshrl.u32 %v99, 7
    %v101 = vsub.s32 2, %v100
    %v102 = vrot.slane %v89, %v101
    %v103 = vlaneseq
    %v104 = vshrl.u32 %v103, 7
    %v105 = vsub.s32 3, %v104
    %v106 = vrot.slane %v89, %v105
    %v127 = vunpack.c.l.b16 %v65
    %v128 = vunpack.c.l.b16 %v66
    %v129 = vunpack.c.l.b16 %v67
    %v130 = vunpack.c.l.b16 %v68
    %v131 = vunpack.c.l.b16 %v69
    %v132 = vunpack.c.l.b16 %v70
    %v133 = vunpack.c.l.b16 %v71
    %v134 = vunpack.c.l.b16 %v72
    %v135 = vunpack.c.l.b16 %v73
    %v136 = vunpack.c.l.b16 %v74
    %v137 = vunpack.c.l.b16 %v75
    %v138 = vunpack.c.l.b16 %v76
    %v139 = vunpack.c.l.b16 %v77
    %v140 = vunpack.c.l.b16 %v78
    %v141 = vunpack.c.l.b16 %v79
    %v142 = vunpack.c.l.b16 %v80
    %v143 = vpack.c.b16 %v128, %v127
    %v144 = vpack.c.b16 %v130, %v129
    %v145 = vpack.c.b16 %v132, %v131
    %v146 = vpack.c.b16 %v134, %v133
    %v147 = vpack.c.b16 %v136, %v135
    %v148 = vpack.c.b16 %v138, %v137
    %v149 = vpack.c.b16 %v140, %v139
    %v150 = vpack.c.b16 %v142, %v141
    %v159 = vunpack.c.l.b16 %v81
    %v160 = vunpack.c.h.b16 %v81
    %v161 = vunpack.c.l.b16 %v82
    %v162 = vunpack.c.h.b16 %v82
    %v163 = vunpack.c.l.b16 %v83
    %v164 = vunpack.c.h.b16 %v83
    %v165 = vunpack.c.l.b16 %v84
    %v166 = vunpack.c.h.b16 %v84
    %v167 = vunpack.c.l.b16 %v85
    %v168 = vunpack.c.h.b16 %v85
    %v169 = vunpack.c.l.b16 %v86
    %v170 = vunpack.c.h.b16 %v86
    %v171 = vunpack.c.l.b16 %v87
    %v172 = vunpack.c.h.b16 %v87
    %v173 = vunpack.c.l.b16 %v88
    %v174 = vunpack.c.h.b16 %v88
    %v175 = vpack.c.b16 %v163, %v159
    %v176 = vpack.c.b16 %v164, %v160
    %v177 = vpack.c.b16 %v165, %v161
    %v178 = vpack.c.b16 %v166, %v162
    %v179 = vpack.c.b16 %v171, %v167
    %v180 = vpack.c.b16 %v172, %v168
    %v181 = vpack.c.b16 %v173, %v169
    %v182 = vpack.c.b16 %v174, %v170
    %vm191 = vcmask 261120
    %v193 = vsel %vm191, %v143, 0
    %v196 = vsel %vm191, %v144, 0
    %v199 = vsel %vm191, %v145, 0
    %v202 = vsel %vm191, %v146, 0
    %v205 = vsel %vm191, %v147, 0
    %v208 = vsel %vm191, %v148, 0
    %v211 = vsel %vm191, %v149, 0
    %v214 = vsel %vm191, %v150, 0
    %216 = vmatprep.subr.bf16.mxu0 0
    %217 = vmatpush1.bf16.msra.mxu0 0
    %218 = vmatprep.subr.bf16.mxu0 0
    %219 = vmatpush1.bf16.msra.mxu0 0
    %220 = vmatprep.subr.bf16.mxu0 0
    %221 = vmatpush1.bf16.msra.mxu0 0
    %222 = vmatprep.subr.bf16.mxu0 0
    %223 = vmatpush1.bf16.msra.mxu0 0
    %224 = vmatprep.subr.bf16.mxu0 0
    %225 = vmatpush1.bf16.msra.mxu0 0
    %226 = vmatprep.subr.bf16.mxu0 0
    %227 = vmatpush1.bf16.msra.mxu0 0
    %228 = vmatprep.subr.bf16.mxu0 %v180
    %229 = vmatpush1.bf16.msra.mxu0 %v179
    %230 = vmatprep.subr.bf16.mxu0 %v176
    %231 = vmatpush1.bf16.msra.mxu0 %v175
    %232 = vmatprep.subr.bf16.mxu0 0
    %233 = vmatpush2.bf16.msra.mxu0 0
    %234 = vmatprep.subr.bf16.mxu0 0
    %235 = vmatpush2.bf16.msra.mxu0 0
    %236 = vmatprep.subr.bf16.mxu0 0
    %237 = vmatpush2.bf16.msra.mxu0 0
    %238 = vmatprep.subr.bf16.mxu0 0
    %239 = vmatpush2.bf16.msra.mxu0 0
    %240 = vmatprep.subr.bf16.mxu0 0
    %241 = vmatpush2.bf16.msra.mxu0 0
    %242 = vmatprep.subr.bf16.mxu0 0
    %243 = vmatpush2.bf16.msra.mxu0 0
    %244 = vmatprep.subr.bf16.mxu0 0
    %245 = vmatpush2.bf16.msra.mxu0 0
    %246 = vmatprep.subr.bf16.mxu0 0
    %247 = vmatpush2.bf16.msra.mxu0 0
    %248 = vmatprep.mubr.bf16.mxu0 0
    %249 = vmatmul.mubr.bf16.gmra.mxu0 %v193
    %v250 = vpop.f32.mrf.mxu0
    %v251 = vadd.f32 %v94, %v250
    %v252 = vpop.f32.mrf.mxu0
    %v253 = vadd.f32 %v98, %v252
    %v254 = vpop.f32.mrf.mxu0
    %v255 = vadd.f32 %v94, %v254
    %v256 = vpop.f32.mrf.mxu0
    %v257 = vadd.f32 %v98, %v256
    %258 = vmatprep.mubr.bf16.mxu0 0
    %259 = vmatmul.mubr.bf16.gmra.mxu0 %v196
    %v260 = vpop.f32.mrf.mxu0
    %v261 = vadd.f32 %v94, %v260
    %v262 = vpop.f32.mrf.mxu0
    %v263 = vadd.f32 %v98, %v262
    %v264 = vpop.f32.mrf.mxu0
    %v265 = vadd.f32 %v94, %v264
    %v266 = vpop.f32.mrf.mxu0
    %v267 = vadd.f32 %v98, %v266
    %268 = vmatprep.mubr.bf16.mxu0 0
    %269 = vmatmul.mubr.bf16.gmra.mxu0 %v199
    %v270 = vpop.f32.mrf.mxu0
    %v271 = vadd.f32 %v94, %v270
    %v272 = vpop.f32.mrf.mxu0
    %v273 = vadd.f32 %v98, %v272
    %v274 = vpop.f32.mrf.mxu0
    %v275 = vadd.f32 %v94, %v274
    %v276 = vpop.f32.mrf.mxu0
    %v277 = vadd.f32 %v98, %v276
    %278 = vmatprep.mubr.bf16.mxu0 0
    %279 = vmatmul.mubr.bf16.gmra.mxu0 %v202
    %v280 = vpop.f32.mrf.mxu0
    %v281 = vadd.f32 %v94, %v280
    %v282 = vpop.f32.mrf.mxu0
    %v283 = vadd.f32 %v98, %v282
    %v284 = vpop.f32.mrf.mxu0
    %v285 = vadd.f32 %v94, %v284
    %v286 = vpop.f32.mrf.mxu0
    %v287 = vadd.f32 %v98, %v286
    %288 = vmatprep.mubr.bf16.mxu0 0
    %289 = vmatmul.mubr.bf16.gmra.mxu0 %v205
    %v290 = vpop.f32.mrf.mxu0
    %v291 = vadd.f32 %v94, %v290
    %v292 = vpop.f32.mrf.mxu0
    %v293 = vadd.f32 %v98, %v292
    %v294 = vpop.f32.mrf.mxu0
    %v295 = vadd.f32 %v94, %v294
    %v296 = vpop.f32.mrf.mxu0
    %v297 = vadd.f32 %v98, %v296
    %298 = vmatprep.mubr.bf16.mxu0 0
    %299 = vmatmul.mubr.bf16.gmra.mxu0 %v208
    %v300 = vpop.f32.mrf.mxu0
    %v301 = vadd.f32 %v94, %v300
    %v302 = vpop.f32.mrf.mxu0
    %v303 = vadd.f32 %v98, %v302
    %v304 = vpop.f32.mrf.mxu0
    %v305 = vadd.f32 %v94, %v304
    %v306 = vpop.f32.mrf.mxu0
    %v307 = vadd.f32 %v98, %v306
    %308 = vmatprep.mubr.bf16.mxu0 0
    %309 = vmatmul.mubr.bf16.gmra.mxu0 %v211
    %v310 = vpop.f32.mrf.mxu0
    %v311 = vadd.f32 %v94, %v310
    %v312 = vpop.f32.mrf.mxu0
    %v313 = vadd.f32 %v98, %v312
    %v314 = vpop.f32.mrf.mxu0
    %v315 = vadd.f32 %v94, %v314
    %v316 = vpop.f32.mrf.mxu0
    %v317 = vadd.f32 %v98, %v316
    %318 = vmatprep.mubr.bf16.mxu0 0
    %319 = vmatmul.mubr.bf16.gmra.mxu0 %v214
    %v320 = vpop.f32.mrf.mxu0
    %v321 = vadd.f32 %v94, %v320
    %v322 = vpop.f32.mrf.mxu0
    %v323 = vadd.f32 %v98, %v322
    %v324 = vpop.f32.mrf.mxu0
    %v325 = vadd.f32 %v94, %v324
    %v326 = vpop.f32.mrf.mxu0
    %v327 = vadd.f32 %v98, %v326
    %328 = vdwg.mxu0
    %329 = vmatprep.subr.bf16.mxu0 0
    %330 = vmatpush1.bf16.msra.mxu0 0
    %331 = vmatprep.subr.bf16.mxu0 0
    %332 = vmatpush1.bf16.msra.mxu0 0
    %333 = vmatprep.subr.bf16.mxu0 0
    %334 = vmatpush1.bf16.msra.mxu0 0
    %335 = vmatprep.subr.bf16.mxu0 0
    %336 = vmatpush1.bf16.msra.mxu0 0
    %337 = vmatprep.subr.bf16.mxu0 0
    %338 = vmatpush1.bf16.msra.mxu0 0
    %339 = vmatprep.subr.bf16.mxu0 0
    %340 = vmatpush1.bf16.msra.mxu0 0
    %341 = vmatprep.subr.bf16.mxu0 %v182
    %342 = vmatpush1.bf16.msra.mxu0 %v181
    %343 = vmatprep.subr.bf16.mxu0 %v178
    %344 = vmatpush1.bf16.msra.mxu0 %v177
    %345 = vmatprep.subr.bf16.mxu0 0
    %346 = vmatpush2.bf16.msra.mxu0 0
    %347 = vmatprep.subr.bf16.mxu0 0
    %348 = vmatpush2.bf16.msra.mxu0 0
    %349 = vmatprep.subr.bf16.mxu0 0
    %350 = vmatpush2.bf16.msra.mxu0 0
    %351 = vmatprep.subr.bf16.mxu0 0
    %352 = vmatpush2.bf16.msra.mxu0 0
    %353 = vmatprep.subr.bf16.mxu0 0
    %354 = vmatpush2.bf16.msra.mxu0 0
    %355 = vmatprep.subr.bf16.mxu0 0
    %356 = vmatpush2.bf16.msra.mxu0 0
    %357 = vmatprep.subr.bf16.mxu0 0
    %358 = vmatpush2.bf16.msra.mxu0 0
    %359 = vmatprep.subr.bf16.mxu0 0
    %360 = vmatpush2.bf16.msra.mxu0 0
    %361 = vmatprep.mubr.bf16.mxu0 0
    %362 = vmatmul.mubr.bf16.gmra.mxu0 %v193
    %v363 = vpop.f32.mrf.mxu0
    %v364 = vadd.f32 %v102, %v363
    %v365 = vpop.f32.mrf.mxu0
    %v366 = vadd.f32 %v106, %v365
    %v367 = vpop.f32.mrf.mxu0
    %v368 = vadd.f32 %v102, %v367
    %v369 = vpop.f32.mrf.mxu0
    %v370 = vadd.f32 %v106, %v369
    %371 = vmatprep.mubr.bf16.mxu0 0
    %372 = vmatmul.mubr.bf16.gmra.mxu0 %v196
    %v373 = vpop.f32.mrf.mxu0
    %v374 = vadd.f32 %v102, %v373
    %v375 = vpop.f32.mrf.mxu0
    %v376 = vadd.f32 %v106, %v375
    %v377 = vpop.f32.mrf.mxu0
    %v378 = vadd.f32 %v102, %v377
    %v379 = vpop.f32.mrf.mxu0
    %v380 = vadd.f32 %v106, %v379
    %381 = vmatprep.mubr.bf16.mxu0 0
    %382 = vmatmul.mubr.bf16.gmra.mxu0 %v199
    %v383 = vpop.f32.mrf.mxu0
    %v384 = vadd.f32 %v102, %v383
    %v385 = vpop.f32.mrf.mxu0
    %v386 = vadd.f32 %v106, %v385
    %v387 = vpop.f32.mrf.mxu0
    %v388 = vadd.f32 %v102, %v387
    %v389 = vpop.f32.mrf.mxu0
    %v390 = vadd.f32 %v106, %v389
    %391 = vmatprep.mubr.bf16.mxu0 0
    %392 = vmatmul.mubr.bf16.gmra.mxu0 %v202
    %v393 = vpop.f32.mrf.mxu0
    %v394 = vadd.f32 %v102, %v393
    %v395 = vpop.f32.mrf.mxu0
    %v396 = vadd.f32 %v106, %v395
    %v397 = vpop.f32.mrf.mxu0
    %v398 = vadd.f32 %v102, %v397
    %v399 = vpop.f32.mrf.mxu0
    %v400 = vadd.f32 %v106, %v399
    %401 = vmatprep.mubr.bf16.mxu0 0
    %402 = vmatmul.mubr.bf16.gmra.mxu0 %v205
    %v403 = vpop.f32.mrf.mxu0
    %v404 = vadd.f32 %v102, %v403
    %v405 = vpop.f32.mrf.mxu0
    %v406 = vadd.f32 %v106, %v405
    %v407 = vpop.f32.mrf.mxu0
    %v408 = vadd.f32 %v102, %v407
    %v409 = vpop.f32.mrf.mxu0
    %v410 = vadd.f32 %v106, %v409
    %411 = vmatprep.mubr.bf16.mxu0 0
    %412 = vmatmul.mubr.bf16.gmra.mxu0 %v208
    %v413 = vpop.f32.mrf.mxu0
    %v414 = vadd.f32 %v102, %v413
    %v415 = vpop.f32.mrf.mxu0
    %v416 = vadd.f32 %v106, %v415
    %v417 = vpop.f32.mrf.mxu0
    %v418 = vadd.f32 %v102, %v417
    %v419 = vpop.f32.mrf.mxu0
    %v420 = vadd.f32 %v106, %v419
    %421 = vmatprep.mubr.bf16.mxu0 0
    %422 = vmatmul.mubr.bf16.gmra.mxu0 %v211
    %v423 = vpop.f32.mrf.mxu0
    %v424 = vadd.f32 %v102, %v423
    %v425 = vpop.f32.mrf.mxu0
    %v426 = vadd.f32 %v106, %v425
    %v427 = vpop.f32.mrf.mxu0
    %v428 = vadd.f32 %v102, %v427
    %v429 = vpop.f32.mrf.mxu0
    %v430 = vadd.f32 %v106, %v429
    %431 = vmatprep.mubr.bf16.mxu0 0
    %432 = vmatmul.mubr.bf16.gmra.mxu0 %v214
    %v433 = vpop.f32.mrf.mxu0
    %v434 = vadd.f32 %v102, %v433
    %v435 = vpop.f32.mrf.mxu0
    %v436 = vadd.f32 %v106, %v435
    %v437 = vpop.f32.mrf.mxu0
    %v438 = vadd.f32 %v102, %v437
    %v439 = vpop.f32.mrf.mxu0
    %v440 = vadd.f32 %v106, %v439
    %441 = vdwg.mxu0
    %v442 = vpack.c.bf16 %v255, %v251
    %v443 = vpack.c.bf16 %v257, %v253
    %v444 = vpack.c.bf16 %v368, %v364
    %v445 = vpack.c.bf16 %v370, %v366
    %v446 = vpack.c.bf16 %v265, %v261
    %v447 = vpack.c.bf16 %v267, %v263
    %v448 = vpack.c.bf16 %v378, %v374
    %v449 = vpack.c.bf16 %v380, %v376
    %v450 = vpack.c.bf16 %v275, %v271
    %v451 = vpack.c.bf16 %v277, %v273
    %v452 = vpack.c.bf16 %v388, %v384
    %v453 = vpack.c.bf16 %v390, %v386
    %v454 = vpack.c.bf16 %v285, %v281
    %v455 = vpack.c.bf16 %v287, %v283
    %v456 = vpack.c.bf16 %v398, %v394
    %v457 = vpack.c.bf16 %v400, %v396
    %v458 = vpack.c.bf16 %v295, %v291
    %v459 = vpack.c.bf16 %v297, %v293
    %v460 = vpack.c.bf16 %v408, %v404
    %v461 = vpack.c.bf16 %v410, %v406
    %v462 = vpack.c.bf16 %v305, %v301
    %v463 = vpack.c.bf16 %v307, %v303
    %v464 = vpack.c.bf16 %v418, %v414
    %v465 = vpack.c.bf16 %v420, %v416
    %v466 = vpack.c.bf16 %v315, %v311
    %v467 = vpack.c.bf16 %v317, %v313
    %v468 = vpack.c.bf16 %v428, %v424
    %v469 = vpack.c.bf16 %v430, %v426
    %v470 = vpack.c.bf16 %v325, %v321
    %v471 = vpack.c.bf16 %v327, %v323
    %v472 = vpack.c.bf16 %v438, %v434
    %v473 = vpack.c.bf16 %v440, %v436
    %vm474 = vcmp.gt.bf16.partialorder %v442, 0
    %vm475 = vcmp.gt.bf16.partialorder %v443, 0
    %vm476 = vcmp.gt.bf16.partialorder %v444, 0
    %vm477 = vcmp.gt.bf16.partialorder %v445, 0
    %vm478 = vcmp.gt.bf16.partialorder %v446, 0
    %vm479 = vcmp.gt.bf16.partialorder %v447, 0
    %vm480 = vcmp.gt.bf16.partialorder %v448, 0
    %vm481 = vcmp.gt.bf16.partialorder %v449, 0
    %vm482 = vcmp.gt.bf16.partialorder %v450, 0
    %vm483 = vcmp.gt.bf16.partialorder %v451, 0
    %vm484 = vcmp.gt.bf16.partialorder %v452, 0
    %vm485 = vcmp.gt.bf16.partialorder %v453, 0
    %vm486 = vcmp.gt.bf16.partialorder %v454, 0
    %vm487 = vcmp.gt.bf16.partialorder %v455, 0
    %vm488 = vcmp.gt.bf16.partialorder %v456, 0
    %vm489 = vcmp.gt.bf16.partialorder %v457, 0
    %vm490 = vcmp.gt.bf16.partialorder %v458, 0
    %vm491 = vcmp.gt.bf16.partialorder %v459, 0
    %vm492 = vcmp.gt.bf16.partialorder %v460, 0
    %vm493 = vcmp.gt.bf16.partialorder %v461, 0
    %vm494 = vcmp.gt.bf16.partialorder %v462, 0
    %vm495 = vcmp.gt.bf16.partialorder %v463, 0
    %vm496 = vcmp.gt.bf16.partialorder %v464, 0
    %vm497 = vcmp.gt.bf16.partialorder %v465, 0
    %vm498 = vcmp.gt.bf16.partialorder %v466, 0
    %vm499 = vcmp.gt.bf16.partialorder %v467, 0
    %vm500 = vcmp.gt.bf16.partialorder %v468, 0
    %vm501 = vcmp.gt.bf16.partialorder %v469, 0
    %vm502 = vcmp.gt.bf16.partialorder %v470, 0
    %vm503 = vcmp.gt.bf16.partialorder %v471, 0
    %vm504 = vcmp.gt.bf16.partialorder %v472, 0
    %vm505 = vcmp.gt.bf16.partialorder %v473, 0
    %v507 = vmul.bf16 %v442, 1069105081
    %v508 = vpow.bf16.pop %v507
    %v510 = vmul.bf16 %v443, 1069105081
    %v511 = vpow.bf16.pop %v510
    %v513 = vmul.bf16 %v444, 1069105081
    %v514 = vpow.bf16.pop %v513
    %v516 = vmul.bf16 %v445, 1069105081
    %v517 = vpow.bf16.pop %v516
    %v519 = vmul.bf16 %v446, 1069105081
    %v520 = vpow.bf16.pop %v519
    %v522 = vmul.bf16 %v447, 1069105081
    %v523 = vpow.bf16.pop %v522
    %v525 = vmul.bf16 %v448, 1069105081
    %v526 = vpow.bf16.pop %v525
    %v528 = vmul.bf16 %v449, 1069105081
    %v529 = vpow.bf16.pop %v528
    %v531 = vmul.bf16 %v450, 1069105081
    %v532 = vpow.bf16.pop %v531
    %v534 = vmul.bf16 %v451, 1069105081
    %v535 = vpow.bf16.pop %v534
    %v537 = vmul.bf16 %v452, 1069105081
    %v538 = vpow.bf16.pop %v537
    %v540 = vmul.bf16 %v453, 1069105081
    %v541 = vpow.bf16.pop %v540
    %v543 = vmul.bf16 %v454, 1069105081
    %v544 = vpow.bf16.pop %v543
    %v546 = vmul.bf16 %v455, 1069105081
    %v547 = vpow.bf16.pop %v546
    %v549 = vmul.bf16 %v456, 1069105081
    %v550 = vpow.bf16.pop %v549
    %v552 = vmul.bf16 %v457, 1069105081
    %v553 = vpow.bf16.pop %v552
    %v555 = vmul.bf16 %v458, 1069105081
    %v556 = vpow.bf16.pop %v555
    %v558 = vmul.bf16 %v459, 1069105081
    %v559 = vpow.bf16.pop %v558
    %v561 = vmul.bf16 %v460, 1069105081
    %v562 = vpow.bf16.pop %v561
    %v564 = vmul.bf16 %v461, 1069105081
    %v565 = vpow.bf16.pop %v564
    %v567 = vmul.bf16 %v462, 1069105081
    %v568 = vpow.bf16.pop %v567
    %v570 = vmul.bf16 %v463, 1069105081
    %v571 = vpow.bf16.pop %v570
    %v573 = vmul.bf16 %v464, 1069105081
    %v574 = vpow.bf16.pop %v573
    %v576 = vmul.bf16 %v465, 1069105081
    %v577 = vpow.bf16.pop %v576
    %v579 = vmul.bf16 %v466, 1069105081
    %v580 = vpow.bf16.pop %v579
    %v582 = vmul.bf16 %v467, 1069105081
    %v583 = vpow.bf16.pop %v582
    %v585 = vmul.bf16 %v468, 1069105081
    %v586 = vpow.bf16.pop %v585
    %v588 = vmul.bf16 %v469, 1069105081
    %v589 = vpow.bf16.pop %v588
    %v591 = vmul.bf16 %v470, 1069105081
    %v592 = vpow.bf16.pop %v591
    %v594 = vmul.bf16 %v471, 1069105081
    %v595 = vpow.bf16.pop %v594
    %v597 = vmul.bf16 %v472, 1069105081
    %v598 = vpow.bf16.pop %v597
    %v600 = vmul.bf16 %v473, 1069105081
    %v601 = vpow.bf16.pop %v600
    %v602 = vsub.bf16 %v508, 1065369472
    %v603 = vsub.bf16 %v511, 1065369472
    %v604 = vsub.bf16 %v514, 1065369472
    %v605 = vsub.bf16 %v517, 1065369472
    %v606 = vsub.bf16 %v520, 1065369472
    %v607 = vsub.bf16 %v523, 1065369472
    %v608 = vsub.bf16 %v526, 1065369472
    %v609 = vsub.bf16 %v529, 1065369472
    %v610 = vsub.bf16 %v532, 1065369472
    %v611 = vsub.bf16 %v535, 1065369472
    %v612 = vsub.bf16 %v538, 1065369472
    %v613 = vsub.bf16 %v541, 1065369472
    %v614 = vsub.bf16 %v544, 1065369472
    %v615 = vsub.bf16 %v547, 1065369472
    %v616 = vsub.bf16 %v550, 1065369472
    %v617 = vsub.bf16 %v553, 1065369472
    %v618 = vsub.bf16 %v556, 1065369472
    %v619 = vsub.bf16 %v559, 1065369472
    %v620 = vsub.bf16 %v562, 1065369472
    %v621 = vsub.bf16 %v565, 1065369472
    %v622 = vsub.bf16 %v568, 1065369472
    %v623 = vsub.bf16 %v571, 1065369472
    %v624 = vsub.bf16 %v574, 1065369472
    %v625 = vsub.bf16 %v577, 1065369472
    %v626 = vsub.bf16 %v580, 1065369472
    %v627 = vsub.bf16 %v583, 1065369472
    %v628 = vsub.bf16 %v586, 1065369472
    %v629 = vsub.bf16 %v589, 1065369472
    %v630 = vsub.bf16 %v592, 1065369472
    %v631 = vsub.bf16 %v595, 1065369472
    %v632 = vsub.bf16 %v598, 1065369472
    %v633 = vsub.bf16 %v601, 1065369472
    %v634 = vsel %vm474, %v442, %v602
    %v635 = vsel %vm475, %v443, %v603
    %v636 = vsel %vm476, %v444, %v604
    %v637 = vsel %vm477, %v445, %v605
    %v638 = vsel %vm478, %v446, %v606
    %v639 = vsel %vm479, %v447, %v607
    %v640 = vsel %vm480, %v448, %v608
    %v641 = vsel %vm481, %v449, %v609
    %v642 = vsel %vm482, %v450, %v610
    %v643 = vsel %vm483, %v451, %v611
    %v644 = vsel %vm484, %v452, %v612
    %v645 = vsel %vm485, %v453, %v613
    %v646 = vsel %vm486, %v454, %v614
    %v647 = vsel %vm487, %v455, %v615
    %v648 = vsel %vm488, %v456, %v616
    %v649 = vsel %vm489, %v457, %v617
    %v650 = vsel %vm490, %v458, %v618
    %v651 = vsel %vm491, %v459, %v619
    %v652 = vsel %vm492, %v460, %v620
    %v653 = vsel %vm493, %v461, %v621
    %v654 = vsel %vm494, %v462, %v622
    %v655 = vsel %vm495, %v463, %v623
    %v656 = vsel %vm496, %v464, %v624
    %v657 = vsel %vm497, %v465, %v625
    %v658 = vsel %vm498, %v466, %v626
    %v659 = vsel %vm499, %v467, %v627
    %v660 = vsel %vm500, %v468, %v628
    %v661 = vsel %vm501, %v469, %v629
    %v662 = vsel %vm502, %v470, %v630
    %v663 = vsel %vm503, %v471, %v631
    %v664 = vsel %vm504, %v472, %v632
    %v665 = vsel %vm505, %v473, %v633
    %v666 = vld [vmem:[#allocation3] sm:$0xff]
    %v667 = vld [vmem:[#allocation3 + $0x8] sm:$0xff]
    %v668 = vld [vmem:[#allocation3 + $0x10] sm:$0xff]
    %v669 = vld [vmem:[#allocation3 + $0x18] sm:$0xff]
    %v670 = vld [vmem:[#allocation3 + $0x20] sm:$0xff]
    %v671 = vld [vmem:[#allocation3 + $0x28] sm:$0xff]
    %v672 = vld [vmem:[#allocation3 + $0x30] sm:$0xff]
    %v673 = vld [vmem:[#allocation3 + $0x38] sm:$0xff]
    %v674 = vld [vmem:[#allocation3 + $0x40] sm:$0xff]
    %v675 = vld [vmem:[#allocation3 + $0x48] sm:$0xff]
    %v676 = vld [vmem:[#allocation3 + $0x50] sm:$0xff]
    %v677 = vld [vmem:[#allocation3 + $0x58] sm:$0xff]
    %v678 = vld [vmem:[#allocation3 + $0x60] sm:$0xff]
    %v679 = vld [vmem:[#allocation3 + $0x68] sm:$0xff]
    %v680 = vld [vmem:[#allocation3 + $0x70] sm:$0xff]
    %v681 = vld [vmem:[#allocation3 + $0x78] sm:$0xff]
    %v682 = vld [vmem:[#allocation3 + $0x80] sm:$0xff]
    %v683 = vld [vmem:[#allocation3 + $0x88] sm:$0xff]
    %v684 = vld [vmem:[#allocation3 + $0x90] sm:$0xff]
    %v685 = vld [vmem:[#allocation3 + $0x98] sm:$0xff]
    %v686 = vld [vmem:[#allocation3 + $0xa0] sm:$0xff]
    %v687 = vld [vmem:[#allocation3 + $0xa8] sm:$0xff]
    %v688 = vld [vmem:[#allocation3 + $0xb0] sm:$0xff]
    %v689 = vld [vmem:[#allocation3 + $0xb8] sm:$0xff]
    %v690 = vld [vmem:[#allocation3 + $0xc0] sm:$0xff]
    %v691 = vld [vmem:[#allocation3 + $0xc8] sm:$0xff]
    %v692 = vld [vmem:[#allocation3 + $0xd0] sm:$0xff]
    %v693 = vld [vmem:[#allocation3 + $0xd8] sm:$0xff]
    %v694 = vld [vmem:[#allocation3 + $0xe0] sm:$0xff]
    %v695 = vld [vmem:[#allocation3 + $0xe8] sm:$0xff]
    %v696 = vld [vmem:[#allocation3 + $0xf0] sm:$0xff]
    %v697 = vld [vmem:[#allocation3 + $0xf8] sm:$0xff]
    %v698 = vld [vmem:[#allocation3 + $0x100] sm:$0xff]
    %v699 = vld [vmem:[#allocation3 + $0x108] sm:$0xff]
    %v700 = vld [vmem:[#allocation3 + $0x110] sm:$0xff]
    %v701 = vld [vmem:[#allocation3 + $0x118] sm:$0xff]
    %v702 = vld [vmem:[#allocation3 + $0x120] sm:$0xff]
    %v703 = vld [vmem:[#allocation3 + $0x128] sm:$0xff]
    %v704 = vld [vmem:[#allocation3 + $0x130] sm:$0xff]
    %v705 = vld [vmem:[#allocation3 + $0x138] sm:$0xff]
    %v706 = vld [vmem:[#allocation3 + $0x140] sm:$0xff]
    %v707 = vld [vmem:[#allocation3 + $0x148] sm:$0xff]
    %v708 = vld [vmem:[#allocation3 + $0x150] sm:$0xff]
    %v709 = vld [vmem:[#allocation3 + $0x158] sm:$0xff]
    %v710 = vld [vmem:[#allocation3 + $0x160] sm:$0xff]
    %v711 = vld [vmem:[#allocation3 + $0x168] sm:$0xff]
    %v712 = vld [vmem:[#allocation3 + $0x170] sm:$0xff]
    %v713 = vld [vmem:[#allocation3 + $0x178] sm:$0xff]
    %v714 = vld [vmem:[#allocation3 + $0x180] sm:$0xff]
    %v715 = vld [vmem:[#allocation3 + $0x188] sm:$0xff]
    %v716 = vld [vmem:[#allocation3 + $0x190] sm:$0xff]
    %v717 = vld [vmem:[#allocation3 + $0x198] sm:$0xff]
    %v718 = vld [vmem:[#allocation3 + $0x1a0] sm:$0xff]
    %v719 = vld [vmem:[#allocation3 + $0x1a8] sm:$0xff]
    %v720 = vld [vmem:[#allocation3 + $0x1b0] sm:$0xff]
    %v721 = vld [vmem:[#allocation3 + $0x1b8] sm:$0xff]
    %v722 = vld [vmem:[#allocation3 + $0x1c0] sm:$0xff]
    %v723 = vld [vmem:[#allocation3 + $0x1c8] sm:$0xff]
    %v724 = vld [vmem:[#allocation3 + $0x1d0] sm:$0xff]
    %v725 = vld [vmem:[#allocation3 + $0x1d8] sm:$0xff]
    %v726 = vld [vmem:[#allocation3 + $0x1e0] sm:$0xff]
    %v727 = vld [vmem:[#allocation3 + $0x1e8] sm:$0xff]
    %v728 = vld [vmem:[#allocation3 + $0x1f0] sm:$0xff]
    %v729 = vld [vmem:[#allocation3 + $0x1f8] sm:$0xff]
    %v730 = vld [vmem:[%s4] sm:$0x3]
    %v732 = vlaneseq
    %v733 = vshrl.u32 %v732, 7
    %v734 = vsub.s32 0, %v733
    %v735 = vrot.slane %v730, %v734
    %v736 = vlaneseq
    %v737 = vshrl.u32 %v736, 7
    %v738 = vsub.s32 1, %v737
    %v739 = vrot.slane %v730, %v738
    %v806 = vunpack.c.l.b16 %v666
    %v807 = vunpack.c.h.b16 %v666
    %v808 = vunpack.c.l.b16 %v667
    %v809 = vunpack.c.h.b16 %v667
    %v810 = vunpack.c.l.b16 %v668
    %v811 = vunpack.c.h.b16 %v668
    %v812 = vunpack.c.l.b16 %v669
    %v813 = vunpack.c.h.b16 %v669
    %v814 = vunpack.c.l.b16 %v670
    %v815 = vunpack.c.h.b16 %v670
    %v816 = vunpack.c.l.b16 %v671
    %v817 = vunpack.c.h.b16 %v671
    %v818 = vunpack.c.l.b16 %v672
    %v819 = vunpack.c.h.b16 %v672
    %v820 = vunpack.c.l.b16 %v673
    %v821 = vunpack.c.h.b16 %v673
    %v822 = vunpack.c.l.b16 %v674
    %v823 = vunpack.c.h.b16 %v674
    %v824 = vunpack.c.l.b16 %v675
    %v825 = vunpack.c.h.b16 %v675
    %v826 = vunpack.c.l.b16 %v676
    %v827 = vunpack.c.h.b16 %v676
    %v828 = vunpack.c.l.b16 %v677
    %v829 = vunpack.c.h.b16 %v677
    %v830 = vunpack.c.l.b16 %v678
    %v831 = vunpack.c.h.b16 %v678
    %v832 = vunpack.c.l.b16 %v679
    %v833 = vunpack.c.h.b16 %v679
    %v834 = vunpack.c.l.b16 %v680
    %v835 = vunpack.c.h.b16 %v680
    %v836 = vunpack.c.l.b16 %v681
    %v837 = vunpack.c.h.b16 %v681
    %v838 = vunpack.c.l.b16 %v682
    %v839 = vunpack.c.h.b16 %v682
    %v840 = vunpack.c.l.b16 %v683
    %v841 = vunpack.c.h.b16 %v683
    %v842 = vunpack.c.l.b16 %v684
    %v843 = vunpack.c.h.b16 %v684
    %v844 = vunpack.c.l.b16 %v685
    %v845 = vunpack.c.h.b16 %v685
    %v846 = vunpack.c.l.b16 %v686
    %v847 = vunpack.c.h.b16 %v686
    %v848 = vunpack.c.l.b16 %v687
    %v849 = vunpack.c.h.b16 %v687
    %v850 = vunpack.c.l.b16 %v688
    %v851 = vunpack.c.h.b16 %v688
    %v852 = vunpack.c.l.b16 %v689
    %v853 = vunpack.c.h.b16 %v689
    %v854 = vunpack.c.l.b16 %v690
    %v855 = vunpack.c.h.b16 %v690
    %v856 = vunpack.c.l.b16 %v691
    %v857 = vunpack.c.h.b16 %v691
    %v858 = vunpack.c.l.b16 %v692
    %v859 = vunpack.c.h.b16 %v692
    %v860 = vunpack.c.l.b16 %v693
    %v861 = vunpack.c.h.b16 %v693
    %v862 = vunpack.c.l.b16 %v694
    %v863 = vunpack.c.h.b16 %v694
    %v864 = vunpack.c.l.b16 %v695
    %v865 = vunpack.c.h.b16 %v695
    %v866 = vunpack.c.l.b16 %v696
    %v867 = vunpack.c.h.b16 %v696
    %v868 = vunpack.c.l.b16 %v697
    %v869 = vunpack.c.h.b16 %v697
    %v870 = vunpack.c.l.b16 %v698
    %v871 = vunpack.c.h.b16 %v698
    %v872 = vunpack.c.l.b16 %v699
    %v873 = vunpack.c.h.b16 %v699
    %v874 = vunpack.c.l.b16 %v700
    %v875 = vunpack.c.h.b16 %v700
    %v876 = vunpack.c.l.b16 %v701
    %v877 = vunpack.c.h.b16 %v701
    %v878 = vunpack.c.l.b16 %v702
    %v879 = vunpack.c.h.b16 %v702
    %v880 = vunpack.c.l.b16 %v703
    %v881 = vunpack.c.h.b16 %v703
    %v882 = vunpack.c.l.b16 %v704
    %v883 = vunpack.c.h.b16 %v704
    %v884 = vunpack.c.l.b16 %v705
    %v885 = vunpack.c.h.b16 %v705
    %v886 = vunpack.c.l.b16 %v706
    %v887 = vunpack.c.h.b16 %v706
    %v888 = vunpack.c.l.b16 %v707
    %v889 = vunpack.c.h.b16 %v707
    %v890 = vunpack.c.l.b16 %v708
    %v891 = vunpack.c.h.b16 %v708
    %v892 = vunpack.c.l.b16 %v709
    %v893 = vunpack.c.h.b16 %v709
    %v894 = vunpack.c.l.b16 %v710
    %v895 = vunpack.c.h.b16 %v710
    %v896 = vunpack.c.l.b16 %v711
    %v897 = vunpack.c.h.b16 %v711
    %v898 = vunpack.c.l.b16 %v712
    %v899 = vunpack.c.h.b16 %v712
    %v900 = vunpack.c.l.b16 %v713
    %v901 = vunpack.c.h.b16 %v713
    %v902 = vunpack.c.l.b16 %v714
    %v903 = vunpack.c.h.b16 %v714
    %v904 = vunpack.c.l.b16 %v715
    %v905 = vunpack.c.h.b16 %v715
    %v906 = vunpack.c.l.b16 %v716
    %v907 = vunpack.c.h.b16 %v716
    %v908 = vunpack.c.l.b16 %v717
    %v909 = vunpack.c.h.b16 %v717
    %v910 = vunpack.c.l.b16 %v718
    %v911 = vunpack.c.h.b16 %v718
    %v912 = vunpack.c.l.b16 %v719
    %v913 = vunpack.c.h.b16 %v719
    %v914 = vunpack.c.l.b16 %v720
    %v915 = vunpack.c.h.b16 %v720
    %v916 = vunpack.c.l.b16 %v721
    %v917 = vunpack.c.h.b16 %v721
    %v918 = vunpack.c.l.b16 %v722
    %v919 = vunpack.c.h.b16 %v722
    %v920 = vunpack.c.l.b16 %v723
    %v921 = vunpack.c.h.b16 %v723
    %v922 = vunpack.c.l.b16 %v724
    %v923 = vunpack.c.h.b16 %v724
    %v924 = vunpack.c.l.b16 %v725
    %v925 = vunpack.c.h.b16 %v725
    %v926 = vunpack.c.l.b16 %v726
    %v927 = vunpack.c.h.b16 %v726
    %v928 = vunpack.c.l.b16 %v727
    %v929 = vunpack.c.h.b16 %v727
    %v930 = vunpack.c.l.b16 %v728
    %v931 = vunpack.c.h.b16 %v728
    %v932 = vunpack.c.l.b16 %v729
    %v933 = vunpack.c.h.b16 %v729
    %v934 = vpack.c.b16 %v808, %v806
    %v935 = vpack.c.b16 %v809, %v807
    %v936 = vpack.c.b16 %v812, %v810
    %v937 = vpack.c.b16 %v813, %v811
    %v938 = vpack.c.b16 %v816, %v814
    %v939 = vpack.c.b16 %v817, %v815
    %v940 = vpack.c.b16 %v820, %v818
    %v941 = vpack.c.b16 %v821, %v819
    %v942 = vpack.c.b16 %v824, %v822
    %v943 = vpack.c.b16 %v825, %v823
    %v944 = vpack.c.b16 %v828, %v826
    %v945 = vpack.c.b16 %v829, %v827
    %v946 = vpack.c.b16 %v832, %v830
    %v947 = vpack.c.b16 %v833, %v831
    %v948 = vpack.c.b16 %v836, %v834
    %v949 = vpack.c.b16 %v837, %v835
    %v950 = vpack.c.b16 %v840, %v838
    %v951 = vpack.c.b16 %v841, %v839
    %v952 = vpack.c.b16 %v844, %v842
    %v953 = vpack.c.b16 %v845, %v843
    %v954 = vpack.c.b16 %v848, %v846
    %v955 = vpack.c.b16 %v849, %v847
    %v956 = vpack.c.b16 %v852, %v850
    %v957 = vpack.c.b16 %v853, %v851
    %v958 = vpack.c.b16 %v856, %v854
    %v959 = vpack.c.b16 %v857, %v855
    %v960 = vpack.c.b16 %v860, %v858
    %v961 = vpack.c.b16 %v861, %v859
    %v962 = vpack.c.b16 %v864, %v862
    %v963 = vpack.c.b16 %v865, %v863
    %v964 = vpack.c.b16 %v868, %v866
    %v965 = vpack.c.b16 %v869, %v867
    %v966 = vpack.c.b16 %v872, %v870
    %v967 = vpack.c.b16 %v873, %v871
    %v968 = vpack.c.b16 %v876, %v874
    %v969 = vpack.c.b16 %v877, %v875
    %v970 = vpack.c.b16 %v880, %v878
    %v971 = vpack.c.b16 %v881, %v879
    %v972 = vpack.c.b16 %v884, %v882
    %v973 = vpack.c.b16 %v885, %v883
    %v974 = vpack.c.b16 %v888, %v886
    %v975 = vpack.c.b16 %v889, %v887
    %v976 = vpack.c.b16 %v892, %v890
    %v977 = vpack.c.b16 %v893, %v891
    %v978 = vpack.c.b16 %v896, %v894
    %v979 = vpack.c.b16 %v897, %v895
    %v980 = vpack.c.b16 %v900, %v898
    %v981 = vpack.c.b16 %v901, %v899
    %v982 = vpack.c.b16 %v904, %v902
    %v983 = vpack.c.b16 %v905, %v903
    %v984 = vpack.c.b16 %v908, %v906
    %v985 = vpack.c.b16 %v909, %v907
    %v986 = vpack.c.b16 %v912, %v910
    %v987 = vpack.c.b16 %v913, %v911
    %v988 = vpack.c.b16 %v916, %v914
    %v989 = vpack.c.b16 %v917, %v915
    %v990 = vpack.c.b16 %v920, %v918
    %v991 = vpack.c.b16 %v921, %v919
    %v992 = vpack.c.b16 %v924, %v922
    %v993 = vpack.c.b16 %v925, %v923
    %v994 = vpack.c.b16 %v928, %v926
    %v995 = vpack.c.b16 %v929, %v927
    %v996 = vpack.c.b16 %v932, %v930
    %v997 = vpack.c.b16 %v933, %v931
    %1062 = vmatprep.subr.bf16.mxu0 %v949
    %1063 = vmatpush1.bf16.msra.mxu0 %v948
    %1064 = vmatprep.subr.bf16.mxu0 %v947
    %1065 = vmatpush1.bf16.msra.mxu0 %v946
    %1066 = vmatprep.subr.bf16.mxu0 %v945
    %1067 = vmatpush1.bf16.msra.mxu0 %v944
    %1068 = vmatprep.subr.bf16.mxu0 %v943
    %1069 = vmatpush1.bf16.msra.mxu0 %v942
    %1070 = vmatprep.subr.bf16.mxu0 %v941
    %1071 = vmatpush1.bf16.msra.mxu0 %v940
    %1072 = vmatprep.subr.bf16.mxu0 %v939
    %1073 = vmatpush1.bf16.msra.mxu0 %v938
    %1074 = vmatprep.subr.bf16.mxu0 %v937
    %1075 = vmatpush1.bf16.msra.mxu0 %v936
    %1076 = vmatprep.subr.bf16.mxu0 %v935
    %1077 = vmatpush1.bf16.msra.mxu0 %v934
    %1078 = vmatprep.subr.bf16.mxu0 %v965
    %1079 = vmatpush2.bf16.msra.mxu0 %v964
    %1080 = vmatprep.subr.bf16.mxu0 %v963
    %1081 = vmatpush2.bf16.msra.mxu0 %v962
    %1082 = vmatprep.subr.bf16.mxu0 %v961
    %1083 = vmatpush2.bf16.msra.mxu0 %v960
    %1084 = vmatprep.subr.bf16.mxu0 %v959
    %1085 = vmatpush2.bf16.msra.mxu0 %v958
    %1086 = vmatprep.subr.bf16.mxu0 %v957
    %1087 = vmatpush2.bf16.msra.mxu0 %v956
    %1088 = vmatprep.subr.bf16.mxu0 %v955
    %1089 = vmatpush2.bf16.msra.mxu0 %v954
    %1090 = vmatprep.subr.bf16.mxu0 %v953
    %1091 = vmatpush2.bf16.msra.mxu0 %v952
    %1092 = vmatprep.subr.bf16.mxu0 %v951
    %1093 = vmatpush2.bf16.msra.mxu0 %v950
    %1094 = vmatprep.mubr.bf16.mxu0 %v635
    %1095 = vmatmul.mubr.bf16.gmra.mxu0 %v634
    %v1096 = vpop.f32.mrf.mxu0
    %v1097 = vadd.f32 %v735, %v1096
    %v1098 = vpop.f32.mrf.mxu0
    %v1099 = vadd.f32 %v739, %v1098
    %v1100 = vpop.f32.mrf.mxu0
    %v1101 = vadd.f32 %v735, %v1100
    %v1102 = vpop.f32.mrf.mxu0
    %v1103 = vadd.f32 %v739, %v1102
    %1104 = vmatprep.mubr.bf16.mxu0 %v639
    %1105 = vmatmul.mubr.bf16.gmra.mxu0 %v638
    %v1106 = vpop.f32.mrf.mxu0
    %v1107 = vadd.f32 %v735, %v1106
    %v1108 = vpop.f32.mrf.mxu0
    %v1109 = vadd.f32 %v739, %v1108
    %v1110 = vpop.f32.mrf.mxu0
    %v1111 = vadd.f32 %v735, %v1110
    %v1112 = vpop.f32.mrf.mxu0
    %v1113 = vadd.f32 %v739, %v1112
    %1114 = vmatprep.mubr.bf16.mxu0 %v643
    %1115 = vmatmul.mubr.bf16.gmra.mxu0 %v642
    %v1116 = vpop.f32.mrf.mxu0
    %v1117 = vadd.f32 %v735, %v1116
    %v1118 = vpop.f32.mrf.mxu0
    %v1119 = vadd.f32 %v739, %v1118
    %v1120 = vpop.f32.mrf.mxu0
    %v1121 = vadd.f32 %v735, %v1120
    %v1122 = vpop.f32.mrf.mxu0
    %v1123 = vadd.f32 %v739, %v1122
    %1124 = vmatprep.mubr.bf16.mxu0 %v647
    %1125 = vmatmul.mubr.bf16.gmra.mxu0 %v646
    %v1126 = vpop.f32.mrf.mxu0
    %v1127 = vadd.f32 %v735, %v1126
    %v1128 = vpop.f32.mrf.mxu0
    %v1129 = vadd.f32 %v739, %v1128
    %v1130 = vpop.f32.mrf.mxu0
    %v1131 = vadd.f32 %v735, %v1130
    %v1132 = vpop.f32.mrf.mxu0
    %v1133 = vadd.f32 %v739, %v1132
    %1134 = vmatprep.mubr.bf16.mxu0 %v651
    %1135 = vmatmul.mubr.bf16.gmra.mxu0 %v650
    %v1136 = vpop.f32.mrf.mxu0
    %v1137 = vadd.f32 %v735, %v1136
    %v1138 = vpop.f32.mrf.mxu0
    %v1139 = vadd.f32 %v739, %v1138
    %v1140 = vpop.f32.mrf.mxu0
    %v1141 = vadd.f32 %v735, %v1140
    %v1142 = vpop.f32.mrf.mxu0
    %v1143 = vadd.f32 %v739, %v1142
    %1144 = vmatprep.mubr.bf16.mxu0 %v655
    %1145 = vmatmul.mubr.bf16.gmra.mxu0 %v654
    %v1146 = vpop.f32.mrf.mxu0
    %v1147 = vadd.f32 %v735, %v1146
    %v1148 = vpop.f32.mrf.mxu0
    %v1149 = vadd.f32 %v739, %v1148
    %v1150 = vpop.f32.mrf.mxu0
    %v1151 = vadd.f32 %v735, %v1150
    %v1152 = vpop.f32.mrf.mxu0
    %v1153 = vadd.f32 %v739, %v1152
    %1154 = vmatprep.mubr.bf16.mxu0 %v659
    %1155 = vmatmul.mubr.bf16.gmra.mxu0 %v658
    %v1156 = vpop.f32.mrf.mxu0
    %v1157 = vadd.f32 %v735, %v1156
    %v1158 = vpop.f32.mrf.mxu0
    %v1159 = vadd.f32 %v739, %v1158
    %v1160 = vpop.f32.mrf.mxu0
    %v1161 = vadd.f32 %v735, %v1160
    %v1162 = vpop.f32.mrf.mxu0
    %v1163 = vadd.f32 %v739, %v1162
    %1164 = vmatprep.mubr.bf16.mxu0 %v663
    %1165 = vmatmul.mubr.bf16.gmra.mxu0 %v662
    %v1166 = vpop.f32.mrf.mxu0
    %v1167 = vadd.f32 %v735, %v1166
    %v1168 = vpop.f32.mrf.mxu0
    %v1169 = vadd.f32 %v739, %v1168
    %v1170 = vpop.f32.mrf.mxu0
    %v1171 = vadd.f32 %v735, %v1170
    %v1172 = vpop.f32.mrf.mxu0
    %v1173 = vadd.f32 %v739, %v1172
    %1174 = vdwg.mxu0
    %1175 = vmatprep.subr.bf16.mxu0 %v981
    %1176 = vmatpush1.bf16.msra.mxu0 %v980
    %1177 = vmatprep.subr.bf16.mxu0 %v979
    %1178 = vmatpush1.bf16.msra.mxu0 %v978
    %1179 = vmatprep.subr.bf16.mxu0 %v977
    %1180 = vmatpush1.bf16.msra.mxu0 %v976
    %1181 = vmatprep.subr.bf16.mxu0 %v975
    %1182 = vmatpush1.bf16.msra.mxu0 %v974
    %1183 = vmatprep.subr.bf16.mxu0 %v973
    %1184 = vmatpush1.bf16.msra.mxu0 %v972
    %1185 = vmatprep.subr.bf16.mxu0 %v971
    %1186 = vmatpush1.bf16.msra.mxu0 %v970
    %1187 = vmatprep.subr.bf16.mxu0 %v969
    %1188 = vmatpush1.bf16.msra.mxu0 %v968
    %1189 = vmatprep.subr.bf16.mxu0 %v967
    %1190 = vmatpush1.bf16.msra.mxu0 %v966
    %1191 = vmatprep.subr.bf16.mxu0 %v997
    %1192 = vmatpush2.bf16.msra.mxu0 %v996
    %1193 = vmatprep.subr.bf16.mxu0 %v995
    %1194 = vmatpush2.bf16.msra.mxu0 %v994
    %1195 = vmatprep.subr.bf16.mxu0 %v993
    %1196 = vmatpush2.bf16.msra.mxu0 %v992
    %1197 = vmatprep.subr.bf16.mxu0 %v991
    %1198 = vmatpush2.bf16.msra.mxu0 %v990
    %1199 = vmatprep.subr.bf16.mxu0 %v989
    %1200 = vmatpush2.bf16.msra.mxu0 %v988
    %1201 = vmatprep.subr.bf16.mxu0 %v987
    %1202 = vmatpush2.bf16.msra.mxu0 %v986
    %1203 = vmatprep.subr.bf16.mxu0 %v985
    %1204 = vmatpush2.bf16.msra.mxu0 %v984
    %1205 = vmatprep.subr.bf16.mxu0 %v983
    %1206 = vmatpush2.bf16.msra.mxu0 %v982
    %1207 = vmatprep.mubr.bf16.mxu0 %v637
    %1208 = vmatmul.mubr.bf16.gmra.mxu0 %v636
    %v1209 = vpop.f32.mrf.mxu0
    %v1210 = vadd.f32 %v1097, %v1209
    %v1211 = vpop.f32.mrf.mxu0
    %v1212 = vadd.f32 %v1099, %v1211
    %v1213 = vpop.f32.mrf.mxu0
    %v1214 = vadd.f32 %v1101, %v1213
    %v1215 = vpop.f32.mrf.mxu0
    %v1216 = vadd.f32 %v1103, %v1215
    %1217 = vmatprep.mubr.bf16.mxu0 %v641
    %1218 = vmatmul.mubr.bf16.gmra.mxu0 %v640
    %v1219 = vpop.f32.mrf.mxu0
    %v1220 = vadd.f32 %v1107, %v1219
    %v1221 = vpop.f32.mrf.mxu0
    %v1222 = vadd.f32 %v1109, %v1221
    %v1223 = vpop.f32.mrf.mxu0
    %v1224 = vadd.f32 %v1111, %v1223
    %v1225 = vpop.f32.mrf.mxu0
    %v1226 = vadd.f32 %v1113, %v1225
    %1227 = vmatprep.mubr.bf16.mxu0 %v645
    %1228 = vmatmul.mubr.bf16.gmra.mxu0 %v644
    %v1229 = vpop.f32.mrf.mxu0
    %v1230 = vadd.f32 %v1117, %v1229
    %v1231 = vpop.f32.mrf.mxu0
    %v1232 = vadd.f32 %v1119, %v1231
    %v1233 = vpop.f32.mrf.mxu0
    %v1234 = vadd.f32 %v1121, %v1233
    %v1235 = vpop.f32.mrf.mxu0
    %v1236 = vadd.f32 %v1123, %v1235
    %1237 = vmatprep.mubr.bf16.mxu0 %v649
    %1238 = vmatmul.mubr.bf16.gmra.mxu0 %v648
    %v1239 = vpop.f32.mrf.mxu0
    %v1240 = vadd.f32 %v1127, %v1239
    %v1241 = vpop.f32.mrf.mxu0
    %v1242 = vadd.f32 %v1129, %v1241
    %v1243 = vpop.f32.mrf.mxu0
    %v1244 = vadd.f32 %v1131, %v1243
    %v1245 = vpop.f32.mrf.mxu0
    %v1246 = vadd.f32 %v1133, %v1245
    %1247 = vmatprep.mubr.bf16.mxu0 %v653
    %1248 = vmatmul.mubr.bf16.gmra.mxu0 %v652
    %v1249 = vpop.f32.mrf.mxu0
    %v1250 = vadd.f32 %v1137, %v1249
    %v1251 = vpop.f32.mrf.mxu0
    %v1252 = vadd.f32 %v1139, %v1251
    %v1253 = vpop.f32.mrf.mxu0
    %v1254 = vadd.f32 %v1141, %v1253
    %v1255 = vpop.f32.mrf.mxu0
    %v1256 = vadd.f32 %v1143, %v1255
    %1257 = vmatprep.mubr.bf16.mxu0 %v657
    %1258 = vmatmul.mubr.bf16.gmra.mxu0 %v656
    %v1259 = vpop.f32.mrf.mxu0
    %v1260 = vadd.f32 %v1147, %v1259
    %v1261 = vpop.f32.mrf.mxu0
    %v1262 = vadd.f32 %v1149, %v1261
    %v1263 = vpop.f32.mrf.mxu0
    %v1264 = vadd.f32 %v1151, %v1263
    %v1265 = vpop.f32.mrf.mxu0
    %v1266 = vadd.f32 %v1153, %v1265
    %1267 = vmatprep.mubr.bf16.mxu0 %v661
    %1268 = vmatmul.mubr.bf16.gmra.mxu0 %v660
    %v1269 = vpop.f32.mrf.mxu0
    %v1270 = vadd.f32 %v1157, %v1269
    %v1271 = vpop.f32.mrf.mxu0
    %v1272 = vadd.f32 %v1159, %v1271
    %v1273 = vpop.f32.mrf.mxu0
    %v1274 = vadd.f32 %v1161, %v1273
    %v1275 = vpop.f32.mrf.mxu0
    %v1276 = vadd.f32 %v1163, %v1275
    %1277 = vmatprep.mubr.bf16.mxu0 %v665
    %1278 = vmatmul.mubr.bf16.gmra.mxu0 %v664
    %v1279 = vpop.f32.mrf.mxu0
    %v1280 = vadd.f32 %v1167, %v1279
    %v1281 = vpop.f32.mrf.mxu0
    %v1282 = vadd.f32 %v1169, %v1281
    %v1283 = vpop.f32.mrf.mxu0
    %v1284 = vadd.f32 %v1171, %v1283
    %v1285 = vpop.f32.mrf.mxu0
    %v1286 = vadd.f32 %v1173, %v1285
    %1287 = vdwg.mxu0
    %v1288 = vpack.c.bf16 %v1214, %v1210
    %v1289 = vpack.c.bf16 %v1216, %v1212
    %v1290 = vpack.c.bf16 %v1224, %v1220
    %v1291 = vpack.c.bf16 %v1226, %v1222
    %v1292 = vpack.c.bf16 %v1234, %v1230
    %v1293 = vpack.c.bf16 %v1236, %v1232
    %v1294 = vpack.c.bf16 %v1244, %v1240
    %v1295 = vpack.c.bf16 %v1246, %v1242
    %v1296 = vpack.c.bf16 %v1254, %v1250
    %v1297 = vpack.c.bf16 %v1256, %v1252
    %v1298 = vpack.c.bf16 %v1264, %v1260
    %v1299 = vpack.c.bf16 %v1266, %v1262
    %v1300 = vpack.c.bf16 %v1274, %v1270
    %v1301 = vpack.c.bf16 %v1276, %v1272
    %v1302 = vpack.c.bf16 %v1284, %v1280
    %v1303 = vpack.c.bf16 %v1286, %v1282
    %vm1304 = vcmp.gt.bf16.partialorder %v1288, 0
    %vm1305 = vcmp.gt.bf16.partialorder %v1289, 0
    %vm1306 = vcmp.gt.bf16.partialorder %v1290, 0
    %vm1307 = vcmp.gt.bf16.partialorder %v1291, 0
    %vm1308 = vcmp.gt.bf16.partialorder %v1292, 0
    %vm1309 = vcmp.gt.bf16.partialorder %v1293, 0
    %vm1310 = vcmp.gt.bf16.partialorder %v1294, 0
    %vm1311 = vcmp.gt.bf16.partialorder %v1295, 0
    %vm1312 = vcmp.gt.bf16.partialorder %v1296, 0
    %vm1313 = vcmp.gt.bf16.partialorder %v1297, 0
    %vm1314 = vcmp.gt.bf16.partialorder %v1298, 0
    %vm1315 = vcmp.gt.bf16.partialorder %v1299, 0
    %vm1316 = vcmp.gt.bf16.partialorder %v1300, 0
    %vm1317 = vcmp.gt.bf16.partialorder %v1301, 0
    %vm1318 = vcmp.gt.bf16.partialorder %v1302, 0
    %vm1319 = vcmp.gt.bf16.partialorder %v1303, 0
    %v1321 = vmul.bf16 %v1288, 1069105081
    %v1322 = vpow.bf16.pop %v1321
    %v1324 = vmul.bf16 %v1289, 1069105081
    %v1325 = vpow.bf16.pop %v1324
    %v1327 = vmul.bf16 %v1290, 1069105081
    %v1328 = vpow.bf16.pop %v1327
    %v1330 = vmul.bf16 %v1291, 1069105081
    %v1331 = vpow.bf16.pop %v1330
    %v1333 = vmul.bf16 %v1292, 1069105081
    %v1334 = vpow.bf16.pop %v1333
    %v1336 = vmul.bf16 %v1293, 1069105081
    %v1337 = vpow.bf16.pop %v1336
    %v1339 = vmul.bf16 %v1294, 1069105081
    %v1340 = vpow.bf16.pop %v1339
    %v1342 = vmul.bf16 %v1295, 1069105081
    %v1343 = vpow.bf16.pop %v1342
    %v1345 = vmul.bf16 %v1296, 1069105081
    %v1346 = vpow.bf16.pop %v1345
    %v1348 = vmul.bf16 %v1297, 1069105081
    %v1349 = vpow.bf16.pop %v1348
    %v1351 = vmul.bf16 %v1298, 1069105081
    %v1352 = vpow.bf16.pop %v1351
    %v1354 = vmul.bf16 %v1299, 1069105081
    %v1355 = vpow.bf16.pop %v1354
    %v1357 = vmul.bf16 %v1300, 1069105081
    %v1358 = vpow.bf16.pop %v1357
    %v1360 = vmul.bf16 %v1301, 1069105081
    %v1361 = vpow.bf16.pop %v1360
    %v1363 = vmul.bf16 %v1302, 1069105081
    %v1364 = vpow.bf16.pop %v1363
    %v1366 = vmul.bf16 %v1303, 1069105081
    %v1367 = vpow.bf16.pop %v1366
    %v1368 = vsub.bf16 %v1322, 1065369472
    %v1369 = vsub.bf16 %v1325, 1065369472
    %v1370 = vsub.bf16 %v1328, 1065369472
    %v1371 = vsub.bf16 %v1331, 1065369472
    %v1372 = vsub.bf16 %v1334, 1065369472
    %v1373 = vsub.bf16 %v1337, 1065369472
    %v1374 = vsub.bf16 %v1340, 1065369472
    %v1375 = vsub.bf16 %v1343, 1065369472
    %v1376 = vsub.bf16 %v1346, 1065369472
    %v1377 = vsub.bf16 %v1349, 1065369472
    %v1378 = vsub.bf16 %v1352, 1065369472
    %v1379 = vsub.bf16 %v1355, 1065369472
    %v1380 = vsub.bf16 %v1358, 1065369472
    %v1381 = vsub.bf16 %v1361, 1065369472
    %v1382 = vsub.bf16 %v1364, 1065369472
    %v1383 = vsub.bf16 %v1367, 1065369472
    %v1384 = vsel %vm1304, %v1288, %v1368
    %v1385 = vsel %vm1305, %v1289, %v1369
    %v1386 = vsel %vm1306, %v1290, %v1370
    %v1387 = vsel %vm1307, %v1291, %v1371
    %v1388 = vsel %vm1308, %v1292, %v1372
    %v1389 = vsel %vm1309, %v1293, %v1373
    %v1390 = vsel %vm1310, %v1294, %v1374
    %v1391 = vsel %vm1311, %v1295, %v1375
    %v1392 = vsel %vm1312, %v1296, %v1376
    %v1393 = vsel %vm1313, %v1297, %v1377
    %v1394 = vsel %vm1314, %v1298, %v1378
    %v1395 = vsel %vm1315, %v1299, %v1379
    %v1396 = vsel %vm1316, %v1300, %v1380
    %v1397 = vsel %vm1317, %v1301, %v1381
    %v1398 = vsel %vm1318, %v1302, %v1382
    %v1399 = vsel %vm1319, %v1303, %v1383
    %v1400 = vld [vmem:[#allocation6] sm:$0xf]
    %v1401 = vld [vmem:[#allocation6 + $0x4] sm:$0xf]
    %v1402 = vld [vmem:[#allocation6 + $0x8] sm:$0xf]
    %v1403 = vld [vmem:[#allocation6 + $0xc] sm:$0xf]
    %v1404 = vld [vmem:[#allocation6 + $0x10] sm:$0xf]
    %v1405 = vld [vmem:[#allocation6 + $0x14] sm:$0xf]
    %v1406 = vld [vmem:[#allocation6 + $0x18] sm:$0xf]
    %v1407 = vld [vmem:[#allocation6 + $0x1c] sm:$0xf]
    %v1408 = vld [vmem:[#allocation6 + $0x20] sm:$0xf]
    %v1409 = vld [vmem:[#allocation6 + $0x24] sm:$0xf]
    %v1410 = vld [vmem:[#allocation6 + $0x28] sm:$0xf]
    %v1411 = vld [vmem:[#allocation6 + $0x2c] sm:$0xf]
    %v1412 = vld [vmem:[#allocation6 + $0x30] sm:$0xf]
    %v1413 = vld [vmem:[#allocation6 + $0x34] sm:$0xf]
    %v1414 = vld [vmem:[#allocation6 + $0x38] sm:$0xf]
    %v1415 = vld [vmem:[#allocation6 + $0x3c] sm:$0xf]
    %v1416 = vld [vmem:[#allocation6 + $0x40] sm:$0xf]
    %v1417 = vld [vmem:[#allocation6 + $0x44] sm:$0xf]
    %v1418 = vld [vmem:[#allocation6 + $0x48] sm:$0xf]
    %v1419 = vld [vmem:[#allocation6 + $0x4c] sm:$0xf]
    %v1420 = vld [vmem:[#allocation6 + $0x50] sm:$0xf]
    %v1421 = vld [vmem:[#allocation6 + $0x54] sm:$0xf]
    %v1422 = vld [vmem:[#allocation6 + $0x58] sm:$0xf]
    %v1423 = vld [vmem:[#allocation6 + $0x5c] sm:$0xf]
    %v1424 = vld [vmem:[#allocation6 + $0x60] sm:$0xf]
    %v1425 = vld [vmem:[#allocation6 + $0x64] sm:$0xf]
    %v1426 = vld [vmem:[#allocation6 + $0x68] sm:$0xf]
    %v1427 = vld [vmem:[#allocation6 + $0x6c] sm:$0xf]
    %v1428 = vld [vmem:[#allocation6 + $0x70] sm:$0xf]
    %v1429 = vld [vmem:[#allocation6 + $0x74] sm:$0xf]
    %v1430 = vld [vmem:[#allocation6 + $0x78] sm:$0xf]
    %v1431 = vld [vmem:[#allocation6 + $0x7c] sm:$0xf]
    %v1432 = vld [vmem:[%s6] sm:$0x1]
    %v1434 = vlaneseq
    %v1435 = vshrl.u32 %v1434, 7
    %v1436 = vsub.s32 0, %v1435
    %v1437 = vrot.slane %v1432, %v1436
    %v1471 = vunpack.c.l.b16 %v1400
    %v1472 = vunpack.c.l.b16 %v1401
    %v1473 = vunpack.c.l.b16 %v1402
    %v1474 = vunpack.c.l.b16 %v1403
    %v1475 = vunpack.c.l.b16 %v1404
    %v1476 = vunpack.c.l.b16 %v1405
    %v1477 = vunpack.c.l.b16 %v1406
    %v1478 = vunpack.c.l.b16 %v1407
    %v1479 = vunpack.c.l.b16 %v1408
    %v1480 = vunpack.c.l.b16 %v1409
    %v1481 = vunpack.c.l.b16 %v1410
    %v1482 = vunpack.c.l.b16 %v1411
    %v1483 = vunpack.c.l.b16 %v1412
    %v1484 = vunpack.c.l.b16 %v1413
    %v1485 = vunpack.c.l.b16 %v1414
    %v1486 = vunpack.c.l.b16 %v1415
    %v1487 = vunpack.c.l.b16 %v1416
    %v1488 = vunpack.c.l.b16 %v1417
    %v1489 = vunpack.c.l.b16 %v1418
    %v1490 = vunpack.c.l.b16 %v1419
    %v1491 = vunpack.c.l.b16 %v1420
    %v1492 = vunpack.c.l.b16 %v1421
    %v1493 = vunpack.c.l.b16 %v1422
    %v1494 = vunpack.c.l.b16 %v1423
    %v1495 = vunpack.c.l.b16 %v1424
    %v1496 = vunpack.c.l.b16 %v1425
    %v1497 = vunpack.c.l.b16 %v1426
    %v1498 = vunpack.c.l.b16 %v1427
    %v1499 = vunpack.c.l.b16 %v1428
    %v1500 = vunpack.c.l.b16 %v1429
    %v1501 = vunpack.c.l.b16 %v1430
    %v1502 = vunpack.c.l.b16 %v1431
    %v1503 = vpack.c.b16 %v1472, %v1471
    %v1504 = vpack.c.b16 %v1474, %v1473
    %v1505 = vpack.c.b16 %v1476, %v1475
    %v1506 = vpack.c.b16 %v1478, %v1477
    %v1507 = vpack.c.b16 %v1480, %v1479
    %v1508 = vpack.c.b16 %v1482, %v1481
    %v1509 = vpack.c.b16 %v1484, %v1483
    %v1510 = vpack.c.b16 %v1486, %v1485
    %v1511 = vpack.c.b16 %v1488, %v1487
    %v1512 = vpack.c.b16 %v1490, %v1489
    %v1513 = vpack.c.b16 %v1492, %v1491
    %v1514 = vpack.c.b16 %v1494, %v1493
    %v1515 = vpack.c.b16 %v1496, %v1495
    %v1516 = vpack.c.b16 %v1498, %v1497
    %v1517 = vpack.c.b16 %v1500, %v1499
    %v1518 = vpack.c.b16 %v1502, %v1501
    %1535 = vmatprep.subr.bf16.mxu0 0
    %1536 = vmatpush1.bf16.msra.mxu0 %v1510
    %1537 = vmatprep.subr.bf16.mxu0 0
    %1538 = vmatpush1.bf16.msra.mxu0 %v1509
    %1539 = vmatprep.subr.bf16.mxu0 0
    %1540 = vmatpush1.bf16.msra.mxu0 %v1508
    %1541 = vmatprep.subr.bf16.mxu0 0
    %1542 = vmatpush1.bf16.msra.mxu0 %v1507
    %1543 = vmatprep.subr.bf16.mxu0 0
    %1544 = vmatpush1.bf16.msra.mxu0 %v1506
    %1545 = vmatprep.subr.bf16.mxu0 0
    %1546 = vmatpush1.bf16.msra.mxu0 %v1505
    %1547 = vmatprep.subr.bf16.mxu0 0
    %1548 = vmatpush1.bf16.msra.mxu0 %v1504
    %1549 = vmatprep.subr.bf16.mxu0 0
    %1550 = vmatpush1.bf16.msra.mxu0 %v1503
    %1551 = vmatprep.subr.bf16.mxu0 0
    %1552 = vmatpush2.bf16.msra.mxu0 %v1518
    %1553 = vmatprep.subr.bf16.mxu0 0
    %1554 = vmatpush2.bf16.msra.mxu0 %v1517
    %1555 = vmatprep.subr.bf16.mxu0 0
    %1556 = vmatpush2.bf16.msra.mxu0 %v1516
    %1557 = vmatprep.subr.bf16.mxu0 0
    %1558 = vmatpush2.bf16.msra.mxu0 %v1515
    %1559 = vmatprep.subr.bf16.mxu0 0
    %1560 = vmatpush2.bf16.msra.mxu0 %v1514
    %1561 = vmatprep.subr.bf16.mxu0 0
    %1562 = vmatpush2.bf16.msra.mxu0 %v1513
    %1563 = vmatprep.subr.bf16.mxu0 0
    %1564 = vmatpush2.bf16.msra.mxu0 %v1512
    %1565 = vmatprep.subr.bf16.mxu0 0
    %1566 = vmatpush2.bf16.msra.mxu0 %v1511
    %1567 = vmatprep.mubr.bf16.mxu0 %v1385
    %1568 = vmatmul.mubr.bf16.gmra.mxu0 %v1384
    %v1569 = vpop.f32.mrf.mxu0
    %v1570 = vadd.f32 %v1437, %v1569
    %v1571 = vpop.f32.mrf.mxu0
    %v1572 = vpop.f32.mrf.mxu0
    %v1573 = vadd.f32 %v1437, %v1572
    %v1574 = vpop.f32.mrf.mxu0
    %1575 = vmatprep.mubr.bf16.mxu0 %v1387
    %1576 = vmatmul.mubr.bf16.gmra.mxu0 %v1386
    %v1577 = vpop.f32.mrf.mxu0
    %v1578 = vadd.f32 %v1437, %v1577
    %v1579 = vpop.f32.mrf.mxu0
    %v1580 = vpop.f32.mrf.mxu0
    %v1581 = vadd.f32 %v1437, %v1580
    %v1582 = vpop.f32.mrf.mxu0
    %1583 = vmatprep.mubr.bf16.mxu0 %v1389
    %1584 = vmatmul.mubr.bf16.gmra.mxu0 %v1388
    %v1585 = vpop.f32.mrf.mxu0
    %v1586 = vadd.f32 %v1437, %v1585
    %v1587 = vpop.f32.mrf.mxu0
    %v1588 = vpop.f32.mrf.mxu0
    %v1589 = vadd.f32 %v1437, %v1588
    %v1590 = vpop.f32.mrf.mxu0
    %1591 = vmatprep.mubr.bf16.mxu0 %v1391
    %1592 = vmatmul.mubr.bf16.gmra.mxu0 %v1390
    %v1593 = vpop.f32.mrf.mxu0
    %v1594 = vadd.f32 %v1437, %v1593
    %v1595 = vpop.f32.mrf.mxu0
    %v1596 = vpop.f32.mrf.mxu0
    %v1597 = vadd.f32 %v1437, %v1596
    %v1598 = vpop.f32.mrf.mxu0
    %1599 = vmatprep.mubr.bf16.mxu0 %v1393
    %1600 = vmatmul.mubr.bf16.gmra.mxu0 %v1392
    %v1601 = vpop.f32.mrf.mxu0
    %v1602 = vadd.f32 %v1437, %v1601
    %v1603 = vpop.f32.mrf.mxu0
    %v1604 = vpop.f32.mrf.mxu0
    %v1605 = vadd.f32 %v1437, %v1604
    %v1606 = vpop.f32.mrf.mxu0
    %1607 = vmatprep.mubr.bf16.mxu0 %v1395
    %1608 = vmatmul.mubr.bf16.gmra.mxu0 %v1394
    %v1609 = vpop.f32.mrf.mxu0
    %v1610 = vadd.f32 %v1437, %v1609
    %v1611 = vpop.f32.mrf.mxu0
    %v1612 = vpop.f32.mrf.mxu0
    %v1613 = vadd.f32 %v1437, %v1612
    %v1614 = vpop.f32.mrf.mxu0
    %1615 = vmatprep.mubr.bf16.mxu0 %v1397
    %1616 = vmatmul.mubr.bf16.gmra.mxu0 %v1396
    %v1617 = vpop.f32.mrf.mxu0
    %v1618 = vadd.f32 %v1437, %v1617
    %v1619 = vpop.f32.mrf.mxu0
    %v1620 = vpop.f32.mrf.mxu0
    %v1621 = vadd.f32 %v1437, %v1620
    %v1622 = vpop.f32.mrf.mxu0
    %1623 = vmatprep.mubr.bf16.mxu0 %v1399
    %1624 = vmatmul.mubr.bf16.gmra.mxu0 %v1398
    %v1625 = vpop.f32.mrf.mxu0
    %v1626 = vadd.f32 %v1437, %v1625
    %v1627 = vpop.f32.mrf.mxu0
    %v1628 = vpop.f32.mrf.mxu0
    %v1629 = vadd.f32 %v1437, %v1628
    %v1630 = vpop.f32.mrf.mxu0
    %1631 = vdwg.mxu0
    %v1632 = vpack.c.bf16 %v1573, %v1570
    %v1633 = vpack.c.bf16 %v1581, %v1578
    %v1634 = vpack.c.bf16 %v1589, %v1586
    %v1635 = vpack.c.bf16 %v1597, %v1594
    %v1636 = vpack.c.bf16 %v1605, %v1602
    %v1637 = vpack.c.bf16 %v1613, %v1610
    %v1638 = vpack.c.bf16 %v1621, %v1618
    %v1639 = vpack.c.bf16 %v1629, %v1626
    %vm1640 = vcmp.gt.bf16.partialorder %v1632, 0
    %vm1641 = vcmp.gt.bf16.partialorder %v1633, 0
    %vm1642 = vcmp.gt.bf16.partialorder %v1634, 0
    %vm1643 = vcmp.gt.bf16.partialorder %v1635, 0
    %vm1644 = vcmp.gt.bf16.partialorder %v1636, 0
    %vm1645 = vcmp.gt.bf16.partialorder %v1637, 0
    %vm1646 = vcmp.gt.bf16.partialorder %v1638, 0
    %vm1647 = vcmp.gt.bf16.partialorder %v1639, 0
    %v1649 = vmul.bf16 %v1632, 1069105081
    %v1650 = vpow.bf16.pop %v1649
    %v1652 = vmul.bf16 %v1633, 1069105081
    %v1653 = vpow.bf16.pop %v1652
    %v1655 = vmul.bf16 %v1634, 1069105081
    %v1656 = vpow.bf16.pop %v1655
    %v1658 = vmul.bf16 %v1635, 1069105081
    %v1659 = vpow.bf16.pop %v1658
    %v1661 = vmul.bf16 %v1636, 1069105081
    %v1662 = vpow.bf16.pop %v1661
    %v1664 = vmul.bf16 %v1637, 1069105081
    %v1665 = vpow.bf16.pop %v1664
    %v1667 = vmul.bf16 %v1638, 1069105081
    %v1668 = vpow.bf16.pop %v1667
    %v1670 = vmul.bf16 %v1639, 1069105081
    %v1671 = vpow.bf16.pop %v1670
    %v1672 = vsub.bf16 %v1650, 1065369472
    %v1673 = vsub.bf16 %v1653, 1065369472
    %v1674 = vsub.bf16 %v1656, 1065369472
    %v1675 = vsub.bf16 %v1659, 1065369472
    %v1676 = vsub.bf16 %v1662, 1065369472
    %v1677 = vsub.bf16 %v1665, 1065369472
    %v1678 = vsub.bf16 %v1668, 1065369472
    %v1679 = vsub.bf16 %v1671, 1065369472
    %v1680 = vsel %vm1640, %v1632, %v1672
    %v1681 = vsel %vm1641, %v1633, %v1673
    %v1682 = vsel %vm1642, %v1634, %v1674
    %v1683 = vsel %vm1643, %v1635, %v1675
    %v1684 = vsel %vm1644, %v1636, %v1676
    %v1685 = vsel %vm1645, %v1637, %v1677
    %v1686 = vsel %vm1646, %v1638, %v1678
    %v1687 = vsel %vm1647, %v1639, %v1679
    %v1688 = vld [vmem:[%s7] sm:$0x1]
    %v1689 = vld [vmem:[#allocation2] sm:$0x1]
    %1691 = vset.pattern.permute.xlu0 0
    %1692 = vperm.xlu0 %1691, %v1689
    %v1693 = vpop.permute.xlu0 %1692
    %v1695 = vlaneseq
    %v1696 = vshrl.u32 %v1695, 7
    %v1697 = vsub.s32 0, %v1696
    %v1698 = vrot.slane %v1693, %v1697
    %1699 = vmatprep.subr.bf16.mxu0 0
    %1700 = vmatpush1.bf16.xpose.msra.mxu0 %v1687
    %1701 = vmatprep.subr.bf16.mxu0 0
    %1702 = vmatpush1.bf16.xpose.msra.mxu0 %v1686
    %1703 = vmatprep.subr.bf16.mxu0 0
    %1704 = vmatpush1.bf16.xpose.msra.mxu0 %v1685
    %1705 = vmatprep.subr.bf16.mxu0 0
    %1706 = vmatpush1.bf16.xpose.msra.mxu0 %v1684
    %1707 = vmatprep.subr.bf16.mxu0 0
    %1708 = vmatpush1.bf16.xpose.msra.mxu0 %v1683
    %1709 = vmatprep.subr.bf16.mxu0 0
    %1710 = vmatpush1.bf16.xpose.msra.mxu0 %v1682
    %1711 = vmatprep.subr.bf16.mxu0 0
    %1712 = vmatpush1.bf16.xpose.msra.mxu0 %v1681
    %1713 = vmatprep.subr.bf16.mxu0 0
    %1714 = vmatpush1.bf16.xpose.msra.mxu0 %v1680
    %1715 = vmatprep.subr.bf16.mxu0 0
    %1716 = vmatpush2.bf16.xpose.msra.mxu0 0
    %1717 = vmatprep.subr.bf16.mxu0 0
    %1718 = vmatpush2.bf16.xpose.msra.mxu0 0
    %1719 = vmatprep.subr.bf16.mxu0 0
    %1720 = vmatpush2.bf16.xpose.msra.mxu0 0
    %1721 = vmatprep.subr.bf16.mxu0 0
    %1722 = vmatpush2.bf16.xpose.msra.mxu0 0
    %1723 = vmatprep.subr.bf16.mxu0 0
    %1724 = vmatpush2.bf16.xpose.msra.mxu0 0
    %1725 = vmatprep.subr.bf16.mxu0 0
    %1726 = vmatpush2.bf16.xpose.msra.mxu0 0
    %1727 = vmatprep.subr.bf16.mxu0 0
    %1728 = vmatpush2.bf16.xpose.msra.mxu0 0
    %1729 = vmatprep.subr.bf16.mxu0 0
    %1730 = vmatpush2.bf16.xpose.msra.mxu0 0
    %1731 = vmatprep.mubr.bf16.mxu0 0
    %1732 = vmatmul.mubr.bf16.gmra.mxu0 %v1688
    %v1733 = vpop.f32.mrf.mxu0
    %v1734 = vadd.f32 %v1698, %v1733
    %v1735 = vpop.f32.mrf.mxu0
    %v1736 = vpop.f32.mrf.mxu0
    %v1737 = vpop.f32.mrf.mxu0
    %1738 = vdwg.mxu0
    %vm1739 = vcmp.gt.f32.partialorder %v1734, 20.0
    %v1740 = vmin.f32 %v1734, 20.0
    %v1741 = vmul.f32 %v1740, 1.442695
    %v1742 = vpow.pop %v1741
    %v1743 = vadd.f32 %v1742, 1.0
    %v1744 = vlog2.pop %v1743
    %v1745 = vmul.f32 %v1744, 0.6931472
    %v1746 = vmul.f32 -0.5, %v1742
    %v1747 = vadd.f32 %v1746, 1.0
    %v1748 = vmul.f32 %v1747, %v1742
    %v1749 = vand.u32 2147483647, %v1742
    %vm1750 = vcmp.lt.f32.partialorder %v1749, 0.0004427343
    %v1751 = vsel %vm1750, %v1748, %v1745
    %v1752 = vsel %vm1739, %v1734, %v1751
    %v1753 = vmax.f32 %v1752, 0.0001
    %v1754 = vmin.f32 %v1753, 1000000.0
    %1755 = vst [vmem:[#allocation8] sm:$0x1] %v1754
    // Predicated region
    $region46: #{tpu_custom_call.1} parent=1 // pred_check
      _
    $region47: #{tpu_custom_call.1} parent=1 // pred_check_branch
      %1757 = sbr.rel (0) target = $region49
    $region48: #{tpu_custom_call.1} parent=1 // pred_region
      %s1759 = ssub.s32 16, 16
      %1760 = vsyncadd [#allocation5], %s1759
      %s1762 = sshll.u32 [#allocation8], 4
      %s1763 = int_to_ptr.vmem [resolvable:$true] %s1762
      %1765 = dma.vmem_to_hbm [thread:$0]  %s1763, 16, %s9, [#allocation5]
    $region49: #{tpu_custom_call.1} parent=1 // pred_fallthru
      _
    // Predicated region
    $region50: #{tpu_custom_call.1} parent=1 // pred_check
      _
    $region51: #{tpu_custom_call.1} parent=1 // pred_check_branch
      %1767 = sbr.rel (0) target = $region53
    $region52: #{tpu_custom_call.1} parent=1 // pred_region
      %1768 = dma.done [#allocation5], 16
    $region53: #{tpu_custom_call.1} parent=1 // pred_fallthru
      _
    %1769 = vsyncpa [#allocation4], 1
    %1770 = vsyncpa [#allocation7], 1
    %1771 = vsyncpa [#allocation5], 1

// kernel: tpu_custom_call.1
$region0: #{tpu_custom_call.1}
  #allocation0 [shape = 'u32[]', space=smem, size = 0x4, offset = 0x4, fixed_abs, tag = 'smem constant byte address 0x4 - core index']
  #allocation1 [shape = 'u32[144,128]{1,0:T(1,128)}', space=vmem, size = 0x12000, scoped, tag = 'internal scratch']
  #allocation2 [shape = 'f32[1,1]{1,0:T(1,128)S(1)}', space=vmem, size = 0x200, scoped, tag = 'scoped memory for tpu_custom_call.1']
  %s0 = inlined_call_operand.vmem [shape: bf16[128,32], index: 0, kind: input, shape index: {}]
  %s1 = inlined_call_operand.vmem [shape: bf16[32,512], index: 1, kind: input, shape index: {}]
  %s2 = inlined_call_operand.vmem [shape: f32[1,512], index: 2, kind: input, shape index: {}]
  %s3 = inlined_call_operand.hbm [shape: bf16[512,256], index: 3, kind: input, shape index: {}]
  %s4 = inlined_call_operand.vmem [shape: f32[1,256], index: 4, kind: input, shape index: {}]
  %s5 = inlined_call_operand.hbm [shape: bf16[256,128], index: 5, kind: input, shape index: {}]
  %s6 = inlined_call_operand.vmem [shape: f32[1,128], index: 6, kind: input, shape index: {}]
  %s7 = inlined_call_operand.vmem [shape: bf16[1,128], index: 7, kind: input, shape index: {}]
  %s8 = inlined_call_operand.<no memory space> [shape: f32[1,1], index: 8, kind: input, shape index: {}]
  %s9 = inlined_call_operand.hbm [shape: f32[1,128], index: 9, kind: output, shape index: {}]
  %s10 = sld [smem:[#allocation0]]
  $region54: #{tpu_custom_call.1} parent=0
    _
  %s12 = ssub.s32 1, %s10
  %s13 = scalar_select 0, %s12, %s10
  %v14 = vstv %s8
  %15 = vst [vmem:[#allocation2] sm:$0x1] %v14
  $region1: #{tpu_custom_call.1} parent=0
    #allocation3 [shape = 'u8[262144]{0}', space=vmem, size = 0x40000, scoped, tag = 'input window, operand 3, single buffered']
    #allocation4 [shape = 's32[1]{0}', space=sflag, size = 0x4, scoped, tag = 'scoped memory for tpu_custom_call.1']
    #allocation5 [shape = 's32[1]{0}', space=sflag, size = 0x4, scoped, tag = 'scoped memory for tpu_custom_call.1']
    #allocation6 [shape = 'u8[65536]{0}', space=vmem, size = 0x10000, scoped, tag = 'input window, operand 5, single buffered']
    #allocation7 [shape = 's32[1]{0}', space=sflag, size = 0x4, scoped, tag = 'scoped memory for tpu_custom_call.1']
    #allocation8 [shape = 'u8[512]{0}', space=vmem, size = 0x400, scoped, tag = 'output window, operand 0, single buffered']
    %16 = vsyncpa [#allocation4], 0
    %17 = vsyncpa [#allocation7], 0
    %18 = vsyncpa [#allocation5], 0
    // Predicated region
    $region2: #{tpu_custom_call.1} parent=1 // pred_check
      _
    $region3: #{tpu_custom_call.1} parent=1 // pred_check_branch
      %20 = sbr.rel (0) target = $region5
    $region4: #{tpu_custom_call.1} parent=1 // pred_region
      _
    $region5: #{tpu_custom_call.1} parent=1 // pred_fallthru
      _
    // Predicated region
    $region6: #{tpu_custom_call.1} parent=1 // pred_check
      _
    $region7: #{tpu_custom_call.1} parent=1 // pred_check_branch
      %22 = sbr.rel (0) target = $region9
    $region8: #{tpu_custom_call.1} parent=1 // pred_region
      _
    $region9: #{tpu_custom_call.1} parent=1 // pred_fallthru
      _
    // Predicated region
    $region10: #{tpu_custom_call.1} parent=1 // pred_check
      _
    $region11: #{tpu_custom_call.1} parent=1 // pred_check_branch
      %24 = sbr.rel (0) target = $region13
    $region12: #{tpu_custom_call.1} parent=1 // pred_region
      _
    $region13: #{tpu_custom_call.1} parent=1 // pred_fallthru
      _
    // Predicated region
    $region14: #{tpu_custom_call.1} parent=1 // pred_check
      _
    $region15: #{tpu_custom_call.1} parent=1 // pred_check_branch
      %26 = sbr.rel (0) target = $region17
    $region16: #{tpu_custom_call.1} parent=1 // pred_region
      %s28 = ssub.s32 8192, 8192
      %29 = vsyncadd [#allocation4], %s28
      %s30 = sshll.u32 [#allocation3], 4
      %s31 = int_to_ptr.vmem [resolvable:$true] %s30
      %36 = dma.hbm_to_vmem [thread:$0]  %s3, 8192, %s31, [#allocation4], 128, 128, 8
    $region17: #{tpu_custom_call.1} parent=1 // pred_fallthru
      _
    // Predicated region
    $region18: #{tpu_custom_call.1} parent=1 // pred_check
      _
    $region19: #{tpu_custom_call.1} parent=1 // pred_check_branch
      %38 = sbr.rel (0) target = $region21
    $region20: #{tpu_custom_call.1} parent=1 // pred_region
      _
    $region21: #{tpu_custom_call.1} parent=1 // pred_fallthru
      _
    // Predicated region
    $region22: #{tpu_custom_call.1} parent=1 // pred_check
      _
    $region23: #{tpu_custom_call.1} parent=1 // pred_check_branch
      %40 = sbr.rel (0) target = $region25
    $region24: #{tpu_custom_call.1} parent=1 // pred_region
      %s42 = ssub.s32 2048, 2048
      %43 = vsyncadd [#allocation7], %s42
      %s44 = sshll.u32 [#allocation6], 4
      %s45 = int_to_ptr.vmem [resolvable:$true] %s44
      %50 = dma.hbm_to_vmem [thread:$0]  %s5, 2048, %s45, [#allocation7], 64, 64, 4
    $region25: #{tpu_custom_call.1} parent=1 // pred_fallthru
      _
    // Predicated region
    $region26: #{tpu_custom_call.1} parent=1 // pred_check
      _
    $region27: #{tpu_custom_call.1} parent=1 // pred_check_branch
      %52 = sbr.rel (0) target = $region29
    $region28: #{tpu_custom_call.1} parent=1 // pred_region
      _
    $region29: #{tpu_custom_call.1} parent=1 // pred_fallthru
      _
    // Predicated region
    $region30: #{tpu_custom_call.1} parent=1 // pred_check
      _
    $region31: #{tpu_custom_call.1} parent=1 // pred_check_branch
      %54 = sbr.rel (0) target = $region33
    $region32: #{tpu_custom_call.1} parent=1 // pred_region
      _
    $region33: #{tpu_custom_call.1} parent=1 // pred_fallthru
      _
    // Predicated region
    $region34: #{tpu_custom_call.1} parent=1 // pred_check
      _
    $region35: #{tpu_custom_call.1} parent=1 // pred_check_branch
      %56 = sbr.rel (0) target = $region37
    $region36: #{tpu_custom_call.1} parent=1 // pred_region
      _
    $region37: #{tpu_custom_call.1} parent=1 // pred_fallthru
      _
    // Predicated region
    $region38: #{tpu_custom_call.1} parent=1 // pred_check
      _
    $region39: #{tpu_custom_call.1} parent=1 // pred_check_branch
      %58 = sbr.rel (0) target = $region41
    $region40: #{tpu_custom_call.1} parent=1 // pred_region
      %59 = dma.done [#allocation4], 8192
    $region41: #{tpu_custom_call.1} parent=1 // pred_fallthru
      _
    // Predicated region
    $region42: #{tpu_custom_call.1} parent=1 // pred_check
      _
    $region43: #{tpu_custom_call.1} parent=1 // pred_check_branch
      %61 = sbr.rel (0) target = $region45
    $region44: #{tpu_custom_call.1} parent=1 // pred_region
      %62 = dma.done [#allocation7], 2048
    $region45: #{tpu_custom_call.1} parent=1 // pred_fallthru
      _
    %v65 = vld [vmem:[%s0] sm:$0xf]
    %v66 = vld [vmem:[%s0 + $0x4] sm:$0xf]
    %v67 = vld [vmem:[%s0 + $0x8] sm:$0xf]
    %v68 = vld [vmem:[%s0 + $0xc] sm:$0xf]
    %v69 = vld [vmem:[%s0 + $0x10] sm:$0xf]
    %v70 = vld [vmem:[%s0 + $0x14] sm:$0xf]
    %v71 = vld [vmem:[%s0 + $0x18] sm:$0xf]
    %v72 = vld [vmem:[%s0 + $0x1c] sm:$0xf]
    %v73 = vld [vmem:[%s0 + $0x20] sm:$0xf]
    %v74 = vld [vmem:[%s0 + $0x24] sm:$0xf]
    %v75 = vld [vmem:[%s0 + $0x28] sm:$0xf]
    %v76 = vld [vmem:[%s0 + $0x2c] sm:$0xf]
    %v77 = vld [vmem:[%s0 + $0x30] sm:$0xf]
    %v78 = vld [vmem:[%s0 + $0x34] sm:$0xf]
    %v79 = vld [vmem:[%s0 + $0x38] sm:$0xf]
    %v80 = vld [vmem:[%s0 + $0x3c] sm:$0xf]
    %v81 = vld [vmem:[%s1] sm:$0xff]
    %v82 = vld [vmem:[%s1 + $0x8] sm:$0xff]
    %v83 = vld [vmem:[%s1 + $0x10] sm:$0xff]
    %v84 = vld [vmem:[%s1 + $0x18] sm:$0xff]
    %v85 = vld [vmem:[%s1 + $0x20] sm:$0xff]
    %v86 = vld [vmem:[%s1 + $0x28] sm:$0xff]
    %v87 = vld [vmem:[%s1 + $0x30] sm:$0xff]
    %v88 = vld [vmem:[%s1 + $0x38] sm:$0xff]
    %v89 = vld [vmem:[%s2] sm:$0xf]
    %v91 = vlaneseq
    %v92 = vshrl.u32 %v91, 7
    %v93 = vsub.s32 0, %v92
    %v94 = vrot.slane %v89, %v93
    %v95 = vlaneseq
    %v96 = vshrl.u32 %v95, 7
    %v97 = vsub.s32 1, %v96
    %v98 = vrot.slane %v89, %v97
    %v99 = vlaneseq
    %v100 = vshrl.u32 %v99, 7
    %v101 = vsub.s32 2, %v100
    %v102 = vrot.slane %v89, %v101
    %v103 = vlaneseq
    %v104 = vshrl.u32 %v103, 7
    %v105 = vsub.s32 3, %v104
    %v106 = vrot.slane %v89, %v105
    %v127 = vunpack.c.l.b16 %v65
    %v128 = vunpack.c.l.b16 %v66
    %v129 = vunpack.c.l.b16 %v67
    %v130 = vunpack.c.l.b16 %v68
    %v131 = vunpack.c.l.b16 %v69
    %v132 = vunpack.c.l.b16 %v70
    %v133 = vunpack.c.l.b16 %v71
    %v134 = vunpack.c.l.b16 %v72
    %v135 = vunpack.c.l.b16 %v73
    %v136 = vunpack.c.l.b16 %v74
    %v137 = vunpack.c.l.b16 %v75
    %v138 = vunpack.c.l.b16 %v76
    %v139 = vunpack.c.l.b16 %v77
    %v140 = vunpack.c.l.b16 %v78
    %v141 = vunpack.c.l.b16 %v79
    %v142 = vunpack.c.l.b16 %v80
    %v143 = vpack.c.b16 %v128, %v127
    %v144 = vpack.c.b16 %v130, %v129
    %v145 = vpack.c.b16 %v132, %v131
    %v146 = vpack.c.b16 %v134, %v133
    %v147 = vpack.c.b16 %v136, %v135
    %v148 = vpack.c.b16 %v138, %v137
    %v149 = vpack.c.b16 %v140, %v139
    %v150 = vpack.c.b16 %v142, %v141
    %v159 = vunpack.c.l.b16 %v81
    %v160 = vunpack.c.h.b16 %v81
    %v161 = vunpack.c.l.b16 %v82
    %v162 = vunpack.c.h.b16 %v82
    %v163 = vunpack.c.l.b16 %v83
    %v164 = vunpack.c.h.b16 %v83
    %v165 = vunpack.c.l.b16 %v84
    %v166 = vunpack.c.h.b16 %v84
    %v167 = vunpack.c.l.b16 %v85
    %v168 = vunpack.c.h.b16 %v85
    %v169 = vunpack.c.l.b16 %v86
    %v170 = vunpack.c.h.b16 %v86
    %v171 = vunpack.c.l.b16 %v87
    %v172 = vunpack.c.h.b16 %v87
    %v173 = vunpack.c.l.b16 %v88
    %v174 = vunpack.c.h.b16 %v88
    %v175 = vpack.c.b16 %v163, %v159
    %v176 = vpack.c.b16 %v164, %v160
    %v177 = vpack.c.b16 %v165, %v161
    %v178 = vpack.c.b16 %v166, %v162
    %v179 = vpack.c.b16 %v171, %v167
    %v180 = vpack.c.b16 %v172, %v168
    %v181 = vpack.c.b16 %v173, %v169
    %v182 = vpack.c.b16 %v174, %v170
    %vm191 = vcmask 261120
    %v193 = vsel %vm191, %v143, 0
    %v196 = vsel %vm191, %v144, 0
    %v199 = vsel %vm191, %v145, 0
    %v202 = vsel %vm191, %v146, 0
    %v205 = vsel %vm191, %v147, 0
    %v208 = vsel %vm191, %v148, 0
    %v211 = vsel %vm191, %v149, 0
    %v214 = vsel %vm191, %v150, 0
    %216 = vmatprep.subr.bf16.mxu0 0
    %217 = vmatpush1.bf16.msra.mxu0 0
    %218 = vmatprep.subr.bf16.mxu0 0
    %219 = vmatpush1.bf16.msra.mxu0 0
    %220 = vmatprep.subr.bf16.mxu0 0
    %221 = vmatpush1.bf16.msra.mxu0 0
    %222 = vmatprep.subr.bf16.mxu0 0
    %223 = vmatpush1.bf16.msra.mxu0 0
    %224 = vmatprep.subr.bf16.mxu0 0
    %225 = vmatpush1.bf16.msra.mxu0 0
    %226 = vmatprep.subr.bf16.mxu0 0
    %227 = vmatpush1.bf16.msra.mxu0 0
    %228 = vmatprep.subr.bf16.mxu0 %v180
    %229 = vmatpush1.bf16.msra.mxu0 %v179
    %230 = vmatprep.subr.bf16.mxu0 %v176
    %231 = vmatpush1.bf16.msra.mxu0 %v175
    %232 = vmatprep.subr.bf16.mxu0 0
    %233 = vmatpush2.bf16.msra.mxu0 0
    %234 = vmatprep.subr.bf16.mxu0 0
    %235 = vmatpush2.bf16.msra.mxu0 0
    %236 = vmatprep.subr.bf16.mxu0 0
    %237 = vmatpush2.bf16.msra.mxu0 0
    %238 = vmatprep.subr.bf16.mxu0 0
    %239 = vmatpush2.bf16.msra.mxu0 0
    %240 = vmatprep.subr.bf16.mxu0 0
    %241 = vmatpush2.bf16.msra.mxu0 0
    %242 = vmatprep.subr.bf16.mxu0 0
    %243 = vmatpush2.bf16.msra.mxu0 0
    %244 = vmatprep.subr.bf16.mxu0 0
    %245 = vmatpush2.bf16.msra.mxu0 0
    %246 = vmatprep.subr.bf16.mxu0 0
    %247 = vmatpush2.bf16.msra.mxu0 0
    %248 = vmatprep.mubr.bf16.mxu0 0
    %249 = vmatmul.mubr.bf16.gmra.mxu0 %v193
    %v250 = vpop.f32.mrf.mxu0
    %v251 = vadd.f32 %v94, %v250
    %v252 = vpop.f32.mrf.mxu0
    %v253 = vadd.f32 %v98, %v252
    %v254 = vpop.f32.mrf.mxu0
    %v255 = vadd.f32 %v94, %v254
    %v256 = vpop.f32.mrf.mxu0
    %v257 = vadd.f32 %v98, %v256
    %258 = vmatprep.mubr.bf16.mxu0 0
    %259 = vmatmul.mubr.bf16.gmra.mxu0 %v196
    %v260 = vpop.f32.mrf.mxu0
    %v261 = vadd.f32 %v94, %v260
    %v262 = vpop.f32.mrf.mxu0
    %v263 = vadd.f32 %v98, %v262
    %v264 = vpop.f32.mrf.mxu0
    %v265 = vadd.f32 %v94, %v264
    %v266 = vpop.f32.mrf.mxu0
    %v267 = vadd.f32 %v98, %v266
    %268 = vmatprep.mubr.bf16.mxu0 0
    %269 = vmatmul.mubr.bf16.gmra.mxu0 %v199
    %v270 = vpop.f32.mrf.mxu0
    %v271 = vadd.f32 %v94, %v270
    %v272 = vpop.f32.mrf.mxu0
    %v273 = vadd.f32 %v98, %v272
    %v274 = vpop.f32.mrf.mxu0
    %v275 = vadd.f32 %v94, %v274
    %v276 = vpop.f32.mrf.mxu0
    %v277 = vadd.f32 %v98, %v276
    %278 = vmatprep.mubr.bf16.mxu0 0
    %279 = vmatmul.mubr.bf16.gmra.mxu0 %v202
    %v280 = vpop.f32.mrf.mxu0
    %v281 = vadd.f32 %v94, %v280
    %v282 = vpop.f32.mrf.mxu0
    %v283 = vadd.f32 %v98, %v282
    %v284 = vpop.f32.mrf.mxu0
    %v285 = vadd.f32 %v94, %v284
    %v286 = vpop.f32.mrf.mxu0
    %v287 = vadd.f32 %v98, %v286
    %288 = vmatprep.mubr.bf16.mxu0 0
    %289 = vmatmul.mubr.bf16.gmra.mxu0 %v205
    %v290 = vpop.f32.mrf.mxu0
    %v291 = vadd.f32 %v94, %v290
    %v292 = vpop.f32.mrf.mxu0
    %v293 = vadd.f32 %v98, %v292
    %v294 = vpop.f32.mrf.mxu0
    %v295 = vadd.f32 %v94, %v294
    %v296 = vpop.f32.mrf.mxu0
    %v297 = vadd.f32 %v98, %v296
    %298 = vmatprep.mubr.bf16.mxu0 0
    %299 = vmatmul.mubr.bf16.gmra.mxu0 %v208
    %v300 = vpop.f32.mrf.mxu0
    %v301 = vadd.f32 %v94, %v300
    %v302 = vpop.f32.mrf.mxu0
    %v303 = vadd.f32 %v98, %v302
    %v304 = vpop.f32.mrf.mxu0
    %v305 = vadd.f32 %v94, %v304
    %v306 = vpop.f32.mrf.mxu0
    %v307 = vadd.f32 %v98, %v306
    %308 = vmatprep.mubr.bf16.mxu0 0
    %309 = vmatmul.mubr.bf16.gmra.mxu0 %v211
    %v310 = vpop.f32.mrf.mxu0
    %v311 = vadd.f32 %v94, %v310
    %v312 = vpop.f32.mrf.mxu0
    %v313 = vadd.f32 %v98, %v312
    %v314 = vpop.f32.mrf.mxu0
    %v315 = vadd.f32 %v94, %v314
    %v316 = vpop.f32.mrf.mxu0
    %v317 = vadd.f32 %v98, %v316
    %318 = vmatprep.mubr.bf16.mxu0 0
    %319 = vmatmul.mubr.bf16.gmra.mxu0 %v214
    %v320 = vpop.f32.mrf.mxu0
    %v321 = vadd.f32 %v94, %v320
    %v322 = vpop.f32.mrf.mxu0
    %v323 = vadd.f32 %v98, %v322
    %v324 = vpop.f32.mrf.mxu0
    %v325 = vadd.f32 %v94, %v324
    %v326 = vpop.f32.mrf.mxu0
    %v327 = vadd.f32 %v98, %v326
    %328 = vdwg.mxu0
    %329 = vmatprep.subr.bf16.mxu0 0
    %330 = vmatpush1.bf16.msra.mxu0 0
    %331 = vmatprep.subr.bf16.mxu0 0
    %332 = vmatpush1.bf16.msra.mxu0 0
    %333 = vmatprep.subr.bf16.mxu0 0
    %334 = vmatpush1.bf16.msra.mxu0 0
    %335 = vmatprep.subr.bf16.mxu0 0
    %336 = vmatpush1.bf16.msra.mxu0 0
    %337 = vmatprep.subr.bf16.mxu0 0
    %338 = vmatpush1.bf16.msra.mxu0 0
    %339 = vmatprep.subr.bf16.mxu0 0
    %340 = vmatpush1.bf16.msra.mxu0 0
    %341 = vmatprep.subr.bf16.mxu0 %v182
    %342 = vmatpush1.bf16.msra.mxu0 %v181
    %343 = vmatprep.subr.bf16.mxu0 %v178
    %344 = vmatpush1.bf16.msra.mxu0 %v177
    %345 = vmatprep.subr.bf16.mxu0 0
    %346 = vmatpush2.bf16.msra.mxu0 0
    %347 = vmatprep.subr.bf16.mxu0 0
    %348 = vmatpush2.bf16.msra.mxu0 0
    %349 = vmatprep.subr.bf16.mxu0 0
    %350 = vmatpush2.bf16.msra.mxu0 0
    %351 = vmatprep.subr.bf16.mxu0 0
    %352 = vmatpush2.bf16.msra.mxu0 0
    %353 = vmatprep.subr.bf16.mxu0 0
    %354 = vmatpush2.bf16.msra.mxu0 0
    %355 = vmatprep.subr.bf16.mxu0 0
    %356 = vmatpush2.bf16.msra.mxu0 0
    %357 = vmatprep.subr.bf16.mxu0 0
    %358 = vmatpush2.bf16.msra.mxu0 0
    %359 = vmatprep.subr.bf16.mxu0 0
    %360 = vmatpush2.bf16.msra.mxu0 0
    %361 = vmatprep.mubr.bf16.mxu0 0
    %362 = vmatmul.mubr.bf16.gmra.mxu0 %v193
    %v363 = vpop.f32.mrf.mxu0
    %v364 = vadd.f32 %v102, %v363
    %v365 = vpop.f32.mrf.mxu0
    %v366 = vadd.f32 %v106, %v365
    %v367 = vpop.f32.mrf.mxu0
    %v368 = vadd.f32 %v102, %v367
    %v369 = vpop.f32.mrf.mxu0
    %v370 = vadd.f32 %v106, %v369
    %371 = vmatprep.mubr.bf16.mxu0 0
    %372 = vmatmul.mubr.bf16.gmra.mxu0 %v196
    %v373 = vpop.f32.mrf.mxu0
    %v374 = vadd.f32 %v102, %v373
    %v375 = vpop.f32.mrf.mxu0
    %v376 = vadd.f32 %v106, %v375
    %v377 = vpop.f32.mrf.mxu0
    %v378 = vadd.f32 %v102, %v377
    %v379 = vpop.f32.mrf.mxu0
    %v380 = vadd.f32 %v106, %v379
    %381 = vmatprep.mubr.bf16.mxu0 0
    %382 = vmatmul.mubr.bf16.gmra.mxu0 %v199
    %v383 = vpop.f32.mrf.mxu0
    %v384 = vadd.f32 %v102, %v383
    %v385 = vpop.f32.mrf.mxu0
    %v386 = vadd.f32 %v106, %v385
    %v387 = vpop.f32.mrf.mxu0
    %v388 = vadd.f32 %v102, %v387
    %v389 = vpop.f32.mrf.mxu0
    %v390 = vadd.f32 %v106, %v389
    %391 = vmatprep.mubr.bf16.mxu0 0
    %392 = vmatmul.mubr.bf16.gmra.mxu0 %v202
    %v393 = vpop.f32.mrf.mxu0
    %v394 = vadd.f32 %v102, %v393
    %v395 = vpop.f32.mrf.mxu0
    %v396 = vadd.f32 %v106, %v395
    %v397 = vpop.f32.mrf.mxu0
    %v398 = vadd.f32 %v102, %v397
    %v399 = vpop.f32.mrf.mxu0
    %v400 = vadd.f32 %v106, %v399
    %401 = vmatprep.mubr.bf16.mxu0 0
    %402 = vmatmul.mubr.bf16.gmra.mxu0 %v205
    %v403 = vpop.f32.mrf.mxu0
    %v404 = vadd.f32 %v102, %v403
    %v405 = vpop.f32.mrf.mxu0
    %v406 = vadd.f32 %v106, %v405
    %v407 = vpop.f32.mrf.mxu0
    %v408 = vadd.f32 %v102, %v407
    %v409 = vpop.f32.mrf.mxu0
    %v410 = vadd.f32 %v106, %v409
    %411 = vmatprep.mubr.bf16.mxu0 0
    %412 = vmatmul.mubr.bf16.gmra.mxu0 %v208
    %v413 = vpop.f32.mrf.mxu0
    %v414 = vadd.f32 %v102, %v413
    %v415 = vpop.f32.mrf.mxu0
    %v416 = vadd.f32 %v106, %v415
    %v417 = vpop.f32.mrf.mxu0
    %v418 = vadd.f32 %v102, %v417
    %v419 = vpop.f32.mrf.mxu0
    %v420 = vadd.f32 %v106, %v419
    %421 = vmatprep.mubr.bf16.mxu0 0
    %422 = vmatmul.mubr.bf16.gmra.mxu0 %v211
    %v423 = vpop.f32.mrf.mxu0
    %v424 = vadd.f32 %v102, %v423
    %v425 = vpop.f32.mrf.mxu0
    %v426 = vadd.f32 %v106, %v425
    %v427 = vpop.f32.mrf.mxu0
    %v428 = vadd.f32 %v102, %v427
    %v429 = vpop.f32.mrf.mxu0
    %v430 = vadd.f32 %v106, %v429
    %431 = vmatprep.mubr.bf16.mxu0 0
    %432 = vmatmul.mubr.bf16.gmra.mxu0 %v214
    %v433 = vpop.f32.mrf.mxu0
    %v434 = vadd.f32 %v102, %v433
    %v435 = vpop.f32.mrf.mxu0
    %v436 = vadd.f32 %v106, %v435
    %v437 = vpop.f32.mrf.mxu0
    %v438 = vadd.f32 %v102, %v437
    %v439 = vpop.f32.mrf.mxu0
    %v440 = vadd.f32 %v106, %v439
    %441 = vdwg.mxu0
    %v442 = vpack.c.bf16 %v255, %v251
    %v443 = vpack.c.bf16 %v257, %v253
    %v444 = vpack.c.bf16 %v368, %v364
    %v445 = vpack.c.bf16 %v370, %v366
    %v446 = vpack.c.bf16 %v265, %v261
    %v447 = vpack.c.bf16 %v267, %v263
    %v448 = vpack.c.bf16 %v378, %v374
    %v449 = vpack.c.bf16 %v380, %v376
    %v450 = vpack.c.bf16 %v275, %v271
    %v451 = vpack.c.bf16 %v277, %v273
    %v452 = vpack.c.bf16 %v388, %v384
    %v453 = vpack.c.bf16 %v390, %v386
    %v454 = vpack.c.bf16 %v285, %v281
    %v455 = vpack.c.bf16 %v287, %v283
    %v456 = vpack.c.bf16 %v398, %v394
    %v457 = vpack.c.bf16 %v400, %v396
    %v458 = vpack.c.bf16 %v295, %v291
    %v459 = vpack.c.bf16 %v297, %v293
    %v460 = vpack.c.bf16 %v408, %v404
    %v461 = vpack.c.bf16 %v410, %v406
    %v462 = vpack.c.bf16 %v305, %v301
    %v463 = vpack.c.bf16 %v307, %v303
    %v464 = vpack.c.bf16 %v418, %v414
    %v465 = vpack.c.bf16 %v420, %v416
    %v466 = vpack.c.bf16 %v315, %v311
    %v467 = vpack.c.bf16 %v317, %v313
    %v468 = vpack.c.bf16 %v428, %v424
    %v469 = vpack.c.bf16 %v430, %v426
    %v470 = vpack.c.bf16 %v325, %v321
    %v471 = vpack.c.bf16 %v327, %v323
    %v472 = vpack.c.bf16 %v438, %v434
    %v473 = vpack.c.bf16 %v440, %v436
    %vm474 = vcmp.gt.bf16.partialorder %v442, 0
    %vm475 = vcmp.gt.bf16.partialorder %v443, 0
    %vm476 = vcmp.gt.bf16.partialorder %v444, 0
    %vm477 = vcmp.gt.bf16.partialorder %v445, 0
    %vm478 = vcmp.gt.bf16.partialorder %v446, 0
    %vm479 = vcmp.gt.bf16.partialorder %v447, 0
    %vm480 = vcmp.gt.bf16.partialorder %v448, 0
    %vm481 = vcmp.gt.bf16.partialorder %v449, 0
    %vm482 = vcmp.gt.bf16.partialorder %v450, 0
    %vm483 = vcmp.gt.bf16.partialorder %v451, 0
    %vm484 = vcmp.gt.bf16.partialorder %v452, 0
    %vm485 = vcmp.gt.bf16.partialorder %v453, 0
    %vm486 = vcmp.gt.bf16.partialorder %v454, 0
    %vm487 = vcmp.gt.bf16.partialorder %v455, 0
    %vm488 = vcmp.gt.bf16.partialorder %v456, 0
    %vm489 = vcmp.gt.bf16.partialorder %v457, 0
    %vm490 = vcmp.gt.bf16.partialorder %v458, 0
    %vm491 = vcmp.gt.bf16.partialorder %v459, 0
    %vm492 = vcmp.gt.bf16.partialorder %v460, 0
    %vm493 = vcmp.gt.bf16.partialorder %v461, 0
    %vm494 = vcmp.gt.bf16.partialorder %v462, 0
    %vm495 = vcmp.gt.bf16.partialorder %v463, 0
    %vm496 = vcmp.gt.bf16.partialorder %v464, 0
    %vm497 = vcmp.gt.bf16.partialorder %v465, 0
    %vm498 = vcmp.gt.bf16.partialorder %v466, 0
    %vm499 = vcmp.gt.bf16.partialorder %v467, 0
    %vm500 = vcmp.gt.bf16.partialorder %v468, 0
    %vm501 = vcmp.gt.bf16.partialorder %v469, 0
    %vm502 = vcmp.gt.bf16.partialorder %v470, 0
    %vm503 = vcmp.gt.bf16.partialorder %v471, 0
    %vm504 = vcmp.gt.bf16.partialorder %v472, 0
    %vm505 = vcmp.gt.bf16.partialorder %v473, 0
    %v507 = vmul.bf16 %v442, 1069105081
    %v508 = vpow.bf16.pop %v507
    %v510 = vmul.bf16 %v443, 1069105081
    %v511 = vpow.bf16.pop %v510
    %v513 = vmul.bf16 %v444, 1069105081
    %v514 = vpow.bf16.pop %v513
    %v516 = vmul.bf16 %v445, 1069105081
    %v517 = vpow.bf16.pop %v516
    %v519 = vmul.bf16 %v446, 1069105081
    %v520 = vpow.bf16.pop %v519
    %v522 = vmul.bf16 %v447, 1069105081
    %v523 = vpow.bf16.pop %v522
    %v525 = vmul.bf16 %v448, 1069105081
    %v526 = vpow.bf16.pop %v525
    %v528 = vmul.bf16 %v449, 1069105081
    %v529 = vpow.bf16.pop %v528
    %v531 = vmul.bf16 %v450, 1069105081
    %v532 = vpow.bf16.pop %v531
    %v534 = vmul.bf16 %v451, 1069105081
    %v535 = vpow.bf16.pop %v534
    %v537 = vmul.bf16 %v452, 1069105081
    %v538 = vpow.bf16.pop %v537
    %v540 = vmul.bf16 %v453, 1069105081
    %v541 = vpow.bf16.pop %v540
    %v543 = vmul.bf16 %v454, 1069105081
    %v544 = vpow.bf16.pop %v543
    %v546 = vmul.bf16 %v455, 1069105081
    %v547 = vpow.bf16.pop %v546
    %v549 = vmul.bf16 %v456, 1069105081
    %v550 = vpow.bf16.pop %v549
    %v552 = vmul.bf16 %v457, 1069105081
    %v553 = vpow.bf16.pop %v552
    %v555 = vmul.bf16 %v458, 1069105081
    %v556 = vpow.bf16.pop %v555
    %v558 = vmul.bf16 %v459, 1069105081
    %v559 = vpow.bf16.pop %v558
    %v561 = vmul.bf16 %v460, 1069105081
    %v562 = vpow.bf16.pop %v561
    %v564 = vmul.bf16 %v461, 1069105081
    %v565 = vpow.bf16.pop %v564
    %v567 = vmul.bf16 %v462, 1069105081
    %v568 = vpow.bf16.pop %v567
    %v570 = vmul.bf16 %v463, 1069105081
    %v571 = vpow.bf16.pop %v570
    %v573 = vmul.bf16 %v464, 1069105081
    %v574 = vpow.bf16.pop %v573
    %v576 = vmul.bf16 %v465, 1069105081
    %v577 = vpow.bf16.pop %v576
    %v579 = vmul.bf16 %v466, 1069105081
    %v580 = vpow.bf16.pop %v579
    %v582 = vmul.bf16 %v467, 1069105081
    %v583 = vpow.bf16.pop %v582
    %v585 = vmul.bf16 %v468, 1069105081
    %v586 = vpow.bf16.pop %v585
    %v588 = vmul.bf16 %v469, 1069105081
    %v589 = vpow.bf16.pop %v588
    %v591 = vmul.bf16 %v470, 1069105081
    %v592 = vpow.bf16.pop %v591
    %v594 = vmul.bf16 %v471, 1069105081
    %v595 = vpow.bf16.pop %v594
    %v597 = vmul.bf16 %v472, 1069105081
    %v598 = vpow.bf16.pop %v597
    %v600 = vmul.bf16 %v473, 1069105081
    %v601 = vpow.bf16.pop %v600
    %v602 = vsub.bf16 %v508, 1065369472
    %v603 = vsub.bf16 %v511, 1065369472
    %v604 = vsub.bf16 %v514, 1065369472
    %v605 = vsub.bf16 %v517, 1065369472
    %v606 = vsub.bf16 %v520, 1065369472
    %v607 = vsub.bf16 %v523, 1065369472
    %v608 = vsub.bf16 %v526, 1065369472
    %v609 = vsub.bf16 %v529, 1065369472
    %v610 = vsub.bf16 %v532, 1065369472
    %v611 = vsub.bf16 %v535, 1065369472
    %v612 = vsub.bf16 %v538, 1065369472
    %v613 = vsub.bf16 %v541, 1065369472
    %v614 = vsub.bf16 %v544, 1065369472
    %v615 = vsub.bf16 %v547, 1065369472
    %v616 = vsub.bf16 %v550, 1065369472
    %v617 = vsub.bf16 %v553, 1065369472
    %v618 = vsub.bf16 %v556, 1065369472
    %v619 = vsub.bf16 %v559, 1065369472
    %v620 = vsub.bf16 %v562, 1065369472
    %v621 = vsub.bf16 %v565, 1065369472
    %v622 = vsub.bf16 %v568, 1065369472
    %v623 = vsub.bf16 %v571, 1065369472
    %v624 = vsub.bf16 %v574, 1065369472
    %v625 = vsub.bf16 %v577, 1065369472
    %v626 = vsub.bf16 %v580, 1065369472
    %v627 = vsub.bf16 %v583, 1065369472
    %v628 = vsub.bf16 %v586, 1065369472
    %v629 = vsub.bf16 %v589, 1065369472
    %v630 = vsub.bf16 %v592, 1065369472
    %v631 = vsub.bf16 %v595, 1065369472
    %v632 = vsub.bf16 %v598, 1065369472
    %v633 = vsub.bf16 %v601, 1065369472
    %v634 = vsel %vm474, %v442, %v602
    %v635 = vsel %vm475, %v443, %v603
    %v636 = vsel %vm476, %v444, %v604
    %v637 = vsel %vm477, %v445, %v605
    %v638 = vsel %vm478, %v446, %v606
    %v639 = vsel %vm479, %v447, %v607
    %v640 = vsel %vm480, %v448, %v608
    %v641 = vsel %vm481, %v449, %v609
    %v642 = vsel %vm482, %v450, %v610
    %v643 = vsel %vm483, %v451, %v611
    %v644 = vsel %vm484, %v452, %v612
    %v645 = vsel %vm485, %v453, %v613
    %v646 = vsel %vm486, %v454, %v614
    %v647 = vsel %vm487, %v455, %v615
    %v648 = vsel %vm488, %v456, %v616
    %v649 = vsel %vm489, %v457, %v617
    %v650 = vsel %vm490, %v458, %v618
    %v651 = vsel %vm491, %v459, %v619
    %v652 = vsel %vm492, %v460, %v620
    %v653 = vsel %vm493, %v461, %v621
    %v654 = vsel %vm494, %v462, %v622
    %v655 = vsel %vm495, %v463, %v623
    %v656 = vsel %vm496, %v464, %v624
    %v657 = vsel %vm497, %v465, %v625
    %v658 = vsel %vm498, %v466, %v626
    %v659 = vsel %vm499, %v467, %v627
    %v660 = vsel %vm500, %v468, %v628
    %v661 = vsel %vm501, %v469, %v629
    %v662 = vsel %vm502, %v470, %v630
    %v663 = vsel %vm503, %v471, %v631
    %v664 = vsel %vm504, %v472, %v632
    %v665 = vsel %vm505, %v473, %v633
    %v666 = vld [vmem:[#allocation3] sm:$0xff]
    %v667 = vld [vmem:[#allocation3 + $0x8] sm:$0xff]
    %v668 = vld [vmem:[#allocation3 + $0x10] sm:$0xff]
    %v669 = vld [vmem:[#allocation3 + $0x18] sm:$0xff]
    %v670 = vld [vmem:[#allocation3 + $0x20] sm:$0xff]
    %v671 = vld [vmem:[#allocation3 + $0x28] sm:$0xff]
    %v672 = vld [vmem:[#allocation3 + $0x30] sm:$0xff]
    %v673 = vld [vmem:[#allocation3 + $0x38] sm:$0xff]
    %v674 = vld [vmem:[#allocation3 + $0x40] sm:$0xff]
    %v675 = vld [vmem:[#allocation3 + $0x48] sm:$0xff]
    %v676 = vld [vmem:[#allocation3 + $0x50] sm:$0xff]
    %v677 = vld [vmem:[#allocation3 + $0x58] sm:$0xff]
    %v678 = vld [vmem:[#allocation3 + $0x60] sm:$0xff]
    %v679 = vld [vmem:[#allocation3 + $0x68] sm:$0xff]
    %v680 = vld [vmem:[#allocation3 + $0x70] sm:$0xff]
    %v681 = vld [vmem:[#allocation3 + $0x78] sm:$0xff]
    %v682 = vld [vmem:[#allocation3 + $0x80] sm:$0xff]
    %v683 = vld [vmem:[#allocation3 + $0x88] sm:$0xff]
    %v684 = vld [vmem:[#allocation3 + $0x90] sm:$0xff]
    %v685 = vld [vmem:[#allocation3 + $0x98] sm:$0xff]
    %v686 = vld [vmem:[#allocation3 + $0xa0] sm:$0xff]
    %v687 = vld [vmem:[#allocation3 + $0xa8] sm:$0xff]
    %v688 = vld [vmem:[#allocation3 + $0xb0] sm:$0xff]
    %v689 = vld [vmem:[#allocation3 + $0xb8] sm:$0xff]
    %v690 = vld [vmem:[#allocation3 + $0xc0] sm:$0xff]
    %v691 = vld [vmem:[#allocation3 + $0xc8] sm:$0xff]
    %v692 = vld [vmem:[#allocation3 + $0xd0] sm:$0xff]
    %v693 = vld [vmem:[#allocation3 + $0xd8] sm:$0xff]
    %v694 = vld [vmem:[#allocation3 + $0xe0] sm:$0xff]
    %v695 = vld [vmem:[#allocation3 + $0xe8] sm:$0xff]
    %v696 = vld [vmem:[#allocation3 + $0xf0] sm:$0xff]
    %v697 = vld [vmem:[#allocation3 + $0xf8] sm:$0xff]
    %v698 = vld [vmem:[#allocation3 + $0x100] sm:$0xff]
    %v699 = vld [vmem:[#allocation3 + $0x108] sm:$0xff]
    %v700 = vld [vmem:[#allocation3 + $0x110] sm:$0xff]
    %v701 = vld [vmem:[#allocation3 + $0x118] sm:$0xff]
    %v702 = vld [vmem:[#allocation3 + $0x120] sm:$0xff]
    %v703 = vld [vmem:[#allocation3 + $0x128] sm:$0xff]
    %v704 = vld [vmem:[#allocation3 + $0x130] sm:$0xff]
    %v705 = vld [vmem:[#allocation3 + $0x138] sm:$0xff]
    %v706 = vld [vmem:[#allocation3 + $0x140] sm:$0xff]
    %v707 = vld [vmem:[#allocation3 + $0x148] sm:$0xff]
    %v708 = vld [vmem:[#allocation3 + $0x150] sm:$0xff]
    %v709 = vld [vmem:[#allocation3 + $0x158] sm:$0xff]
    %v710 = vld [vmem:[#allocation3 + $0x160] sm:$0xff]
    %v711 = vld [vmem:[#allocation3 + $0x168] sm:$0xff]
    %v712 = vld [vmem:[#allocation3 + $0x170] sm:$0xff]
    %v713 = vld [vmem:[#allocation3 + $0x178] sm:$0xff]
    %v714 = vld [vmem:[#allocation3 + $0x180] sm:$0xff]
    %v715 = vld [vmem:[#allocation3 + $0x188] sm:$0xff]
    %v716 = vld [vmem:[#allocation3 + $0x190] sm:$0xff]
    %v717 = vld [vmem:[#allocation3 + $0x198] sm:$0xff]
    %v718 = vld [vmem:[#allocation3 + $0x1a0] sm:$0xff]
    %v719 = vld [vmem:[#allocation3 + $0x1a8] sm:$0xff]
    %v720 = vld [vmem:[#allocation3 + $0x1b0] sm:$0xff]
    %v721 = vld [vmem:[#allocation3 + $0x1b8] sm:$0xff]
    %v722 = vld [vmem:[#allocation3 + $0x1c0] sm:$0xff]
    %v723 = vld [vmem:[#allocation3 + $0x1c8] sm:$0xff]
    %v724 = vld [vmem:[#allocation3 + $0x1d0] sm:$0xff]
    %v725 = vld [vmem:[#allocation3 + $0x1d8] sm:$0xff]
    %v726 = vld [vmem:[#allocation3 + $0x1e0] sm:$0xff]
    %v727 = vld [vmem:[#allocation3 + $0x1e8] sm:$0xff]
    %v728 = vld [vmem:[#allocation3 + $0x1f0] sm:$0xff]
    %v729 = vld [vmem:[#allocation3 + $0x1f8] sm:$0xff]
    %v730 = vld [vmem:[%s4] sm:$0x3]
    %v732 = vlaneseq
    %v733 = vshrl.u32 %v732, 7
    %v734 = vsub.s32 0, %v733
    %v735 = vrot.slane %v730, %v734
    %v736 = vlaneseq
    %v737 = vshrl.u32 %v736, 7
    %v738 = vsub.s32 1, %v737
    %v739 = vrot.slane %v730, %v738
    %v806 = vunpack.c.l.b16 %v666
    %v807 = vunpack.c.h.b16 %v666
    %v808 = vunpack.c.l.b16 %v667
    %v809 = vunpack.c.h.b16 %v667
    %v810 = vunpack.c.l.b16 %v668
    %v811 = vunpack.c.h.b16 %v668
    %v812 = vunpack.c.l.b16 %v669
    %v813 = vunpack.c.h.b16 %v669
    %v814 = vunpack.c.l.b16 %v670
    %v815 = vunpack.c.h.b16 %v670
    %v816 = vunpack.c.l.b16 %v671
    %v817 = vunpack.c.h.b16 %v671
    %v818 = vunpack.c.l.b16 %v672
    %v819 = vunpack.c.h.b16 %v672
    %v820 = vunpack.c.l.b16 %v673
    %v821 = vunpack.c.h.b16 %v673
    %v822 = vunpack.c.l.b16 %v674
    %v823 = vunpack.c.h.b16 %v674
    %v824 = vunpack.c.l.b16 %v675
    %v825 = vunpack.c.h.b16 %v675
    %v826 = vunpack.c.l.b16 %v676
    %v827 = vunpack.c.h.b16 %v676
    %v828 = vunpack.c.l.b16 %v677
    %v829 = vunpack.c.h.b16 %v677
    %v830 = vunpack.c.l.b16 %v678
    %v831 = vunpack.c.h.b16 %v678
    %v832 = vunpack.c.l.b16 %v679
    %v833 = vunpack.c.h.b16 %v679
    %v834 = vunpack.c.l.b16 %v680
    %v835 = vunpack.c.h.b16 %v680
    %v836 = vunpack.c.l.b16 %v681
    %v837 = vunpack.c.h.b16 %v681
    %v838 = vunpack.c.l.b16 %v682
    %v839 = vunpack.c.h.b16 %v682
    %v840 = vunpack.c.l.b16 %v683
    %v841 = vunpack.c.h.b16 %v683
    %v842 = vunpack.c.l.b16 %v684
    %v843 = vunpack.c.h.b16 %v684
    %v844 = vunpack.c.l.b16 %v685
    %v845 = vunpack.c.h.b16 %v685
    %v846 = vunpack.c.l.b16 %v686
    %v847 = vunpack.c.h.b16 %v686
    %v848 = vunpack.c.l.b16 %v687
    %v849 = vunpack.c.h.b16 %v687
    %v850 = vunpack.c.l.b16 %v688
    %v851 = vunpack.c.h.b16 %v688
    %v852 = vunpack.c.l.b16 %v689
    %v853 = vunpack.c.h.b16 %v689
    %v854 = vunpack.c.l.b16 %v690
    %v855 = vunpack.c.h.b16 %v690
    %v856 = vunpack.c.l.b16 %v691
    %v857 = vunpack.c.h.b16 %v691
    %v858 = vunpack.c.l.b16 %v692
    %v859 = vunpack.c.h.b16 %v692
    %v860 = vunpack.c.l.b16 %v693
    %v861 = vunpack.c.h.b16 %v693
    %v862 = vunpack.c.l.b16 %v694
    %v863 = vunpack.c.h.b16 %v694
    %v864 = vunpack.c.l.b16 %v695
    %v865 = vunpack.c.h.b16 %v695
    %v866 = vunpack.c.l.b16 %v696
    %v867 = vunpack.c.h.b16 %v696
    %v868 = vunpack.c.l.b16 %v697
    %v869 = vunpack.c.h.b16 %v697
    %v870 = vunpack.c.l.b16 %v698
    %v871 = vunpack.c.h.b16 %v698
    %v872 = vunpack.c.l.b16 %v699
    %v873 = vunpack.c.h.b16 %v699
    %v874 = vunpack.c.l.b16 %v700
    %v875 = vunpack.c.h.b16 %v700
    %v876 = vunpack.c.l.b16 %v701
    %v877 = vunpack.c.h.b16 %v701
    %v878 = vunpack.c.l.b16 %v702
    %v879 = vunpack.c.h.b16 %v702
    %v880 = vunpack.c.l.b16 %v703
    %v881 = vunpack.c.h.b16 %v703
    %v882 = vunpack.c.l.b16 %v704
    %v883 = vunpack.c.h.b16 %v704
    %v884 = vunpack.c.l.b16 %v705
    %v885 = vunpack.c.h.b16 %v705
    %v886 = vunpack.c.l.b16 %v706
    %v887 = vunpack.c.h.b16 %v706
    %v888 = vunpack.c.l.b16 %v707
    %v889 = vunpack.c.h.b16 %v707
    %v890 = vunpack.c.l.b16 %v708
    %v891 = vunpack.c.h.b16 %v708
    %v892 = vunpack.c.l.b16 %v709
    %v893 = vunpack.c.h.b16 %v709
    %v894 = vunpack.c.l.b16 %v710
    %v895 = vunpack.c.h.b16 %v710
    %v896 = vunpack.c.l.b16 %v711
    %v897 = vunpack.c.h.b16 %v711
    %v898 = vunpack.c.l.b16 %v712
    %v899 = vunpack.c.h.b16 %v712
    %v900 = vunpack.c.l.b16 %v713
    %v901 = vunpack.c.h.b16 %v713
    %v902 = vunpack.c.l.b16 %v714
    %v903 = vunpack.c.h.b16 %v714
    %v904 = vunpack.c.l.b16 %v715
    %v905 = vunpack.c.h.b16 %v715
    %v906 = vunpack.c.l.b16 %v716
    %v907 = vunpack.c.h.b16 %v716
    %v908 = vunpack.c.l.b16 %v717
    %v909 = vunpack.c.h.b16 %v717
    %v910 = vunpack.c.l.b16 %v718
    %v911 = vunpack.c.h.b16 %v718
    %v912 = vunpack.c.l.b16 %v719
    %v913 = vunpack.c.h.b16 %v719
    %v914 = vunpack.c.l.b16 %v720
    %v915 = vunpack.c.h.b16 %v720
    %v916 = vunpack.c.l.b16 %v721
    %v917 = vunpack.c.h.b16 %v721
    %v918 = vunpack.c.l.b16 %v722
    %v919 = vunpack.c.h.b16 %v722
    %v920 = vunpack.c.l.b16 %v723
    %v921 = vunpack.c.h.b16 %v723
    %v922 = vunpack.c.l.b16 %v724
    %v923 = vunpack.c.h.b16 %v724
    %v924 = vunpack.c.l.b16 %v725
    %v925 = vunpack.c.h.b16 %v725
    %v926 = vunpack.c.l.b16 %v726
    %v927 = vunpack.c.h.b16 %v726
    %v928 = vunpack.c.l.b16 %v727
    %v929 = vunpack.c.h.b16 %v727
    %v930 = vunpack.c.l.b16 %v728
    %v931 = vunpack.c.h.b16 %v728
    %v932 = vunpack.c.l.b16 %v729
    %v933 = vunpack.c.h.b16 %v729
    %v934 = vpack.c.b16 %v808, %v806
    %v935 = vpack.c.b16 %v809, %v807
    %v936 = vpack.c.b16 %v812, %v810
    %v937 = vpack.c.b16 %v813, %v811
    %v938 = vpack.c.b16 %v816, %v814
    %v939 = vpack.c.b16 %v817, %v815
    %v940 = vpack.c.b16 %v820, %v818
    %v941 = vpack.c.b16 %v821, %v819
    %v942 = vpack.c.b16 %v824, %v822
    %v943 = vpack.c.b16 %v825, %v823
    %v944 = vpack.c.b16 %v828, %v826
    %v945 = vpack.c.b16 %v829, %v827
    %v946 = vpack.c.b16 %v832, %v830
    %v947 = vpack.c.b16 %v833, %v831
    %v948 = vpack.c.b16 %v836, %v834
    %v949 = vpack.c.b16 %v837, %v835
    %v950 = vpack.c.b16 %v840, %v838
    %v951 = vpack.c.b16 %v841, %v839
    %v952 = vpack.c.b16 %v844, %v842
    %v953 = vpack.c.b16 %v845, %v843
    %v954 = vpack.c.b16 %v848, %v846
    %v955 = vpack.c.b16 %v849, %v847
    %v956 = vpack.c.b16 %v852, %v850
    %v957 = vpack.c.b16 %v853, %v851
    %v958 = vpack.c.b16 %v856, %v854
    %v959 = vpack.c.b16 %v857, %v855
    %v960 = vpack.c.b16 %v860, %v858
    %v961 = vpack.c.b16 %v861, %v859
    %v962 = vpack.c.b16 %v864, %v862
    %v963 = vpack.c.b16 %v865, %v863
    %v964 = vpack.c.b16 %v868, %v866
    %v965 = vpack.c.b16 %v869, %v867
    %v966 = vpack.c.b16 %v872, %v870
    %v967 = vpack.c.b16 %v873, %v871
    %v968 = vpack.c.b16 %v876, %v874
    %v969 = vpack.c.b16 %v877, %v875
    %v970 = vpack.c.b16 %v880, %v878
    %v971 = vpack.c.b16 %v881, %v879
    %v972 = vpack.c.b16 %v884, %v882
    %v973 = vpack.c.b16 %v885, %v883
    %v974 = vpack.c.b16 %v888, %v886
    %v975 = vpack.c.b16 %v889, %v887
    %v976 = vpack.c.b16 %v892, %v890
    %v977 = vpack.c.b16 %v893, %v891
    %v978 = vpack.c.b16 %v896, %v894
    %v979 = vpack.c.b16 %v897, %v895
    %v980 = vpack.c.b16 %v900, %v898
    %v981 = vpack.c.b16 %v901, %v899
    %v982 = vpack.c.b16 %v904, %v902
    %v983 = vpack.c.b16 %v905, %v903
    %v984 = vpack.c.b16 %v908, %v906
    %v985 = vpack.c.b16 %v909, %v907
    %v986 = vpack.c.b16 %v912, %v910
    %v987 = vpack.c.b16 %v913, %v911
    %v988 = vpack.c.b16 %v916, %v914
    %v989 = vpack.c.b16 %v917, %v915
    %v990 = vpack.c.b16 %v920, %v918
    %v991 = vpack.c.b16 %v921, %v919
    %v992 = vpack.c.b16 %v924, %v922
    %v993 = vpack.c.b16 %v925, %v923
    %v994 = vpack.c.b16 %v928, %v926
    %v995 = vpack.c.b16 %v929, %v927
    %v996 = vpack.c.b16 %v932, %v930
    %v997 = vpack.c.b16 %v933, %v931
    %1062 = vmatprep.subr.bf16.mxu0 %v949
    %1063 = vmatpush1.bf16.msra.mxu0 %v948
    %1064 = vmatprep.subr.bf16.mxu0 %v947
    %1065 = vmatpush1.bf16.msra.mxu0 %v946
    %1066 = vmatprep.subr.bf16.mxu0 %v945
    %1067 = vmatpush1.bf16.msra.mxu0 %v944
    %1068 = vmatprep.subr.bf16.mxu0 %v943
    %1069 = vmatpush1.bf16.msra.mxu0 %v942
    %1070 = vmatprep.subr.bf16.mxu0 %v941
    %1071 = vmatpush1.bf16.msra.mxu0 %v940
    %1072 = vmatprep.subr.bf16.mxu0 %v939
    %1073 = vmatpush1.bf16.msra.mxu0 %v938
    %1074 = vmatprep.subr.bf16.mxu0 %v937
    %1075 = vmatpush1.bf16.msra.mxu0 %v936
    %1076 = vmatprep.subr.bf16.mxu0 %v935
    %1077 = vmatpush1.bf16.msra.mxu0 %v934
    %1078 = vmatprep.subr.bf16.mxu0 %v965
    %1079 = vmatpush2.bf16.msra.mxu0 %v964
    %1080 = vmatprep.subr.bf16.mxu0 %v963
    %1081 = vmatpush2.bf16.msra.mxu0 %v962
    %1082 = vmatprep.subr.bf16.mxu0 %v961
    %1083 = vmatpush2.bf16.msra.mxu0 %v960
    %1084 = vmatprep.subr.bf16.mxu0 %v959
    %1085 = vmatpush2.bf16.msra.mxu0 %v958
    %1086 = vmatprep.subr.bf16.mxu0 %v957
    %1087 = vmatpush2.bf16.msra.mxu0 %v956
    %1088 = vmatprep.subr.bf16.mxu0 %v955
    %1089 = vmatpush2.bf16.msra.mxu0 %v954
    %1090 = vmatprep.subr.bf16.mxu0 %v953
    %1091 = vmatpush2.bf16.msra.mxu0 %v952
    %1092 = vmatprep.subr.bf16.mxu0 %v951
    %1093 = vmatpush2.bf16.msra.mxu0 %v950
    %1094 = vmatprep.mubr.bf16.mxu0 %v635
    %1095 = vmatmul.mubr.bf16.gmra.mxu0 %v634
    %v1096 = vpop.f32.mrf.mxu0
    %v1097 = vadd.f32 %v735, %v1096
    %v1098 = vpop.f32.mrf.mxu0
    %v1099 = vadd.f32 %v739, %v1098
    %v1100 = vpop.f32.mrf.mxu0
    %v1101 = vadd.f32 %v735, %v1100
    %v1102 = vpop.f32.mrf.mxu0
    %v1103 = vadd.f32 %v739, %v1102
    %1104 = vmatprep.mubr.bf16.mxu0 %v639
    %1105 = vmatmul.mubr.bf16.gmra.mxu0 %v638
    %v1106 = vpop.f32.mrf.mxu0
    %v1107 = vadd.f32 %v735, %v1106
    %v1108 = vpop.f32.mrf.mxu0
    %v1109 = vadd.f32 %v739, %v1108
    %v1110 = vpop.f32.mrf.mxu0
    %v1111 = vadd.f32 %v735, %v1110
    %v1112 = vpop.f32.mrf.mxu0
    %v1113 = vadd.f32 %v739, %v1112
    %1114 = vmatprep.mubr.bf16.mxu0 %v643
    %1115 = vmatmul.mubr.bf16.gmra.mxu0 %v642
    %v1116 = vpop.f32.mrf.mxu0
    %v1117 = vadd.f32 %v735, %v1116
    %v1118 = vpop.f32.mrf.mxu0
    %v1119 = vadd.f32 %v739, %v1118
    %v1120 = vpop.f32.mrf.mxu0
    %v1121 = vadd.f32 %v735, %v1120
    %v1122 = vpop.f32.mrf.mxu0
    %v1123 = vadd.f32 %v739, %v1122
    %1124 = vmatprep.mubr.bf16.mxu0 %v647
    %1125 = vmatmul.mubr.bf16.gmra.mxu0 %v646
    %v1126 = vpop.f32.mrf.mxu0
    %v1127 = vadd.f32 %v735, %v1126
    %v1128 = vpop.f32.mrf.mxu0
    %v1129 = vadd.f32 %v739, %v1128
    %v1130 = vpop.f32.mrf.mxu0
    %v1131 = vadd.f32 %v735, %v1130
    %v1132 = vpop.f32.mrf.mxu0
    %v1133 = vadd.f32 %v739, %v1132
    %1134 = vmatprep.mubr.bf16.mxu0 %v651
    %1135 = vmatmul.mubr.bf16.gmra.mxu0 %v650
    %v1136 = vpop.f32.mrf.mxu0
    %v1137 = vadd.f32 %v735, %v1136
    %v1138 = vpop.f32.mrf.mxu0
    %v1139 = vadd.f32 %v739, %v1138
    %v1140 = vpop.f32.mrf.mxu0
    %v1141 = vadd.f32 %v735, %v1140
    %v1142 = vpop.f32.mrf.mxu0
    %v1143 = vadd.f32 %v739, %v1142
    %1144 = vmatprep.mubr.bf16.mxu0 %v655
    %1145 = vmatmul.mubr.bf16.gmra.mxu0 %v654
    %v1146 = vpop.f32.mrf.mxu0
    %v1147 = vadd.f32 %v735, %v1146
    %v1148 = vpop.f32.mrf.mxu0
    %v1149 = vadd.f32 %v739, %v1148
    %v1150 = vpop.f32.mrf.mxu0
    %v1151 = vadd.f32 %v735, %v1150
    %v1152 = vpop.f32.mrf.mxu0
    %v1153 = vadd.f32 %v739, %v1152
    %1154 = vmatprep.mubr.bf16.mxu0 %v659
    %1155 = vmatmul.mubr.bf16.gmra.mxu0 %v658
    %v1156 = vpop.f32.mrf.mxu0
    %v1157 = vadd.f32 %v735, %v1156
    %v1158 = vpop.f32.mrf.mxu0
    %v1159 = vadd.f32 %v739, %v1158
    %v1160 = vpop.f32.mrf.mxu0
    %v1161 = vadd.f32 %v735, %v1160
    %v1162 = vpop.f32.mrf.mxu0
    %v1163 = vadd.f32 %v739, %v1162
    %1164 = vmatprep.mubr.bf16.mxu0 %v663
    %1165 = vmatmul.mubr.bf16.gmra.mxu0 %v662
    %v1166 = vpop.f32.mrf.mxu0
    %v1167 = vadd.f32 %v735, %v1166
    %v1168 = vpop.f32.mrf.mxu0
    %v1169 = vadd.f32 %v739, %v1168
    %v1170 = vpop.f32.mrf.mxu0
    %v1171 = vadd.f32 %v735, %v1170
    %v1172 = vpop.f32.mrf.mxu0
    %v1173 = vadd.f32 %v739, %v1172
    %1174 = vdwg.mxu0
    %1175 = vmatprep.subr.bf16.mxu0 %v981
    %1176 = vmatpush1.bf16.msra.mxu0 %v980
    %1177 = vmatprep.subr.bf16.mxu0 %v979
    %1178 = vmatpush1.bf16.msra.mxu0 %v978
    %1179 = vmatprep.subr.bf16.mxu0 %v977
    %1180 = vmatpush1.bf16.msra.mxu0 %v976
    %1181 = vmatprep.subr.bf16.mxu0 %v975
    %1182 = vmatpush1.bf16.msra.mxu0 %v974
    %1183 = vmatprep.subr.bf16.mxu0 %v973
    %1184 = vmatpush1.bf16.msra.mxu0 %v972
    %1185 = vmatprep.subr.bf16.mxu0 %v971
    %1186 = vmatpush1.bf16.msra.mxu0 %v970
    %1187 = vmatprep.subr.bf16.mxu0 %v969
    %1188 = vmatpush1.bf16.msra.mxu0 %v968
    %1189 = vmatprep.subr.bf16.mxu0 %v967
    %1190 = vmatpush1.bf16.msra.mxu0 %v966
    %1191 = vmatprep.subr.bf16.mxu0 %v997
    %1192 = vmatpush2.bf16.msra.mxu0 %v996
    %1193 = vmatprep.subr.bf16.mxu0 %v995
    %1194 = vmatpush2.bf16.msra.mxu0 %v994
    %1195 = vmatprep.subr.bf16.mxu0 %v993
    %1196 = vmatpush2.bf16.msra.mxu0 %v992
    %1197 = vmatprep.subr.bf16.mxu0 %v991
    %1198 = vmatpush2.bf16.msra.mxu0 %v990
    %1199 = vmatprep.subr.bf16.mxu0 %v989
    %1200 = vmatpush2.bf16.msra.mxu0 %v988
    %1201 = vmatprep.subr.bf16.mxu0 %v987
    %1202 = vmatpush2.bf16.msra.mxu0 %v986
    %1203 = vmatprep.subr.bf16.mxu0 %v985
    %1204 = vmatpush2.bf16.msra.mxu0 %v984
    %1205 = vmatprep.subr.bf16.mxu0 %v983
    %1206 = vmatpush2.bf16.msra.mxu0 %v982
    %1207 = vmatprep.mubr.bf16.mxu0 %v637
    %1208 = vmatmul.mubr.bf16.gmra.mxu0 %v636
    %v1209 = vpop.f32.mrf.mxu0
    %v1210 = vadd.f32 %v1097, %v1209
    %v1211 = vpop.f32.mrf.mxu0
    %v1212 = vadd.f32 %v1099, %v1211
    %v1213 = vpop.f32.mrf.mxu0
    %v1214 = vadd.f32 %v1101, %v1213
    %v1215 = vpop.f32.mrf.mxu0
    %v1216 = vadd.f32 %v1103, %v1215
    %1217 = vmatprep.mubr.bf16.mxu0 %v641
    %1218 = vmatmul.mubr.bf16.gmra.mxu0 %v640
    %v1219 = vpop.f32.mrf.mxu0
    %v1220 = vadd.f32 %v1107, %v1219
    %v1221 = vpop.f32.mrf.mxu0
    %v1222 = vadd.f32 %v1109, %v1221
    %v1223 = vpop.f32.mrf.mxu0
    %v1224 = vadd.f32 %v1111, %v1223
    %v1225 = vpop.f32.mrf.mxu0
    %v1226 = vadd.f32 %v1113, %v1225
    %1227 = vmatprep.mubr.bf16.mxu0 %v645
    %1228 = vmatmul.mubr.bf16.gmra.mxu0 %v644
    %v1229 = vpop.f32.mrf.mxu0
    %v1230 = vadd.f32 %v1117, %v1229
    %v1231 = vpop.f32.mrf.mxu0
    %v1232 = vadd.f32 %v1119, %v1231
    %v1233 = vpop.f32.mrf.mxu0
    %v1234 = vadd.f32 %v1121, %v1233
    %v1235 = vpop.f32.mrf.mxu0
    %v1236 = vadd.f32 %v1123, %v1235
    %1237 = vmatprep.mubr.bf16.mxu0 %v649
    %1238 = vmatmul.mubr.bf16.gmra.mxu0 %v648
    %v1239 = vpop.f32.mrf.mxu0
    %v1240 = vadd.f32 %v1127, %v1239
    %v1241 = vpop.f32.mrf.mxu0
    %v1242 = vadd.f32 %v1129, %v1241
    %v1243 = vpop.f32.mrf.mxu0
    %v1244 = vadd.f32 %v1131, %v1243
    %v1245 = vpop.f32.mrf.mxu0
    %v1246 = vadd.f32 %v1133, %v1245
    %1247 = vmatprep.mubr.bf16.mxu0 %v653
    %1248 = vmatmul.mubr.bf16.gmra.mxu0 %v652
    %v1249 = vpop.f32.mrf.mxu0
    %v1250 = vadd.f32 %v1137, %v1249
    %v1251 = vpop.f32.mrf.mxu0
    %v1252 = vadd.f32 %v1139, %v1251
    %v1253 = vpop.f32.mrf.mxu0
    %v1254 = vadd.f32 %v1141, %v1253
    %v1255 = vpop.f32.mrf.mxu0
    %v1256 = vadd.f32 %v1143, %v1255
    %1257 = vmatprep.mubr.bf16.mxu0 %v657
    %1258 = vmatmul.mubr.bf16.gmra.mxu0 %v656
    %v1259 = vpop.f32.mrf.mxu0
    %v1260 = vadd.f32 %v1147, %v1259
    %v1261 = vpop.f32.mrf.mxu0
    %v1262 = vadd.f32 %v1149, %v1261
    %v1263 = vpop.f32.mrf.mxu0
    %v1264 = vadd.f32 %v1151, %v1263
    %v1265 = vpop.f32.mrf.mxu0
    %v1266 = vadd.f32 %v1153, %v1265
    %1267 = vmatprep.mubr.bf16.mxu0 %v661
    %1268 = vmatmul.mubr.bf16.gmra.mxu0 %v660
    %v1269 = vpop.f32.mrf.mxu0
    %v1270 = vadd.f32 %v1157, %v1269
    %v1271 = vpop.f32.mrf.mxu0
    %v1272 = vadd.f32 %v1159, %v1271
    %v1273 = vpop.f32.mrf.mxu0
    %v1274 = vadd.f32 %v1161, %v1273
    %v1275 = vpop.f32.mrf.mxu0
    %v1276 = vadd.f32 %v1163, %v1275
    %1277 = vmatprep.mubr.bf16.mxu0 %v665
    %1278 = vmatmul.mubr.bf16.gmra.mxu0 %v664
    %v1279 = vpop.f32.mrf.mxu0
    %v1280 = vadd.f32 %v1167, %v1279
    %v1281 = vpop.f32.mrf.mxu0
    %v1282 = vadd.f32 %v1169, %v1281
    %v1283 = vpop.f32.mrf.mxu0
    %v1284 = vadd.f32 %v1171, %v1283
    %v1285 = vpop.f32.mrf.mxu0
    %v1286 = vadd.f32 %v1173, %v1285
    %1287 = vdwg.mxu0
    %v1288 = vpack.c.bf16 %v1214, %v1210
    %v1289 = vpack.c.bf16 %v1216, %v1212
    %v1290 = vpack.c.bf16 %v1224, %v1220
    %v1291 = vpack.c.bf16 %v1226, %v1222
    %v1292 = vpack.c.bf16 %v1234, %v1230
    %v1293 = vpack.c.bf16 %v1236, %v1232
    %v1294 = vpack.c.bf16 %v1244, %v1240
    %v1295 = vpack.c.bf16 %v1246, %v1242
    %v1296 = vpack.c.bf16 %v1254, %v1250
    %v1297 = vpack.c.bf16 %v1256, %v1252
    %v1298 = vpack.c.bf16 %v1264, %v1260
    %v1299 = vpack.c.bf16 %v1266, %v1262
    %v1300 = vpack.c.bf16 %v1274, %v1270
    %v1301 = vpack.c.bf16 %v1276, %v1272
    %v1302 = vpack.c.bf16 %v1284, %v1280
    %v1303 = vpack.c.bf16 %v1286, %v1282
    %vm1304 = vcmp.gt.bf16.partialorder %v1288, 0
    %vm1305 = vcmp.gt.bf16.partialorder %v1289, 0
    %vm1306 = vcmp.gt.bf16.partialorder %v1290, 0
    %vm1307 = vcmp.gt.bf16.partialorder %v1291, 0
    %vm1308 = vcmp.gt.bf16.partialorder %v1292, 0
    %vm1309 = vcmp.gt.bf16.partialorder %v1293, 0
    %vm1310 = vcmp.gt.bf16.partialorder %v1294, 0
    %vm1311 = vcmp.gt.bf16.partialorder %v1295, 0
    %vm1312 = vcmp.gt.bf16.partialorder %v1296, 0
    %vm1313 = vcmp.gt.bf16.partialorder %v1297, 0
    %vm1314 = vcmp.gt.bf16.partialorder %v1298, 0
    %vm1315 = vcmp.gt.bf16.partialorder %v1299, 0
    %vm1316 = vcmp.gt.bf16.partialorder %v1300, 0
    %vm1317 = vcmp.gt.bf16.partialorder %v1301, 0
    %vm1318 = vcmp.gt.bf16.partialorder %v1302, 0
    %vm1319 = vcmp.gt.bf16.partialorder %v1303, 0
    %v1321 = vmul.bf16 %v1288, 1069105081
    %v1322 = vpow.bf16.pop %v1321
    %v1324 = vmul.bf16 %v1289, 1069105081
    %v1325 = vpow.bf16.pop %v1324
    %v1327 = vmul.bf16 %v1290, 1069105081
    %v1328 = vpow.bf16.pop %v1327
    %v1330 = vmul.bf16 %v1291, 1069105081
    %v1331 = vpow.bf16.pop %v1330
    %v1333 = vmul.bf16 %v1292, 1069105081
    %v1334 = vpow.bf16.pop %v1333
    %v1336 = vmul.bf16 %v1293, 1069105081
    %v1337 = vpow.bf16.pop %v1336
    %v1339 = vmul.bf16 %v1294, 1069105081
    %v1340 = vpow.bf16.pop %v1339
    %v1342 = vmul.bf16 %v1295, 1069105081
    %v1343 = vpow.bf16.pop %v1342
    %v1345 = vmul.bf16 %v1296, 1069105081
    %v1346 = vpow.bf16.pop %v1345
    %v1348 = vmul.bf16 %v1297, 1069105081
    %v1349 = vpow.bf16.pop %v1348
    %v1351 = vmul.bf16 %v1298, 1069105081
    %v1352 = vpow.bf16.pop %v1351
    %v1354 = vmul.bf16 %v1299, 1069105081
    %v1355 = vpow.bf16.pop %v1354
    %v1357 = vmul.bf16 %v1300, 1069105081
    %v1358 = vpow.bf16.pop %v1357
    %v1360 = vmul.bf16 %v1301, 1069105081
    %v1361 = vpow.bf16.pop %v1360
    %v1363 = vmul.bf16 %v1302, 1069105081
    %v1364 = vpow.bf16.pop %v1363
    %v1366 = vmul.bf16 %v1303, 1069105081
    %v1367 = vpow.bf16.pop %v1366
    %v1368 = vsub.bf16 %v1322, 1065369472
    %v1369 = vsub.bf16 %v1325, 1065369472
    %v1370 = vsub.bf16 %v1328, 1065369472
    %v1371 = vsub.bf16 %v1331, 1065369472
    %v1372 = vsub.bf16 %v1334, 1065369472
    %v1373 = vsub.bf16 %v1337, 1065369472
    %v1374 = vsub.bf16 %v1340, 1065369472
    %v1375 = vsub.bf16 %v1343, 1065369472
    %v1376 = vsub.bf16 %v1346, 1065369472
    %v1377 = vsub.bf16 %v1349, 1065369472
    %v1378 = vsub.bf16 %v1352, 1065369472
    %v1379 = vsub.bf16 %v1355, 1065369472
    %v1380 = vsub.bf16 %v1358, 1065369472
    %v1381 = vsub.bf16 %v1361, 1065369472
    %v1382 = vsub.bf16 %v1364, 1065369472
    %v1383 = vsub.bf16 %v1367, 1065369472
    %v1384 = vsel %vm1304, %v1288, %v1368
    %v1385 = vsel %vm1305, %v1289, %v1369
    %v1386 = vsel %vm1306, %v1290, %v1370
    %v1387 = vsel %vm1307, %v1291, %v1371
    %v1388 = vsel %vm1308, %v1292, %v1372
    %v1389 = vsel %vm1309, %v1293, %v1373
    %v1390 = vsel %vm1310, %v1294, %v1374
    %v1391 = vsel %vm1311, %v1295, %v1375
    %v1392 = vsel %vm1312, %v1296, %v1376
    %v1393 = vsel %vm1313, %v1297, %v1377
    %v1394 = vsel %vm1314, %v1298, %v1378
    %v1395 = vsel %vm1315, %v1299, %v1379
    %v1396 = vsel %vm1316, %v1300, %v1380
    %v1397 = vsel %vm1317, %v1301, %v1381
    %v1398 = vsel %vm1318, %v1302, %v1382
    %v1399 = vsel %vm1319, %v1303, %v1383
    %v1400 = vld [vmem:[#allocation6] sm:$0xf]
    %v1401 = vld [vmem:[#allocation6 + $0x4] sm:$0xf]
    %v1402 = vld [vmem:[#allocation6 + $0x8] sm:$0xf]
    %v1403 = vld [vmem:[#allocation6 + $0xc] sm:$0xf]
    %v1404 = vld [vmem:[#allocation6 + $0x10] sm:$0xf]
    %v1405 = vld [vmem:[#allocation6 + $0x14] sm:$0xf]
    %v1406 = vld [vmem:[#allocation6 + $0x18] sm:$0xf]
    %v1407 = vld [vmem:[#allocation6 + $0x1c] sm:$0xf]
    %v1408 = vld [vmem:[#allocation6 + $0x20] sm:$0xf]
    %v1409 = vld [vmem:[#allocation6 + $0x24] sm:$0xf]
    %v1410 = vld [vmem:[#allocation6 + $0x28] sm:$0xf]
    %v1411 = vld [vmem:[#allocation6 + $0x2c] sm:$0xf]
    %v1412 = vld [vmem:[#allocation6 + $0x30] sm:$0xf]
    %v1413 = vld [vmem:[#allocation6 + $0x34] sm:$0xf]
    %v1414 = vld [vmem:[#allocation6 + $0x38] sm:$0xf]
    %v1415 = vld [vmem:[#allocation6 + $0x3c] sm:$0xf]
    %v1416 = vld [vmem:[#allocation6 + $0x40] sm:$0xf]
    %v1417 = vld [vmem:[#allocation6 + $0x44] sm:$0xf]
    %v1418 = vld [vmem:[#allocation6 + $0x48] sm:$0xf]
    %v1419 = vld [vmem:[#allocation6 + $0x4c] sm:$0xf]
    %v1420 = vld [vmem:[#allocation6 + $0x50] sm:$0xf]
    %v1421 = vld [vmem:[#allocation6 + $0x54] sm:$0xf]
    %v1422 = vld [vmem:[#allocation6 + $0x58] sm:$0xf]
    %v1423 = vld [vmem:[#allocation6 + $0x5c] sm:$0xf]
    %v1424 = vld [vmem:[#allocation6 + $0x60] sm:$0xf]
    %v1425 = vld [vmem:[#allocation6 + $0x64] sm:$0xf]
    %v1426 = vld [vmem:[#allocation6 + $0x68] sm:$0xf]
    %v1427 = vld [vmem:[#allocation6 + $0x6c] sm:$0xf]
    %v1428 = vld [vmem:[#allocation6 + $0x70] sm:$0xf]
    %v1429 = vld [vmem:[#allocation6 + $0x74] sm:$0xf]
    %v1430 = vld [vmem:[#allocation6 + $0x78] sm:$0xf]
    %v1431 = vld [vmem:[#allocation6 + $0x7c] sm:$0xf]
    %v1432 = vld [vmem:[%s6] sm:$0x1]
    %v1434 = vlaneseq
    %v1435 = vshrl.u32 %v1434, 7
    %v1436 = vsub.s32 0, %v1435
    %v1437 = vrot.slane %v1432, %v1436
    %v1471 = vunpack.c.l.b16 %v1400
    %v1472 = vunpack.c.l.b16 %v1401
    %v1473 = vunpack.c.l.b16 %v1402
    %v1474 = vunpack.c.l.b16 %v1403
    %v1475 = vunpack.c.l.b16 %v1404
    %v1476 = vunpack.c.l.b16 %v1405
    %v1477 = vunpack.c.l.b16 %v1406
    %v1478 = vunpack.c.l.b16 %v1407
    %v1479 = vunpack.c.l.b16 %v1408
    %v1480 = vunpack.c.l.b16 %v1409
    %v1481 = vunpack.c.l.b16 %v1410
    %v1482 = vunpack.c.l.b16 %v1411
    %v1483 = vunpack.c.l.b16 %v1412
    %v1484 = vunpack.c.l.b16 %v1413
    %v1485 = vunpack.c.l.b16 %v1414
    %v1486 = vunpack.c.l.b16 %v1415
    %v1487 = vunpack.c.l.b16 %v1416
    %v1488 = vunpack.c.l.b16 %v1417
    %v1489 = vunpack.c.l.b16 %v1418
    %v1490 = vunpack.c.l.b16 %v1419
    %v1491 = vunpack.c.l.b16 %v1420
    %v1492 = vunpack.c.l.b16 %v1421
    %v1493 = vunpack.c.l.b16 %v1422
    %v1494 = vunpack.c.l.b16 %v1423
    %v1495 = vunpack.c.l.b16 %v1424
    %v1496 = vunpack.c.l.b16 %v1425
    %v1497 = vunpack.c.l.b16 %v1426
    %v1498 = vunpack.c.l.b16 %v1427
    %v1499 = vunpack.c.l.b16 %v1428
    %v1500 = vunpack.c.l.b16 %v1429
    %v1501 = vunpack.c.l.b16 %v1430
    %v1502 = vunpack.c.l.b16 %v1431
    %v1503 = vpack.c.b16 %v1472, %v1471
    %v1504 = vpack.c.b16 %v1474, %v1473
    %v1505 = vpack.c.b16 %v1476, %v1475
    %v1506 = vpack.c.b16 %v1478, %v1477
    %v1507 = vpack.c.b16 %v1480, %v1479
    %v1508 = vpack.c.b16 %v1482, %v1481
    %v1509 = vpack.c.b16 %v1484, %v1483
    %v1510 = vpack.c.b16 %v1486, %v1485
    %v1511 = vpack.c.b16 %v1488, %v1487
    %v1512 = vpack.c.b16 %v1490, %v1489
    %v1513 = vpack.c.b16 %v1492, %v1491
    %v1514 = vpack.c.b16 %v1494, %v1493
    %v1515 = vpack.c.b16 %v1496, %v1495
    %v1516 = vpack.c.b16 %v1498, %v1497
    %v1517 = vpack.c.b16 %v1500, %v1499
    %v1518 = vpack.c.b16 %v1502, %v1501
    %1535 = vmatprep.subr.bf16.mxu0 0
    %1536 = vmatpush1.bf16.msra.mxu0 %v1510
    %1537 = vmatprep.subr.bf16.mxu0 0
    %1538 = vmatpush1.bf16.msra.mxu0 %v1509
    %1539 = vmatprep.subr.bf16.mxu0 0
    %1540 = vmatpush1.bf16.msra.mxu0 %v1508
    %1541 = vmatprep.subr.bf16.mxu0 0
    %1542 = vmatpush1.bf16.msra.mxu0 %v1507
    %1543 = vmatprep.subr.bf16.mxu0 0
    %1544 = vmatpush1.bf16.msra.mxu0 %v1506
    %1545 = vmatprep.subr.bf16.mxu0 0
    %1546 = vmatpush1.bf16.msra.mxu0 %v1505
    %1547 = vmatprep.subr.bf16.mxu0 0
    %1548 = vmatpush1.bf16.msra.mxu0 %v1504
    %1549 = vmatprep.subr.bf16.mxu0 0
    %1550 = vmatpush1.bf16.msra.mxu0 %v1503
    %1551 = vmatprep.subr.bf16.mxu0 0
    %1552 = vmatpush2.bf16.msra.mxu0 %v1518
    %1553 = vmatprep.subr.bf16.mxu0 0
    %1554 = vmatpush2.bf16.msra.mxu0 %v1517
    %1555 = vmatprep.subr.bf16.mxu0 0
    %1556 = vmatpush2.bf16.msra.mxu0 %v1516
    %1557 = vmatprep.subr.bf16.mxu0 0
    %1558 = vmatpush2.bf16.msra.mxu0 %v1515
    %1559 = vmatprep.subr.bf16.mxu0 0
    %1560 = vmatpush2.bf16.msra.mxu0 %v1514
    %1561 = vmatprep.subr.bf16.mxu0 0
    %1562 = vmatpush2.bf16.msra.mxu0 %v1513
    %1563 = vmatprep.subr.bf16.mxu0 0
    %1564 = vmatpush2.bf16.msra.mxu0 %v1512
    %1565 = vmatprep.subr.bf16.mxu0 0
    %1566 = vmatpush2.bf16.msra.mxu0 %v1511
    %1567 = vmatprep.mubr.bf16.mxu0 %v1385
    %1568 = vmatmul.mubr.bf16.gmra.mxu0 %v1384
    %v1569 = vpop.f32.mrf.mxu0
    %v1570 = vadd.f32 %v1437, %v1569
    %v1571 = vpop.f32.mrf.mxu0
    %v1572 = vpop.f32.mrf.mxu0
    %v1573 = vadd.f32 %v1437, %v1572
    %v1574 = vpop.f32.mrf.mxu0
    %1575 = vmatprep.mubr.bf16.mxu0 %v1387
    %1576 = vmatmul.mubr.bf16.gmra.mxu0 %v1386
    %v1577 = vpop.f32.mrf.mxu0
    %v1578 = vadd.f32 %v1437, %v1577
    %v1579 = vpop.f32.mrf.mxu0
    %v1580 = vpop.f32.mrf.mxu0
    %v1581 = vadd.f32 %v1437, %v1580
    %v1582 = vpop.f32.mrf.mxu0
    %1583 = vmatprep.mubr.bf16.mxu0 %v1389
    %1584 = vmatmul.mubr.bf16.gmra.mxu0 %v1388
    %v1585 = vpop.f32.mrf.mxu0
    %v1586 = vadd.f32 %v1437, %v1585
    %v1587 = vpop.f32.mrf.mxu0
    %v1588 = vpop.f32.mrf.mxu0
    %v1589 = vadd.f32 %v1437, %v1588
    %v1590 = vpop.f32.mrf.mxu0
    %1591 = vmatprep.mubr.bf16.mxu0 %v1391
    %1592 = vmatmul.mubr.bf16.gmra.mxu0 %v1390
    %v1593 = vpop.f32.mrf.mxu0
    %v1594 = vadd.f32 %v1437, %v1593
    %v1595 = vpop.f32.mrf.mxu0
    %v1596 = vpop.f32.mrf.mxu0
    %v1597 = vadd.f32 %v1437, %v1596
    %v1598 = vpop.f32.mrf.mxu0
    %1599 = vmatprep.mubr.bf16.mxu0 %v1393
    %1600 = vmatmul.mubr.bf16.gmra.mxu0 %v1392
    %v1601 = vpop.f32.mrf.mxu0
    %v1602 = vadd.f32 %v1437, %v1601
    %v1603 = vpop.f32.mrf.mxu0
    %v1604 = vpop.f32.mrf.mxu0
    %v1605 = vadd.f32 %v1437, %v1604
    %v1606 = vpop.f32.mrf.mxu0
    %1607 = vmatprep.mubr.bf16.mxu0 %v1395
    %1608 = vmatmul.mubr.bf16.gmra.mxu0 %v1394
    %v1609 = vpop.f32.mrf.mxu0
    %v1610 = vadd.f32 %v1437, %v1609
    %v1611 = vpop.f32.mrf.mxu0
    %v1612 = vpop.f32.mrf.mxu0
    %v1613 = vadd.f32 %v1437, %v1612
    %v1614 = vpop.f32.mrf.mxu0
    %1615 = vmatprep.mubr.bf16.mxu0 %v1397
    %1616 = vmatmul.mubr.bf16.gmra.mxu0 %v1396
    %v1617 = vpop.f32.mrf.mxu0
    %v1618 = vadd.f32 %v1437, %v1617
    %v1619 = vpop.f32.mrf.mxu0
    %v1620 = vpop.f32.mrf.mxu0
    %v1621 = vadd.f32 %v1437, %v1620
    %v1622 = vpop.f32.mrf.mxu0
    %1623 = vmatprep.mubr.bf16.mxu0 %v1399
    %1624 = vmatmul.mubr.bf16.gmra.mxu0 %v1398
    %v1625 = vpop.f32.mrf.mxu0
    %v1626 = vadd.f32 %v1437, %v1625
    %v1627 = vpop.f32.mrf.mxu0
    %v1628 = vpop.f32.mrf.mxu0
    %v1629 = vadd.f32 %v1437, %v1628
    %v1630 = vpop.f32.mrf.mxu0
    %1631 = vdwg.mxu0
    %v1632 = vpack.c.bf16 %v1573, %v1570
    %v1633 = vpack.c.bf16 %v1581, %v1578
    %v1634 = vpack.c.bf16 %v1589, %v1586
    %v1635 = vpack.c.bf16 %v1597, %v1594
    %v1636 = vpack.c.bf16 %v1605, %v1602
    %v1637 = vpack.c.bf16 %v1613, %v1610
    %v1638 = vpack.c.bf16 %v1621, %v1618
    %v1639 = vpack.c.bf16 %v1629, %v1626
    %vm1640 = vcmp.gt.bf16.partialorder %v1632, 0
    %vm1641 = vcmp.gt.bf16.partialorder %v1633, 0
    %vm1642 = vcmp.gt.bf16.partialorder %v1634, 0
    %vm1643 = vcmp.gt.bf16.partialorder %v1635, 0
    %vm1644 = vcmp.gt.bf16.partialorder %v1636, 0
    %vm1645 = vcmp.gt.bf16.partialorder %v1637, 0
    %vm1646 = vcmp.gt.bf16.partialorder %v1638, 0
    %vm1647 = vcmp.gt.bf16.partialorder %v1639, 0
    %v1649 = vmul.bf16 %v1632, 1069105081
    %v1650 = vpow.bf16.pop %v1649
    %v1652 = vmul.bf16 %v1633, 1069105081
    %v1653 = vpow.bf16.pop %v1652
    %v1655 = vmul.bf16 %v1634, 1069105081
    %v1656 = vpow.bf16.pop %v1655
    %v1658 = vmul.bf16 %v1635, 1069105081
    %v1659 = vpow.bf16.pop %v1658
    %v1661 = vmul.bf16 %v1636, 1069105081
    %v1662 = vpow.bf16.pop %v1661
    %v1664 = vmul.bf16 %v1637, 1069105081
    %v1665 = vpow.bf16.pop %v1664
    %v1667 = vmul.bf16 %v1638, 1069105081
    %v1668 = vpow.bf16.pop %v1667
    %v1670 = vmul.bf16 %v1639, 1069105081
    %v1671 = vpow.bf16.pop %v1670
    %v1672 = vsub.bf16 %v1650, 1065369472
    %v1673 = vsub.bf16 %v1653, 1065369472
    %v1674 = vsub.bf16 %v1656, 1065369472
    %v1675 = vsub.bf16 %v1659, 1065369472
    %v1676 = vsub.bf16 %v1662, 1065369472
    %v1677 = vsub.bf16 %v1665, 1065369472
    %v1678 = vsub.bf16 %v1668, 1065369472
    %v1679 = vsub.bf16 %v1671, 1065369472
    %v1680 = vsel %vm1640, %v1632, %v1672
    %v1681 = vsel %vm1641, %v1633, %v1673
    %v1682 = vsel %vm1642, %v1634, %v1674
    %v1683 = vsel %vm1643, %v1635, %v1675
    %v1684 = vsel %vm1644, %v1636, %v1676
    %v1685 = vsel %vm1645, %v1637, %v1677
    %v1686 = vsel %vm1646, %v1638, %v1678
    %v1687 = vsel %vm1647, %v1639, %v1679
    %v1688 = vld [vmem:[%s7] sm:$0x1]
    %v1689 = vld [vmem:[#allocation2] sm:$0x1]
    %1691 = vset.pattern.permute.xlu0 0
    %1692 = vperm.xlu0 %1691, %v1689
    %v1693 = vpop.permute.xlu0 %1692
    %v1695 = vlaneseq
    %v1696 = vshrl.u32 %v1695, 7
    %v1697 = vsub.s32 0, %v1696
    %v1698 = vrot.slane %v1693, %v1697
    %1699 = vmatprep.subr.bf16.mxu0 0
    %1700 = vmatpush1.bf16.xpose.msra.mxu0 %v1687
    %1701 = vmatprep.subr.bf16.mxu0 0
    %1702 = vmatpush1.bf16.xpose.msra.mxu0 %v1686
    %1703 = vmatprep.subr.bf16.mxu0 0
    %1704 = vmatpush1.bf16.xpose.msra.mxu0 %v1685
    %1705 = vmatprep.subr.bf16.mxu0 0
    %1706 = vmatpush1.bf16.xpose.msra.mxu0 %v1684
    %1707 = vmatprep.subr.bf16.mxu0 0
    %1708 = vmatpush1.bf16.xpose.msra.mxu0 %v1683
    %1709 = vmatprep.subr.bf16.mxu0 0
    %1710 = vmatpush1.bf16.xpose.msra.mxu0 %v1682
    %1711 = vmatprep.subr.bf16.mxu0 0
    %1712 = vmatpush1.bf16.xpose.msra.mxu0 %v1681
    %1713 = vmatprep.subr.bf16.mxu0 0
    %1714 = vmatpush1.bf16.xpose.msra.mxu0 %v1680
    %1715 = vmatprep.subr.bf16.mxu0 0
    %1716 = vmatpush2.bf16.xpose.msra.mxu0 0
    %1717 = vmatprep.subr.bf16.mxu0 0
    %1718 = vmatpush2.bf16.xpose.msra.mxu0 0
    %1719 = vmatprep.subr.bf16.mxu0 0
    %1720 = vmatpush2.bf16.xpose.msra.mxu0 0
    %1721 = vmatprep.subr.bf16.mxu0 0
    %1722 = vmatpush2.bf16.xpose.msra.mxu0 0
    %1723 = vmatprep.subr.bf16.mxu0 0
    %1724 = vmatpush2.bf16.xpose.msra.mxu0 0
    %1725 = vmatprep.subr.bf16.mxu0 0
    %1726 = vmatpush2.bf16.xpose.msra.mxu0 0
    %1727 = vmatprep.subr.bf16.mxu0 0
    %1728 = vmatpush2.bf16.xpose.msra.mxu0 0
    %1729 = vmatprep.subr.bf16.mxu0 0
    %1730 = vmatpush2.bf16.xpose.msra.mxu0 0
    %1731 = vmatprep.mubr.bf16.mxu0 0
    %1732 = vmatmul.mubr.bf16.gmra.mxu0 %v1688
    %v1733 = vpop.f32.mrf.mxu0
    %v1734 = vadd.f32 %v1698, %v1733
    %v1735 = vpop.f32.mrf.mxu0
    %v1736 = vpop.f32.mrf.mxu0
    %v1737 = vpop.f32.mrf.mxu0
    %1738 = vdwg.mxu0
    %vm1739 = vcmp.gt.f32.partialorder %v1734, 20.0
    %v1740 = vmin.f32 %v1734, 20.0
    %v1741 = vmul.f32 %v1740, 1.442695
    %v1742 = vpow.pop %v1741
    %v1743 = vadd.f32 %v1742, 1.0
    %v1744 = vlog2.pop %v1743
    %v1745 = vmul.f32 %v1744, 0.6931472
    %v1746 = vmul.f32 -0.5, %v1742
    %v1747 = vadd.f32 %v1746, 1.0
    %v1748 = vmul.f32 %v1747, %v1742
    %v1749 = vand.u32 2147483647, %v1742
    %vm1750 = vcmp.lt.f32.partialorder %v1749, 0.0004427343
    %v1751 = vsel %vm1750, %v1748, %v1745
    %v1752 = vsel %vm1739, %v1734, %v1751
    %v1753 = vmax.f32 %v1752, 0.0001
    %v1754 = vmin.f32 %v1753, 1000000.0
    %1755 = vst [vmem:[#allocation8] sm:$0x1] %v1754
    // Predicated region
    $region46: #{tpu_custom_call.1} parent=1 // pred_check
      _
    $region47: #{tpu_custom_call.1} parent=1 // pred_check_branch
      %1757 = sbr.rel (0) target = $region49
    $region48: #{tpu_custom_call.1} parent=1 // pred_region
      %s1759 = ssub.s32 16, 16
      %1760 = vsyncadd [#allocation5], %s1759
      %s1762 = sshll.u32 [#allocation8], 4
      %s1763 = int_to_ptr.vmem [resolvable:$true] %s1762
      %1765 = dma.vmem_to_hbm [thread:$0]  %s1763, 16, %s9, [#allocation5]
    $region49: #{tpu_custom_call.1} parent=1 // pred_fallthru
      _
    // Predicated region
    $region50: #{tpu_custom_call.1} parent=1 // pred_check
      _
    $region51: #{tpu_custom_call.1} parent=1 // pred_check_branch
      %1767 = sbr.rel (0) target = $region53
    $region52: #{tpu_custom_call.1} parent=1 // pred_region
      %1768 = dma.done [#allocation5], 16
    $region53: #{tpu_custom_call.1} parent=1 // pred_fallthru
      _
    %1769 = vsyncpa [#allocation4], 1
    %1770 = vsyncpa [#allocation7], 1
    %1771 = vsyncpa [#allocation5], 1

// kernel: tpu_custom_call.1
$region0: #{tpu_custom_call.1}
  #allocation0 [shape = 'u32[]', space=smem, size = 0x4, offset = 0x4, fixed_abs, tag = 'smem constant byte address 0x4 - core index']
  #allocation1 [shape = 'u32[144,128]{1,0:T(1,128)}', space=vmem, size = 0x12000, scoped, tag = 'internal scratch']
  #allocation2 [shape = 'f32[1,1]{1,0:T(1,128)S(1)}', space=vmem, size = 0x200, scoped, tag = 'scoped memory for tpu_custom_call.1']
  %s0 = inlined_call_operand.vmem [shape: bf16[128,32], index: 0, kind: input, shape index: {}]
  %s1 = inlined_call_operand.vmem [shape: bf16[32,512], index: 1, kind: input, shape index: {}]
  %s2 = inlined_call_operand.vmem [shape: f32[1,512], index: 2, kind: input, shape index: {}]
  %s3 = inlined_call_operand.hbm [shape: bf16[512,256], index: 3, kind: input, shape index: {}]
  %s4 = inlined_call_operand.vmem [shape: f32[1,256], index: 4, kind: input, shape index: {}]
  %s5 = inlined_call_operand.hbm [shape: bf16[256,128], index: 5, kind: input, shape index: {}]
  %s6 = inlined_call_operand.vmem [shape: f32[1,128], index: 6, kind: input, shape index: {}]
  %s7 = inlined_call_operand.vmem [shape: bf16[1,128], index: 7, kind: input, shape index: {}]
  %s8 = inlined_call_operand.<no memory space> [shape: f32[1,1], index: 8, kind: input, shape index: {}]
  %s9 = inlined_call_operand.hbm [shape: f32[1,128], index: 9, kind: output, shape index: {}]
  %s10 = sld [smem:[#allocation0]]
  $region54: #{tpu_custom_call.1} parent=0
    _
  %s12 = ssub.s32 1, %s10
  %s13 = scalar_select 0, %s12, %s10
  %v14 = vstv %s8
  %15 = vst [vmem:[#allocation2] sm:$0x1] %v14
  $region1: #{tpu_custom_call.1} parent=0
    #allocation3 [shape = 'u8[262144]{0}', space=vmem, size = 0x40000, scoped, tag = 'input window, operand 3, single buffered']
    #allocation4 [shape = 's32[1]{0}', space=sflag, size = 0x4, scoped, tag = 'scoped memory for tpu_custom_call.1']
    #allocation5 [shape = 's32[1]{0}', space=sflag, size = 0x4, scoped, tag = 'scoped memory for tpu_custom_call.1']
    #allocation6 [shape = 'u8[65536]{0}', space=vmem, size = 0x10000, scoped, tag = 'input window, operand 5, single buffered']
    #allocation7 [shape = 's32[1]{0}', space=sflag, size = 0x4, scoped, tag = 'scoped memory for tpu_custom_call.1']
    #allocation8 [shape = 'u8[512]{0}', space=vmem, size = 0x400, scoped, tag = 'output window, operand 0, single buffered']
    %16 = vsyncpa [#allocation4], 0
    %17 = vsyncpa [#allocation7], 0
    %18 = vsyncpa [#allocation5], 0
    // Predicated region
    $region2: #{tpu_custom_call.1} parent=1 // pred_check
      _
    $region3: #{tpu_custom_call.1} parent=1 // pred_check_branch
      %20 = sbr.rel (0) target = $region5
    $region4: #{tpu_custom_call.1} parent=1 // pred_region
      _
    $region5: #{tpu_custom_call.1} parent=1 // pred_fallthru
      _
    // Predicated region
    $region6: #{tpu_custom_call.1} parent=1 // pred_check
      _
    $region7: #{tpu_custom_call.1} parent=1 // pred_check_branch
      %22 = sbr.rel (0) target = $region9
    $region8: #{tpu_custom_call.1} parent=1 // pred_region
      _
    $region9: #{tpu_custom_call.1} parent=1 // pred_fallthru
      _
    // Predicated region
    $region10: #{tpu_custom_call.1} parent=1 // pred_check
      _
    $region11: #{tpu_custom_call.1} parent=1 // pred_check_branch
      %24 = sbr.rel (0) target = $region13
    $region12: #{tpu_custom_call.1} parent=1 // pred_region
      _
    $region13: #{tpu_custom_call.1} parent=1 // pred_fallthru
      _
    // Predicated region
    $region14: #{tpu_custom_call.1} parent=1 // pred_check
      _
    $region15: #{tpu_custom_call.1} parent=1 // pred_check_branch
      %26 = sbr.rel (0) target = $region17
    $region16: #{tpu_custom_call.1} parent=1 // pred_region
      %s28 = ssub.s32 8192, 8192
      %29 = vsyncadd [#allocation4], %s28
      %s30 = sshll.u32 [#allocation3], 4
      %s31 = int_to_ptr.vmem [resolvable:$true] %s30
      %36 = dma.hbm_to_vmem [thread:$0]  %s3, 8192, %s31, [#allocation4], 128, 128, 8
    $region17: #{tpu_custom_call.1} parent=1 // pred_fallthru
      _
    // Predicated region
    $region18: #{tpu_custom_call.1} parent=1 // pred_check
      _
    $region19: #{tpu_custom_call.1} parent=1 // pred_check_branch
      %38 = sbr.rel (0) target = $region21
    $region20: #{tpu_custom_call.1} parent=1 // pred_region
      _
    $region21: #{tpu_custom_call.1} parent=1 // pred_fallthru
      _
    // Predicated region
    $region22: #{tpu_custom_call.1} parent=1 // pred_check
      _
    $region23: #{tpu_custom_call.1} parent=1 // pred_check_branch
      %40 = sbr.rel (0) target = $region25
    $region24: #{tpu_custom_call.1} parent=1 // pred_region
      %s42 = ssub.s32 2048, 2048
      %43 = vsyncadd [#allocation7], %s42
      %s44 = sshll.u32 [#allocation6], 4
      %s45 = int_to_ptr.vmem [resolvable:$true] %s44
      %50 = dma.hbm_to_vmem [thread:$0]  %s5, 2048, %s45, [#allocation7], 64, 64, 4
    $region25: #{tpu_custom_call.1} parent=1 // pred_fallthru
      _
    // Predicated region
    $region26: #{tpu_custom_call.1} parent=1 // pred_check
      _
    $region27: #{tpu_custom_call.1} parent=1 // pred_check_branch
      %52 = sbr.rel (0) target = $region29
    $region28: #{tpu_custom_call.1} parent=1 // pred_region
      _
    $region29: #{tpu_custom_call.1} parent=1 // pred_fallthru
      _
    // Predicated region
    $region30: #{tpu_custom_call.1} parent=1 // pred_check
      _
    $region31: #{tpu_custom_call.1} parent=1 // pred_check_branch
      %54 = sbr.rel (0) target = $region33
    $region32: #{tpu_custom_call.1} parent=1 // pred_region
      _
    $region33: #{tpu_custom_call.1} parent=1 // pred_fallthru
      _
    // Predicated region
    $region34: #{tpu_custom_call.1} parent=1 // pred_check
      _
    $region35: #{tpu_custom_call.1} parent=1 // pred_check_branch
      %56 = sbr.rel (0) target = $region37
    $region36: #{tpu_custom_call.1} parent=1 // pred_region
      _
    $region37: #{tpu_custom_call.1} parent=1 // pred_fallthru
      _
    // Predicated region
    $region38: #{tpu_custom_call.1} parent=1 // pred_check
      _
    $region39: #{tpu_custom_call.1} parent=1 // pred_check_branch
      %58 = sbr.rel (0) target = $region41
    $region40: #{tpu_custom_call.1} parent=1 // pred_region
      %59 = dma.done [#allocation4], 8192
    $region41: #{tpu_custom_call.1} parent=1 // pred_fallthru
      _
    // Predicated region
    $region42: #{tpu_custom_call.1} parent=1 // pred_check
      _
    $region43: #{tpu_custom_call.1} parent=1 // pred_check_branch
      %61 = sbr.rel (0) target = $region45
    $region44: #{tpu_custom_call.1} parent=1 // pred_region
      %62 = dma.done [#allocation7], 2048
    $region45: #{tpu_custom_call.1} parent=1 // pred_fallthru
      _
    %v64 = vld [vmem:[%s0] sm:$0xf]
    %v65 = vld [vmem:[%s0 + $0x4] sm:$0xf]
    %v66 = vld [vmem:[%s0 + $0x8] sm:$0xf]
    %v67 = vld [vmem:[%s0 + $0xc] sm:$0xf]
    %v68 = vld [vmem:[%s0 + $0x10] sm:$0xf]
    %v69 = vld [vmem:[%s0 + $0x14] sm:$0xf]
    %v70 = vld [vmem:[%s0 + $0x18] sm:$0xf]
    %v71 = vld [vmem:[%s0 + $0x1c] sm:$0xf]
    %v72 = vld [vmem:[%s0 + $0x20] sm:$0xf]
    %v73 = vld [vmem:[%s0 + $0x24] sm:$0xf]
    %v74 = vld [vmem:[%s0 + $0x28] sm:$0xf]
    %v75 = vld [vmem:[%s0 + $0x2c] sm:$0xf]
    %v76 = vld [vmem:[%s0 + $0x30] sm:$0xf]
    %v77 = vld [vmem:[%s0 + $0x34] sm:$0xf]
    %v78 = vld [vmem:[%s0 + $0x38] sm:$0xf]
    %v79 = vld [vmem:[%s0 + $0x3c] sm:$0xf]
    %v80 = vld [vmem:[%s1] sm:$0xff]
    %v81 = vld [vmem:[%s1 + $0x8] sm:$0xff]
    %v82 = vld [vmem:[%s1 + $0x10] sm:$0xff]
    %v83 = vld [vmem:[%s1 + $0x18] sm:$0xff]
    %v84 = vld [vmem:[%s1 + $0x20] sm:$0xff]
    %v85 = vld [vmem:[%s1 + $0x28] sm:$0xff]
    %v86 = vld [vmem:[%s1 + $0x30] sm:$0xff]
    %v87 = vld [vmem:[%s1 + $0x38] sm:$0xff]
    %v88 = vld [vmem:[%s2] sm:$0xf]
    %v90 = vlaneseq
    %v91 = vshrl.u32 %v90, 7
    %v92 = vsub.s32 0, %v91
    %v93 = vrot.slane %v88, %v92
    %v94 = vlaneseq
    %v95 = vshrl.u32 %v94, 7
    %v96 = vsub.s32 1, %v95
    %v97 = vrot.slane %v88, %v96
    %v98 = vlaneseq
    %v99 = vshrl.u32 %v98, 7
    %v100 = vsub.s32 2, %v99
    %v101 = vrot.slane %v88, %v100
    %v102 = vlaneseq
    %v103 = vshrl.u32 %v102, 7
    %v104 = vsub.s32 3, %v103
    %v105 = vrot.slane %v88, %v104
    %v126 = vunpack.c.l.b16 %v64
    %v127 = vunpack.c.l.b16 %v65
    %v128 = vunpack.c.l.b16 %v66
    %v129 = vunpack.c.l.b16 %v67
    %v130 = vunpack.c.l.b16 %v68
    %v131 = vunpack.c.l.b16 %v69
    %v132 = vunpack.c.l.b16 %v70
    %v133 = vunpack.c.l.b16 %v71
    %v134 = vunpack.c.l.b16 %v72
    %v135 = vunpack.c.l.b16 %v73
    %v136 = vunpack.c.l.b16 %v74
    %v137 = vunpack.c.l.b16 %v75
    %v138 = vunpack.c.l.b16 %v76
    %v139 = vunpack.c.l.b16 %v77
    %v140 = vunpack.c.l.b16 %v78
    %v141 = vunpack.c.l.b16 %v79
    %v142 = vpack.c.b16 %v127, %v126
    %v143 = vpack.c.b16 %v129, %v128
    %v144 = vpack.c.b16 %v131, %v130
    %v145 = vpack.c.b16 %v133, %v132
    %v146 = vpack.c.b16 %v135, %v134
    %v147 = vpack.c.b16 %v137, %v136
    %v148 = vpack.c.b16 %v139, %v138
    %v149 = vpack.c.b16 %v141, %v140
    %v158 = vunpack.c.l.b16 %v80
    %v159 = vunpack.c.h.b16 %v80
    %v160 = vunpack.c.l.b16 %v81
    %v161 = vunpack.c.h.b16 %v81
    %v162 = vunpack.c.l.b16 %v82
    %v163 = vunpack.c.h.b16 %v82
    %v164 = vunpack.c.l.b16 %v83
    %v165 = vunpack.c.h.b16 %v83
    %v166 = vunpack.c.l.b16 %v84
    %v167 = vunpack.c.h.b16 %v84
    %v168 = vunpack.c.l.b16 %v85
    %v169 = vunpack.c.h.b16 %v85
    %v170 = vunpack.c.l.b16 %v86
    %v171 = vunpack.c.h.b16 %v86
    %v172 = vunpack.c.l.b16 %v87
    %v173 = vunpack.c.h.b16 %v87
    %v174 = vpack.c.b16 %v162, %v158
    %v175 = vpack.c.b16 %v163, %v159
    %v176 = vpack.c.b16 %v164, %v160
    %v177 = vpack.c.b16 %v165, %v161
    %v178 = vpack.c.b16 %v170, %v166
    %v179 = vpack.c.b16 %v171, %v167
    %v180 = vpack.c.b16 %v172, %v168
    %v181 = vpack.c.b16 %v173, %v169
    %vm190 = vcmask 261120
    %v192 = vsel %vm190, %v142, 0
    %v195 = vsel %vm190, %v143, 0
    %v198 = vsel %vm190, %v144, 0
    %v201 = vsel %vm190, %v145, 0
    %v204 = vsel %vm190, %v146, 0
    %v207 = vsel %vm190, %v147, 0
    %v210 = vsel %vm190, %v148, 0
    %v213 = vsel %vm190, %v149, 0
    %215 = vmatprep.subr.bf16.mxu0 0
    %216 = vmatpush1.bf16.msra.mxu0 0
    %217 = vmatprep.subr.bf16.mxu0 0
    %218 = vmatpush1.bf16.msra.mxu0 0
    %219 = vmatprep.subr.bf16.mxu0 0
    %220 = vmatpush1.bf16.msra.mxu0 0
    %221 = vmatprep.subr.bf16.mxu0 0
    %222 = vmatpush1.bf16.msra.mxu0 0
    %223 = vmatprep.subr.bf16.mxu0 0
    %224 = vmatpush1.bf16.msra.mxu0 0
    %225 = vmatprep.subr.bf16.mxu0 0
    %226 = vmatpush1.bf16.msra.mxu0 0
    %227 = vmatprep.subr.bf16.mxu0 %v179
    %228 = vmatpush1.bf16.msra.mxu0 %v178
    %229 = vmatprep.subr.bf16.mxu0 %v175
    %230 = vmatpush1.bf16.msra.mxu0 %v174
    %231 = vmatprep.subr.bf16.mxu0 0
    %232 = vmatpush2.bf16.msra.mxu0 0
    %233 = vmatprep.subr.bf16.mxu0 0
    %234 = vmatpush2.bf16.msra.mxu0 0
    %235 = vmatprep.subr.bf16.mxu0 0
    %236 = vmatpush2.bf16.msra.mxu0 0
    %237 = vmatprep.subr.bf16.mxu0 0
    %238 = vmatpush2.bf16.msra.mxu0 0
    %239 = vmatprep.subr.bf16.mxu0 0
    %240 = vmatpush2.bf16.msra.mxu0 0
    %241 = vmatprep.subr.bf16.mxu0 0
    %242 = vmatpush2.bf16.msra.mxu0 0
    %243 = vmatprep.subr.bf16.mxu0 0
    %244 = vmatpush2.bf16.msra.mxu0 0
    %245 = vmatprep.subr.bf16.mxu0 0
    %246 = vmatpush2.bf16.msra.mxu0 0
    %247 = vmatprep.mubr.bf16.mxu0 0
    %248 = vmatmul.mubr.bf16.gmra.mxu0 %v192
    %v249 = vpop.f32.mrf.mxu0
    %v250 = vadd.f32 %v93, %v249
    %v251 = vpop.f32.mrf.mxu0
    %v252 = vadd.f32 %v97, %v251
    %v253 = vpop.f32.mrf.mxu0
    %v254 = vadd.f32 %v93, %v253
    %v255 = vpop.f32.mrf.mxu0
    %v256 = vadd.f32 %v97, %v255
    %257 = vmatprep.mubr.bf16.mxu0 0
    %258 = vmatmul.mubr.bf16.gmra.mxu0 %v195
    %v259 = vpop.f32.mrf.mxu0
    %v260 = vadd.f32 %v93, %v259
    %v261 = vpop.f32.mrf.mxu0
    %v262 = vadd.f32 %v97, %v261
    %v263 = vpop.f32.mrf.mxu0
    %v264 = vadd.f32 %v93, %v263
    %v265 = vpop.f32.mrf.mxu0
    %v266 = vadd.f32 %v97, %v265
    %267 = vmatprep.mubr.bf16.mxu0 0
    %268 = vmatmul.mubr.bf16.gmra.mxu0 %v198
    %v269 = vpop.f32.mrf.mxu0
    %v270 = vadd.f32 %v93, %v269
    %v271 = vpop.f32.mrf.mxu0
    %v272 = vadd.f32 %v97, %v271
    %v273 = vpop.f32.mrf.mxu0
    %v274 = vadd.f32 %v93, %v273
    %v275 = vpop.f32.mrf.mxu0
    %v276 = vadd.f32 %v97, %v275
    %277 = vmatprep.mubr.bf16.mxu0 0
    %278 = vmatmul.mubr.bf16.gmra.mxu0 %v201
    %v279 = vpop.f32.mrf.mxu0
    %v280 = vadd.f32 %v93, %v279
    %v281 = vpop.f32.mrf.mxu0
    %v282 = vadd.f32 %v97, %v281
    %v283 = vpop.f32.mrf.mxu0
    %v284 = vadd.f32 %v93, %v283
    %v285 = vpop.f32.mrf.mxu0
    %v286 = vadd.f32 %v97, %v285
    %287 = vmatprep.mubr.bf16.mxu0 0
    %288 = vmatmul.mubr.bf16.gmra.mxu0 %v204
    %v289 = vpop.f32.mrf.mxu0
    %v290 = vadd.f32 %v93, %v289
    %v291 = vpop.f32.mrf.mxu0
    %v292 = vadd.f32 %v97, %v291
    %v293 = vpop.f32.mrf.mxu0
    %v294 = vadd.f32 %v93, %v293
    %v295 = vpop.f32.mrf.mxu0
    %v296 = vadd.f32 %v97, %v295
    %297 = vmatprep.mubr.bf16.mxu0 0
    %298 = vmatmul.mubr.bf16.gmra.mxu0 %v207
    %v299 = vpop.f32.mrf.mxu0
    %v300 = vadd.f32 %v93, %v299
    %v301 = vpop.f32.mrf.mxu0
    %v302 = vadd.f32 %v97, %v301
    %v303 = vpop.f32.mrf.mxu0
    %v304 = vadd.f32 %v93, %v303
    %v305 = vpop.f32.mrf.mxu0
    %v306 = vadd.f32 %v97, %v305
    %307 = vmatprep.mubr.bf16.mxu0 0
    %308 = vmatmul.mubr.bf16.gmra.mxu0 %v210
    %v309 = vpop.f32.mrf.mxu0
    %v310 = vadd.f32 %v93, %v309
    %v311 = vpop.f32.mrf.mxu0
    %v312 = vadd.f32 %v97, %v311
    %v313 = vpop.f32.mrf.mxu0
    %v314 = vadd.f32 %v93, %v313
    %v315 = vpop.f32.mrf.mxu0
    %v316 = vadd.f32 %v97, %v315
    %317 = vmatprep.mubr.bf16.mxu0 0
    %318 = vmatmul.mubr.bf16.gmra.mxu0 %v213
    %v319 = vpop.f32.mrf.mxu0
    %v320 = vadd.f32 %v93, %v319
    %v321 = vpop.f32.mrf.mxu0
    %v322 = vadd.f32 %v97, %v321
    %v323 = vpop.f32.mrf.mxu0
    %v324 = vadd.f32 %v93, %v323
    %v325 = vpop.f32.mrf.mxu0
    %v326 = vadd.f32 %v97, %v325
    %327 = vdwg.mxu0
    %328 = vmatprep.subr.bf16.mxu0 0
    %329 = vmatpush1.bf16.msra.mxu0 0
    %330 = vmatprep.subr.bf16.mxu0 0
    %331 = vmatpush1.bf16.msra.mxu0 0
    %332 = vmatprep.subr.bf16.mxu0 0
    %333 = vmatpush1.bf16.msra.mxu0 0
    %334 = vmatprep.subr.bf16.mxu0 0
    %335 = vmatpush1.bf16.msra.mxu0 0
    %336 = vmatprep.subr.bf16.mxu0 0
    %337 = vmatpush1.bf16.msra.mxu0 0
    %338 = vmatprep.subr.bf16.mxu0 0
    %339 = vmatpush1.bf16.msra.mxu0 0
    %340 = vmatprep.subr.bf16.mxu0 %v181
    %341 = vmatpush1.bf16.msra.mxu0 %v180
    %342 = vmatprep.subr.bf16.mxu0 %v177
    %343 = vmatpush1.bf16.msra.mxu0 %v176
    %344 = vmatprep.subr.bf16.mxu0 0
    %345 = vmatpush2.bf16.msra.mxu0 0
    %346 = vmatprep.subr.bf16.mxu0 0
    %347 = vmatpush2.bf16.msra.mxu0 0
    %348 = vmatprep.subr.bf16.mxu0 0
    %349 = vmatpush2.bf16.msra.mxu0 0
    %350 = vmatprep.subr.bf16.mxu0 0
    %351 = vmatpush2.bf16.msra.mxu0 0
    %352 = vmatprep.subr.bf16.mxu0 0
    %353 = vmatpush2.bf16.msra.mxu0 0
    %354 = vmatprep.subr.bf16.mxu0 0
    %355 = vmatpush2.bf16.msra.mxu0 0
    %356 = vmatprep.subr.bf16.mxu0 0
    %357 = vmatpush2.bf16.msra.mxu0 0
    %358 = vmatprep.subr.bf16.mxu0 0
    %359 = vmatpush2.bf16.msra.mxu0 0
    %360 = vmatprep.mubr.bf16.mxu0 0
    %361 = vmatmul.mubr.bf16.gmra.mxu0 %v192
    %v362 = vpop.f32.mrf.mxu0
    %v363 = vadd.f32 %v101, %v362
    %v364 = vpop.f32.mrf.mxu0
    %v365 = vadd.f32 %v105, %v364
    %v366 = vpop.f32.mrf.mxu0
    %v367 = vadd.f32 %v101, %v366
    %v368 = vpop.f32.mrf.mxu0
    %v369 = vadd.f32 %v105, %v368
    %370 = vmatprep.mubr.bf16.mxu0 0
    %371 = vmatmul.mubr.bf16.gmra.mxu0 %v195
    %v372 = vpop.f32.mrf.mxu0
    %v373 = vadd.f32 %v101, %v372
    %v374 = vpop.f32.mrf.mxu0
    %v375 = vadd.f32 %v105, %v374
    %v376 = vpop.f32.mrf.mxu0
    %v377 = vadd.f32 %v101, %v376
    %v378 = vpop.f32.mrf.mxu0
    %v379 = vadd.f32 %v105, %v378
    %380 = vmatprep.mubr.bf16.mxu0 0
    %381 = vmatmul.mubr.bf16.gmra.mxu0 %v198
    %v382 = vpop.f32.mrf.mxu0
    %v383 = vadd.f32 %v101, %v382
    %v384 = vpop.f32.mrf.mxu0
    %v385 = vadd.f32 %v105, %v384
    %v386 = vpop.f32.mrf.mxu0
    %v387 = vadd.f32 %v101, %v386
    %v388 = vpop.f32.mrf.mxu0
    %v389 = vadd.f32 %v105, %v388
    %390 = vmatprep.mubr.bf16.mxu0 0
    %391 = vmatmul.mubr.bf16.gmra.mxu0 %v201
    %v392 = vpop.f32.mrf.mxu0
    %v393 = vadd.f32 %v101, %v392
    %v394 = vpop.f32.mrf.mxu0
    %v395 = vadd.f32 %v105, %v394
    %v396 = vpop.f32.mrf.mxu0
    %v397 = vadd.f32 %v101, %v396
    %v398 = vpop.f32.mrf.mxu0
    %v399 = vadd.f32 %v105, %v398
    %400 = vmatprep.mubr.bf16.mxu0 0
    %401 = vmatmul.mubr.bf16.gmra.mxu0 %v204
    %v402 = vpop.f32.mrf.mxu0
    %v403 = vadd.f32 %v101, %v402
    %v404 = vpop.f32.mrf.mxu0
    %v405 = vadd.f32 %v105, %v404
    %v406 = vpop.f32.mrf.mxu0
    %v407 = vadd.f32 %v101, %v406
    %v408 = vpop.f32.mrf.mxu0
    %v409 = vadd.f32 %v105, %v408
    %410 = vmatprep.mubr.bf16.mxu0 0
    %411 = vmatmul.mubr.bf16.gmra.mxu0 %v207
    %v412 = vpop.f32.mrf.mxu0
    %v413 = vadd.f32 %v101, %v412
    %v414 = vpop.f32.mrf.mxu0
    %v415 = vadd.f32 %v105, %v414
    %v416 = vpop.f32.mrf.mxu0
    %v417 = vadd.f32 %v101, %v416
    %v418 = vpop.f32.mrf.mxu0
    %v419 = vadd.f32 %v105, %v418
    %420 = vmatprep.mubr.bf16.mxu0 0
    %421 = vmatmul.mubr.bf16.gmra.mxu0 %v210
    %v422 = vpop.f32.mrf.mxu0
    %v423 = vadd.f32 %v101, %v422
    %v424 = vpop.f32.mrf.mxu0
    %v425 = vadd.f32 %v105, %v424
    %v426 = vpop.f32.mrf.mxu0
    %v427 = vadd.f32 %v101, %v426
    %v428 = vpop.f32.mrf.mxu0
    %v429 = vadd.f32 %v105, %v428
    %430 = vmatprep.mubr.bf16.mxu0 0
    %431 = vmatmul.mubr.bf16.gmra.mxu0 %v213
    %v432 = vpop.f32.mrf.mxu0
    %v433 = vadd.f32 %v101, %v432
    %v434 = vpop.f32.mrf.mxu0
    %v435 = vadd.f32 %v105, %v434
    %v436 = vpop.f32.mrf.mxu0
    %v437 = vadd.f32 %v101, %v436
    %v438 = vpop.f32.mrf.mxu0
    %v439 = vadd.f32 %v105, %v438
    %440 = vdwg.mxu0
    %vm441 = vcmp.gt.f32.partialorder %v250, 0.0
    %vm442 = vcmp.gt.f32.partialorder %v252, 0.0
    %vm443 = vcmp.gt.f32.partialorder %v363, 0.0
    %vm444 = vcmp.gt.f32.partialorder %v365, 0.0
    %vm445 = vcmp.gt.f32.partialorder %v254, 0.0
    %vm446 = vcmp.gt.f32.partialorder %v256, 0.0
    %vm447 = vcmp.gt.f32.partialorder %v367, 0.0
    %vm448 = vcmp.gt.f32.partialorder %v369, 0.0
    %vm449 = vcmp.gt.f32.partialorder %v260, 0.0
    %vm450 = vcmp.gt.f32.partialorder %v262, 0.0
    %vm451 = vcmp.gt.f32.partialorder %v373, 0.0
    %vm452 = vcmp.gt.f32.partialorder %v375, 0.0
    %vm453 = vcmp.gt.f32.partialorder %v264, 0.0
    %vm454 = vcmp.gt.f32.partialorder %v266, 0.0
    %vm455 = vcmp.gt.f32.partialorder %v377, 0.0
    %vm456 = vcmp.gt.f32.partialorder %v379, 0.0
    %vm457 = vcmp.gt.f32.partialorder %v270, 0.0
    %vm458 = vcmp.gt.f32.partialorder %v272, 0.0
    %vm459 = vcmp.gt.f32.partialorder %v383, 0.0
    %vm460 = vcmp.gt.f32.partialorder %v385, 0.0
    %vm461 = vcmp.gt.f32.partialorder %v274, 0.0
    %vm462 = vcmp.gt.f32.partialorder %v276, 0.0
    %vm463 = vcmp.gt.f32.partialorder %v387, 0.0
    %vm464 = vcmp.gt.f32.partialorder %v389, 0.0
    %vm465 = vcmp.gt.f32.partialorder %v280, 0.0
    %vm466 = vcmp.gt.f32.partialorder %v282, 0.0
    %vm467 = vcmp.gt.f32.partialorder %v393, 0.0
    %vm468 = vcmp.gt.f32.partialorder %v395, 0.0
    %vm469 = vcmp.gt.f32.partialorder %v284, 0.0
    %vm470 = vcmp.gt.f32.partialorder %v286, 0.0
    %vm471 = vcmp.gt.f32.partialorder %v397, 0.0
    %vm472 = vcmp.gt.f32.partialorder %v399, 0.0
    %vm473 = vcmp.gt.f32.partialorder %v290, 0.0
    %vm474 = vcmp.gt.f32.partialorder %v292, 0.0
    %vm475 = vcmp.gt.f32.partialorder %v403, 0.0
    %vm476 = vcmp.gt.f32.partialorder %v405, 0.0
    %vm477 = vcmp.gt.f32.partialorder %v294, 0.0
    %vm478 = vcmp.gt.f32.partialorder %v296, 0.0
    %vm479 = vcmp.gt.f32.partialorder %v407, 0.0
    %vm480 = vcmp.gt.f32.partialorder %v409, 0.0
    %vm481 = vcmp.gt.f32.partialorder %v300, 0.0
    %vm482 = vcmp.gt.f32.partialorder %v302, 0.0
    %vm483 = vcmp.gt.f32.partialorder %v413, 0.0
    %vm484 = vcmp.gt.f32.partialorder %v415, 0.0
    %vm485 = vcmp.gt.f32.partialorder %v304, 0.0
    %vm486 = vcmp.gt.f32.partialorder %v306, 0.0
    %vm487 = vcmp.gt.f32.partialorder %v417, 0.0
    %vm488 = vcmp.gt.f32.partialorder %v419, 0.0
    %vm489 = vcmp.gt.f32.partialorder %v310, 0.0
    %vm490 = vcmp.gt.f32.partialorder %v312, 0.0
    %vm491 = vcmp.gt.f32.partialorder %v423, 0.0
    %vm492 = vcmp.gt.f32.partialorder %v425, 0.0
    %vm493 = vcmp.gt.f32.partialorder %v314, 0.0
    %vm494 = vcmp.gt.f32.partialorder %v316, 0.0
    %vm495 = vcmp.gt.f32.partialorder %v427, 0.0
    %vm496 = vcmp.gt.f32.partialorder %v429, 0.0
    %vm497 = vcmp.gt.f32.partialorder %v320, 0.0
    %vm498 = vcmp.gt.f32.partialorder %v322, 0.0
    %vm499 = vcmp.gt.f32.partialorder %v433, 0.0
    %vm500 = vcmp.gt.f32.partialorder %v435, 0.0
    %vm501 = vcmp.gt.f32.partialorder %v324, 0.0
    %vm502 = vcmp.gt.f32.partialorder %v326, 0.0
    %vm503 = vcmp.gt.f32.partialorder %v437, 0.0
    %vm504 = vcmp.gt.f32.partialorder %v439, 0.0
    %v505 = vmul.f32 %v250, 1.442695
    %v506 = vpow.pop %v505
    %v507 = vmul.f32 %v252, 1.442695
    %v508 = vpow.pop %v507
    %v509 = vmul.f32 %v363, 1.442695
    %v510 = vpow.pop %v509
    %v511 = vmul.f32 %v365, 1.442695
    %v512 = vpow.pop %v511
    %v513 = vmul.f32 %v254, 1.442695
    %v514 = vpow.pop %v513
    %v515 = vmul.f32 %v256, 1.442695
    %v516 = vpow.pop %v515
    %v517 = vmul.f32 %v367, 1.442695
    %v518 = vpow.pop %v517
    %v519 = vmul.f32 %v369, 1.442695
    %v520 = vpow.pop %v519
    %v521 = vmul.f32 %v260, 1.442695
    %v522 = vpow.pop %v521
    %v523 = vmul.f32 %v262, 1.442695
    %v524 = vpow.pop %v523
    %v525 = vmul.f32 %v373, 1.442695
    %v526 = vpow.pop %v525
    %v527 = vmul.f32 %v375, 1.442695
    %v528 = vpow.pop %v527
    %v529 = vmul.f32 %v264, 1.442695
    %v530 = vpow.pop %v529
    %v531 = vmul.f32 %v266, 1.442695
    %v532 = vpow.pop %v531
    %v533 = vmul.f32 %v377, 1.442695
    %v534 = vpow.pop %v533
    %v535 = vmul.f32 %v379, 1.442695
    %v536 = vpow.pop %v535
    %v537 = vmul.f32 %v270, 1.442695
    %v538 = vpow.pop %v537
    %v539 = vmul.f32 %v272, 1.442695
    %v540 = vpow.pop %v539
    %v541 = vmul.f32 %v383, 1.442695
    %v542 = vpow.pop %v541
    %v543 = vmul.f32 %v385, 1.442695
    %v544 = vpow.pop %v543
    %v545 = vmul.f32 %v274, 1.442695
    %v546 = vpow.pop %v545
    %v547 = vmul.f32 %v276, 1.442695
    %v548 = vpow.pop %v547
    %v549 = vmul.f32 %v387, 1.442695
    %v550 = vpow.pop %v549
    %v551 = vmul.f32 %v389, 1.442695
    %v552 = vpow.pop %v551
    %v553 = vmul.f32 %v280, 1.442695
    %v554 = vpow.pop %v553
    %v555 = vmul.f32 %v282, 1.442695
    %v556 = vpow.pop %v555
    %v557 = vmul.f32 %v393, 1.442695
    %v558 = vpow.pop %v557
    %v559 = vmul.f32 %v395, 1.442695
    %v560 = vpow.pop %v559
    %v561 = vmul.f32 %v284, 1.442695
    %v562 = vpow.pop %v561
    %v563 = vmul.f32 %v286, 1.442695
    %v564 = vpow.pop %v563
    %v565 = vmul.f32 %v397, 1.442695
    %v566 = vpow.pop %v565
    %v567 = vmul.f32 %v399, 1.442695
    %v568 = vpow.pop %v567
    %v569 = vmul.f32 %v290, 1.442695
    %v570 = vpow.pop %v569
    %v571 = vmul.f32 %v292, 1.442695
    %v572 = vpow.pop %v571
    %v573 = vmul.f32 %v403, 1.442695
    %v574 = vpow.pop %v573
    %v575 = vmul.f32 %v405, 1.442695
    %v576 = vpow.pop %v575
    %v577 = vmul.f32 %v294, 1.442695
    %v578 = vpow.pop %v577
    %v579 = vmul.f32 %v296, 1.442695
    %v580 = vpow.pop %v579
    %v581 = vmul.f32 %v407, 1.442695
    %v582 = vpow.pop %v581
    %v583 = vmul.f32 %v409, 1.442695
    %v584 = vpow.pop %v583
    %v585 = vmul.f32 %v300, 1.442695
    %v586 = vpow.pop %v585
    %v587 = vmul.f32 %v302, 1.442695
    %v588 = vpow.pop %v587
    %v589 = vmul.f32 %v413, 1.442695
    %v590 = vpow.pop %v589
    %v591 = vmul.f32 %v415, 1.442695
    %v592 = vpow.pop %v591
    %v593 = vmul.f32 %v304, 1.442695
    %v594 = vpow.pop %v593
    %v595 = vmul.f32 %v306, 1.442695
    %v596 = vpow.pop %v595
    %v597 = vmul.f32 %v417, 1.442695
    %v598 = vpow.pop %v597
    %v599 = vmul.f32 %v419, 1.442695
    %v600 = vpow.pop %v599
    %v601 = vmul.f32 %v310, 1.442695
    %v602 = vpow.pop %v601
    %v603 = vmul.f32 %v312, 1.442695
    %v604 = vpow.pop %v603
    %v605 = vmul.f32 %v423, 1.442695
    %v606 = vpow.pop %v605
    %v607 = vmul.f32 %v425, 1.442695
    %v608 = vpow.pop %v607
    %v609 = vmul.f32 %v314, 1.442695
    %v610 = vpow.pop %v609
    %v611 = vmul.f32 %v316, 1.442695
    %v612 = vpow.pop %v611
    %v613 = vmul.f32 %v427, 1.442695
    %v614 = vpow.pop %v613
    %v615 = vmul.f32 %v429, 1.442695
    %v616 = vpow.pop %v615
    %v617 = vmul.f32 %v320, 1.442695
    %v618 = vpow.pop %v617
    %v619 = vmul.f32 %v322, 1.442695
    %v620 = vpow.pop %v619
    %v621 = vmul.f32 %v433, 1.442695
    %v622 = vpow.pop %v621
    %v623 = vmul.f32 %v435, 1.442695
    %v624 = vpow.pop %v623
    %v625 = vmul.f32 %v324, 1.442695
    %v626 = vpow.pop %v625
    %v627 = vmul.f32 %v326, 1.442695
    %v628 = vpow.pop %v627
    %v629 = vmul.f32 %v437, 1.442695
    %v630 = vpow.pop %v629
    %v631 = vmul.f32 %v439, 1.442695
    %v632 = vpow.pop %v631
    %v633 = vsub.f32 %v506, 1.0
    %v634 = vsub.f32 %v508, 1.0
    %v635 = vsub.f32 %v510, 1.0
    %v636 = vsub.f32 %v512, 1.0
    %v637 = vsub.f32 %v514, 1.0
    %v638 = vsub.f32 %v516, 1.0
    %v639 = vsub.f32 %v518, 1.0
    %v640 = vsub.f32 %v520, 1.0
    %v641 = vsub.f32 %v522, 1.0
    %v642 = vsub.f32 %v524, 1.0
    %v643 = vsub.f32 %v526, 1.0
    %v644 = vsub.f32 %v528, 1.0
    %v645 = vsub.f32 %v530, 1.0
    %v646 = vsub.f32 %v532, 1.0
    %v647 = vsub.f32 %v534, 1.0
    %v648 = vsub.f32 %v536, 1.0
    %v649 = vsub.f32 %v538, 1.0
    %v650 = vsub.f32 %v540, 1.0
    %v651 = vsub.f32 %v542, 1.0
    %v652 = vsub.f32 %v544, 1.0
    %v653 = vsub.f32 %v546, 1.0
    %v654 = vsub.f32 %v548, 1.0
    %v655 = vsub.f32 %v550, 1.0
    %v656 = vsub.f32 %v552, 1.0
    %v657 = vsub.f32 %v554, 1.0
    %v658 = vsub.f32 %v556, 1.0
    %v659 = vsub.f32 %v558, 1.0
    %v660 = vsub.f32 %v560, 1.0
    %v661 = vsub.f32 %v562, 1.0
    %v662 = vsub.f32 %v564, 1.0
    %v663 = vsub.f32 %v566, 1.0
    %v664 = vsub.f32 %v568, 1.0
    %v665 = vsub.f32 %v570, 1.0
    %v666 = vsub.f32 %v572, 1.0
    %v667 = vsub.f32 %v574, 1.0
    %v668 = vsub.f32 %v576, 1.0
    %v669 = vsub.f32 %v578, 1.0
    %v670 = vsub.f32 %v580, 1.0
    %v671 = vsub.f32 %v582, 1.0
    %v672 = vsub.f32 %v584, 1.0
    %v673 = vsub.f32 %v586, 1.0
    %v674 = vsub.f32 %v588, 1.0
    %v675 = vsub.f32 %v590, 1.0
    %v676 = vsub.f32 %v592, 1.0
    %v677 = vsub.f32 %v594, 1.0
    %v678 = vsub.f32 %v596, 1.0
    %v679 = vsub.f32 %v598, 1.0
    %v680 = vsub.f32 %v600, 1.0
    %v681 = vsub.f32 %v602, 1.0
    %v682 = vsub.f32 %v604, 1.0
    %v683 = vsub.f32 %v606, 1.0
    %v684 = vsub.f32 %v608, 1.0
    %v685 = vsub.f32 %v610, 1.0
    %v686 = vsub.f32 %v612, 1.0
    %v687 = vsub.f32 %v614, 1.0
    %v688 = vsub.f32 %v616, 1.0
    %v689 = vsub.f32 %v618, 1.0
    %v690 = vsub.f32 %v620, 1.0
    %v691 = vsub.f32 %v622, 1.0
    %v692 = vsub.f32 %v624, 1.0
    %v693 = vsub.f32 %v626, 1.0
    %v694 = vsub.f32 %v628, 1.0
    %v695 = vsub.f32 %v630, 1.0
    %v696 = vsub.f32 %v632, 1.0
    %v697 = vsel %vm441, %v250, %v633
    %v698 = vsel %vm442, %v252, %v634
    %v699 = vsel %vm443, %v363, %v635
    %v700 = vsel %vm444, %v365, %v636
    %v701 = vsel %vm445, %v254, %v637
    %v702 = vsel %vm446, %v256, %v638
    %v703 = vsel %vm447, %v367, %v639
    %v704 = vsel %vm448, %v369, %v640
    %v705 = vsel %vm449, %v260, %v641
    %v706 = vsel %vm450, %v262, %v642
    %v707 = vsel %vm451, %v373, %v643
    %v708 = vsel %vm452, %v375, %v644
    %v709 = vsel %vm453, %v264, %v645
    %v710 = vsel %vm454, %v266, %v646
    %v711 = vsel %vm455, %v377, %v647
    %v712 = vsel %vm456, %v379, %v648
    %v713 = vsel %vm457, %v270, %v649
    %v714 = vsel %vm458, %v272, %v650
    %v715 = vsel %vm459, %v383, %v651
    %v716 = vsel %vm460, %v385, %v652
    %v717 = vsel %vm461, %v274, %v653
    %v718 = vsel %vm462, %v276, %v654
    %v719 = vsel %vm463, %v387, %v655
    %v720 = vsel %vm464, %v389, %v656
    %v721 = vsel %vm465, %v280, %v657
    %v722 = vsel %vm466, %v282, %v658
    %v723 = vsel %vm467, %v393, %v659
    %v724 = vsel %vm468, %v395, %v660
    %v725 = vsel %vm469, %v284, %v661
    %v726 = vsel %vm470, %v286, %v662
    %v727 = vsel %vm471, %v397, %v663
    %v728 = vsel %vm472, %v399, %v664
    %v729 = vsel %vm473, %v290, %v665
    %v730 = vsel %vm474, %v292, %v666
    %v731 = vsel %vm475, %v403, %v667
    %v732 = vsel %vm476, %v405, %v668
    %v733 = vsel %vm477, %v294, %v669
    %v734 = vsel %vm478, %v296, %v670
    %v735 = vsel %vm479, %v407, %v671
    %v736 = vsel %vm480, %v409, %v672
    %v737 = vsel %vm481, %v300, %v673
    %v738 = vsel %vm482, %v302, %v674
    %v739 = vsel %vm483, %v413, %v675
    %v740 = vsel %vm484, %v415, %v676
    %v741 = vsel %vm485, %v304, %v677
    %v742 = vsel %vm486, %v306, %v678
    %v743 = vsel %vm487, %v417, %v679
    %v744 = vsel %vm488, %v419, %v680
    %v745 = vsel %vm489, %v310, %v681
    %v746 = vsel %vm490, %v312, %v682
    %v747 = vsel %vm491, %v423, %v683
    %v748 = vsel %vm492, %v425, %v684
    %v749 = vsel %vm493, %v314, %v685
    %v750 = vsel %vm494, %v316, %v686
    %v751 = vsel %vm495, %v427, %v687
    %v752 = vsel %vm496, %v429, %v688
    %v753 = vsel %vm497, %v320, %v689
    %v754 = vsel %vm498, %v322, %v690
    %v755 = vsel %vm499, %v433, %v691
    %v756 = vsel %vm500, %v435, %v692
    %v757 = vsel %vm501, %v324, %v693
    %v758 = vsel %vm502, %v326, %v694
    %v759 = vsel %vm503, %v437, %v695
    %v760 = vsel %vm504, %v439, %v696
    %v761 = vpack.c.bf16 %v701, %v697
    %v762 = vpack.c.bf16 %v702, %v698
    %v763 = vpack.c.bf16 %v703, %v699
    %v764 = vpack.c.bf16 %v704, %v700
    %v765 = vpack.c.bf16 %v709, %v705
    %v766 = vpack.c.bf16 %v710, %v706
    %v767 = vpack.c.bf16 %v711, %v707
    %v768 = vpack.c.bf16 %v712, %v708
    %v769 = vpack.c.bf16 %v717, %v713
    %v770 = vpack.c.bf16 %v718, %v714
    %v771 = vpack.c.bf16 %v719, %v715
    %v772 = vpack.c.bf16 %v720, %v716
    %v773 = vpack.c.bf16 %v725, %v721
    %v774 = vpack.c.bf16 %v726, %v722
    %v775 = vpack.c.bf16 %v727, %v723
    %v776 = vpack.c.bf16 %v728, %v724
    %v777 = vpack.c.bf16 %v733, %v729
    %v778 = vpack.c.bf16 %v734, %v730
    %v779 = vpack.c.bf16 %v735, %v731
    %v780 = vpack.c.bf16 %v736, %v732
    %v781 = vpack.c.bf16 %v741, %v737
    %v782 = vpack.c.bf16 %v742, %v738
    %v783 = vpack.c.bf16 %v743, %v739
    %v784 = vpack.c.bf16 %v744, %v740
    %v785 = vpack.c.bf16 %v749, %v745
    %v786 = vpack.c.bf16 %v750, %v746
    %v787 = vpack.c.bf16 %v751, %v747
    %v788 = vpack.c.bf16 %v752, %v748
    %v789 = vpack.c.bf16 %v757, %v753
    %v790 = vpack.c.bf16 %v758, %v754
    %v791 = vpack.c.bf16 %v759, %v755
    %v792 = vpack.c.bf16 %v760, %v756
    %v793 = vld [vmem:[#allocation3] sm:$0xff]
    %v794 = vld [vmem:[#allocation3 + $0x8] sm:$0xff]
    %v795 = vld [vmem:[#allocation3 + $0x10] sm:$0xff]
    %v796 = vld [vmem:[#allocation3 + $0x18] sm:$0xff]
    %v797 = vld [vmem:[#allocation3 + $0x20] sm:$0xff]
    %v798 = vld [vmem:[#allocation3 + $0x28] sm:$0xff]
    %v799 = vld [vmem:[#allocation3 + $0x30] sm:$0xff]
    %v800 = vld [vmem:[#allocation3 + $0x38] sm:$0xff]
    %v801 = vld [vmem:[#allocation3 + $0x40] sm:$0xff]
    %v802 = vld [vmem:[#allocation3 + $0x48] sm:$0xff]
    %v803 = vld [vmem:[#allocation3 + $0x50] sm:$0xff]
    %v804 = vld [vmem:[#allocation3 + $0x58] sm:$0xff]
    %v805 = vld [vmem:[#allocation3 + $0x60] sm:$0xff]
    %v806 = vld [vmem:[#allocation3 + $0x68] sm:$0xff]
    %v807 = vld [vmem:[#allocation3 + $0x70] sm:$0xff]
    %v808 = vld [vmem:[#allocation3 + $0x78] sm:$0xff]
    %v809 = vld [vmem:[#allocation3 + $0x80] sm:$0xff]
    %v810 = vld [vmem:[#allocation3 + $0x88] sm:$0xff]
    %v811 = vld [vmem:[#allocation3 + $0x90] sm:$0xff]
    %v812 = vld [vmem:[#allocation3 + $0x98] sm:$0xff]
    %v813 = vld [vmem:[#allocation3 + $0xa0] sm:$0xff]
    %v814 = vld [vmem:[#allocation3 + $0xa8] sm:$0xff]
    %v815 = vld [vmem:[#allocation3 + $0xb0] sm:$0xff]
    %v816 = vld [vmem:[#allocation3 + $0xb8] sm:$0xff]
    %v817 = vld [vmem:[#allocation3 + $0xc0] sm:$0xff]
    %v818 = vld [vmem:[#allocation3 + $0xc8] sm:$0xff]
    %v819 = vld [vmem:[#allocation3 + $0xd0] sm:$0xff]
    %v820 = vld [vmem:[#allocation3 + $0xd8] sm:$0xff]
    %v821 = vld [vmem:[#allocation3 + $0xe0] sm:$0xff]
    %v822 = vld [vmem:[#allocation3 + $0xe8] sm:$0xff]
    %v823 = vld [vmem:[#allocation3 + $0xf0] sm:$0xff]
    %v824 = vld [vmem:[#allocation3 + $0xf8] sm:$0xff]
    %v825 = vld [vmem:[#allocation3 + $0x100] sm:$0xff]
    %v826 = vld [vmem:[#allocation3 + $0x108] sm:$0xff]
    %v827 = vld [vmem:[#allocation3 + $0x110] sm:$0xff]
    %v828 = vld [vmem:[#allocation3 + $0x118] sm:$0xff]
    %v829 = vld [vmem:[#allocation3 + $0x120] sm:$0xff]
    %v830 = vld [vmem:[#allocation3 + $0x128] sm:$0xff]
    %v831 = vld [vmem:[#allocation3 + $0x130] sm:$0xff]
    %v832 = vld [vmem:[#allocation3 + $0x138] sm:$0xff]
    %v833 = vld [vmem:[#allocation3 + $0x140] sm:$0xff]
    %v834 = vld [vmem:[#allocation3 + $0x148] sm:$0xff]
    %v835 = vld [vmem:[#allocation3 + $0x150] sm:$0xff]
    %v836 = vld [vmem:[#allocation3 + $0x158] sm:$0xff]
    %v837 = vld [vmem:[#allocation3 + $0x160] sm:$0xff]
    %v838 = vld [vmem:[#allocation3 + $0x168] sm:$0xff]
    %v839 = vld [vmem:[#allocation3 + $0x170] sm:$0xff]
    %v840 = vld [vmem:[#allocation3 + $0x178] sm:$0xff]
    %v841 = vld [vmem:[#allocation3 + $0x180] sm:$0xff]
    %v842 = vld [vmem:[#allocation3 + $0x188] sm:$0xff]
    %v843 = vld [vmem:[#allocation3 + $0x190] sm:$0xff]
    %v844 = vld [vmem:[#allocation3 + $0x198] sm:$0xff]
    %v845 = vld [vmem:[#allocation3 + $0x1a0] sm:$0xff]
    %v846 = vld [vmem:[#allocation3 + $0x1a8] sm:$0xff]
    %v847 = vld [vmem:[#allocation3 + $0x1b0] sm:$0xff]
    %v848 = vld [vmem:[#allocation3 + $0x1b8] sm:$0xff]
    %v849 = vld [vmem:[#allocation3 + $0x1c0] sm:$0xff]
    %v850 = vld [vmem:[#allocation3 + $0x1c8] sm:$0xff]
    %v851 = vld [vmem:[#allocation3 + $0x1d0] sm:$0xff]
    %v852 = vld [vmem:[#allocation3 + $0x1d8] sm:$0xff]
    %v853 = vld [vmem:[#allocation3 + $0x1e0] sm:$0xff]
    %v854 = vld [vmem:[#allocation3 + $0x1e8] sm:$0xff]
    %v855 = vld [vmem:[#allocation3 + $0x1f0] sm:$0xff]
    %v856 = vld [vmem:[#allocation3 + $0x1f8] sm:$0xff]
    %v857 = vld [vmem:[%s4] sm:$0x3]
    %v859 = vlaneseq
    %v860 = vshrl.u32 %v859, 7
    %v861 = vsub.s32 0, %v860
    %v862 = vrot.slane %v857, %v861
    %v863 = vlaneseq
    %v864 = vshrl.u32 %v863, 7
    %v865 = vsub.s32 1, %v864
    %v866 = vrot.slane %v857, %v865
    %v933 = vunpack.c.l.b16 %v793
    %v934 = vunpack.c.h.b16 %v793
    %v935 = vunpack.c.l.b16 %v794
    %v936 = vunpack.c.h.b16 %v794
    %v937 = vunpack.c.l.b16 %v795
    %v938 = vunpack.c.h.b16 %v795
    %v939 = vunpack.c.l.b16 %v796
    %v940 = vunpack.c.h.b16 %v796
    %v941 = vunpack.c.l.b16 %v797
    %v942 = vunpack.c.h.b16 %v797
    %v943 = vunpack.c.l.b16 %v798
    %v944 = vunpack.c.h.b16 %v798
    %v945 = vunpack.c.l.b16 %v799
    %v946 = vunpack.c.h.b16 %v799
    %v947 = vunpack.c.l.b16 %v800
    %v948 = vunpack.c.h.b16 %v800
    %v949 = vunpack.c.l.b16 %v801
    %v950 = vunpack.c.h.b16 %v801
    %v951 = vunpack.c.l.b16 %v802
    %v952 = vunpack.c.h.b16 %v802
    %v953 = vunpack.c.l.b16 %v803
    %v954 = vunpack.c.h.b16 %v803
    %v955 = vunpack.c.l.b16 %v804
    %v956 = vunpack.c.h.b16 %v804
    %v957 = vunpack.c.l.b16 %v805
    %v958 = vunpack.c.h.b16 %v805
    %v959 = vunpack.c.l.b16 %v806
    %v960 = vunpack.c.h.b16 %v806
    %v961 = vunpack.c.l.b16 %v807
    %v962 = vunpack.c.h.b16 %v807
    %v963 = vunpack.c.l.b16 %v808
    %v964 = vunpack.c.h.b16 %v808
    %v965 = vunpack.c.l.b16 %v809
    %v966 = vunpack.c.h.b16 %v809
    %v967 = vunpack.c.l.b16 %v810
    %v968 = vunpack.c.h.b16 %v810
    %v969 = vunpack.c.l.b16 %v811
    %v970 = vunpack.c.h.b16 %v811
    %v971 = vunpack.c.l.b16 %v812
    %v972 = vunpack.c.h.b16 %v812
    %v973 = vunpack.c.l.b16 %v813
    %v974 = vunpack.c.h.b16 %v813
    %v975 = vunpack.c.l.b16 %v814
    %v976 = vunpack.c.h.b16 %v814
    %v977 = vunpack.c.l.b16 %v815
    %v978 = vunpack.c.h.b16 %v815
    %v979 = vunpack.c.l.b16 %v816
    %v980 = vunpack.c.h.b16 %v816
    %v981 = vunpack.c.l.b16 %v817
    %v982 = vunpack.c.h.b16 %v817
    %v983 = vunpack.c.l.b16 %v818
    %v984 = vunpack.c.h.b16 %v818
    %v985 = vunpack.c.l.b16 %v819
    %v986 = vunpack.c.h.b16 %v819
    %v987 = vunpack.c.l.b16 %v820
    %v988 = vunpack.c.h.b16 %v820
    %v989 = vunpack.c.l.b16 %v821
    %v990 = vunpack.c.h.b16 %v821
    %v991 = vunpack.c.l.b16 %v822
    %v992 = vunpack.c.h.b16 %v822
    %v993 = vunpack.c.l.b16 %v823
    %v994 = vunpack.c.h.b16 %v823
    %v995 = vunpack.c.l.b16 %v824
    %v996 = vunpack.c.h.b16 %v824
    %v997 = vunpack.c.l.b16 %v825
    %v998 = vunpack.c.h.b16 %v825
    %v999 = vunpack.c.l.b16 %v826
    %v1000 = vunpack.c.h.b16 %v826
    %v1001 = vunpack.c.l.b16 %v827
    %v1002 = vunpack.c.h.b16 %v827
    %v1003 = vunpack.c.l.b16 %v828
    %v1004 = vunpack.c.h.b16 %v828
    %v1005 = vunpack.c.l.b16 %v829
    %v1006 = vunpack.c.h.b16 %v829
    %v1007 = vunpack.c.l.b16 %v830
    %v1008 = vunpack.c.h.b16 %v830
    %v1009 = vunpack.c.l.b16 %v831
    %v1010 = vunpack.c.h.b16 %v831
    %v1011 = vunpack.c.l.b16 %v832
    %v1012 = vunpack.c.h.b16 %v832
    %v1013 = vunpack.c.l.b16 %v833
    %v1014 = vunpack.c.h.b16 %v833
    %v1015 = vunpack.c.l.b16 %v834
    %v1016 = vunpack.c.h.b16 %v834
    %v1017 = vunpack.c.l.b16 %v835
    %v1018 = vunpack.c.h.b16 %v835
    %v1019 = vunpack.c.l.b16 %v836
    %v1020 = vunpack.c.h.b16 %v836
    %v1021 = vunpack.c.l.b16 %v837
    %v1022 = vunpack.c.h.b16 %v837
    %v1023 = vunpack.c.l.b16 %v838
    %v1024 = vunpack.c.h.b16 %v838
    %v1025 = vunpack.c.l.b16 %v839
    %v1026 = vunpack.c.h.b16 %v839
    %v1027 = vunpack.c.l.b16 %v840
    %v1028 = vunpack.c.h.b16 %v840
    %v1029 = vunpack.c.l.b16 %v841
    %v1030 = vunpack.c.h.b16 %v841
    %v1031 = vunpack.c.l.b16 %v842
    %v1032 = vunpack.c.h.b16 %v842
    %v1033 = vunpack.c.l.b16 %v843
    %v1034 = vunpack.c.h.b16 %v843
    %v1035 = vunpack.c.l.b16 %v844
    %v1036 = vunpack.c.h.b16 %v844
    %v1037 = vunpack.c.l.b16 %v845
    %v1038 = vunpack.c.h.b16 %v845
    %v1039 = vunpack.c.l.b16 %v846
    %v1040 = vunpack.c.h.b16 %v846
    %v1041 = vunpack.c.l.b16 %v847
    %v1042 = vunpack.c.h.b16 %v847
    %v1043 = vunpack.c.l.b16 %v848
    %v1044 = vunpack.c.h.b16 %v848
    %v1045 = vunpack.c.l.b16 %v849
    %v1046 = vunpack.c.h.b16 %v849
    %v1047 = vunpack.c.l.b16 %v850
    %v1048 = vunpack.c.h.b16 %v850
    %v1049 = vunpack.c.l.b16 %v851
    %v1050 = vunpack.c.h.b16 %v851
    %v1051 = vunpack.c.l.b16 %v852
    %v1052 = vunpack.c.h.b16 %v852
    %v1053 = vunpack.c.l.b16 %v853
    %v1054 = vunpack.c.h.b16 %v853
    %v1055 = vunpack.c.l.b16 %v854
    %v1056 = vunpack.c.h.b16 %v854
    %v1057 = vunpack.c.l.b16 %v855
    %v1058 = vunpack.c.h.b16 %v855
    %v1059 = vunpack.c.l.b16 %v856
    %v1060 = vunpack.c.h.b16 %v856
    %v1061 = vpack.c.b16 %v935, %v933
    %v1062 = vpack.c.b16 %v936, %v934
    %v1063 = vpack.c.b16 %v939, %v937
    %v1064 = vpack.c.b16 %v940, %v938
    %v1065 = vpack.c.b16 %v943, %v941
    %v1066 = vpack.c.b16 %v944, %v942
    %v1067 = vpack.c.b16 %v947, %v945
    %v1068 = vpack.c.b16 %v948, %v946
    %v1069 = vpack.c.b16 %v951, %v949
    %v1070 = vpack.c.b16 %v952, %v950
    %v1071 = vpack.c.b16 %v955, %v953
    %v1072 = vpack.c.b16 %v956, %v954
    %v1073 = vpack.c.b16 %v959, %v957
    %v1074 = vpack.c.b16 %v960, %v958
    %v1075 = vpack.c.b16 %v963, %v961
    %v1076 = vpack.c.b16 %v964, %v962
    %v1077 = vpack.c.b16 %v967, %v965
    %v1078 = vpack.c.b16 %v968, %v966
    %v1079 = vpack.c.b16 %v971, %v969
    %v1080 = vpack.c.b16 %v972, %v970
    %v1081 = vpack.c.b16 %v975, %v973
    %v1082 = vpack.c.b16 %v976, %v974
    %v1083 = vpack.c.b16 %v979, %v977
    %v1084 = vpack.c.b16 %v980, %v978
    %v1085 = vpack.c.b16 %v983, %v981
    %v1086 = vpack.c.b16 %v984, %v982
    %v1087 = vpack.c.b16 %v987, %v985
    %v1088 = vpack.c.b16 %v988, %v986
    %v1089 = vpack.c.b16 %v991, %v989
    %v1090 = vpack.c.b16 %v992, %v990
    %v1091 = vpack.c.b16 %v995, %v993
    %v1092 = vpack.c.b16 %v996, %v994
    %v1093 = vpack.c.b16 %v999, %v997
    %v1094 = vpack.c.b16 %v1000, %v998
    %v1095 = vpack.c.b16 %v1003, %v1001
    %v1096 = vpack.c.b16 %v1004, %v1002
    %v1097 = vpack.c.b16 %v1007, %v1005
    %v1098 = vpack.c.b16 %v1008, %v1006
    %v1099 = vpack.c.b16 %v1011, %v1009
    %v1100 = vpack.c.b16 %v1012, %v1010
    %v1101 = vpack.c.b16 %v1015, %v1013
    %v1102 = vpack.c.b16 %v1016, %v1014
    %v1103 = vpack.c.b16 %v1019, %v1017
    %v1104 = vpack.c.b16 %v1020, %v1018
    %v1105 = vpack.c.b16 %v1023, %v1021
    %v1106 = vpack.c.b16 %v1024, %v1022
    %v1107 = vpack.c.b16 %v1027, %v1025
    %v1108 = vpack.c.b16 %v1028, %v1026
    %v1109 = vpack.c.b16 %v1031, %v1029
    %v1110 = vpack.c.b16 %v1032, %v1030
    %v1111 = vpack.c.b16 %v1035, %v1033
    %v1112 = vpack.c.b16 %v1036, %v1034
    %v1113 = vpack.c.b16 %v1039, %v1037
    %v1114 = vpack.c.b16 %v1040, %v1038
    %v1115 = vpack.c.b16 %v1043, %v1041
    %v1116 = vpack.c.b16 %v1044, %v1042
    %v1117 = vpack.c.b16 %v1047, %v1045
    %v1118 = vpack.c.b16 %v1048, %v1046
    %v1119 = vpack.c.b16 %v1051, %v1049
    %v1120 = vpack.c.b16 %v1052, %v1050
    %v1121 = vpack.c.b16 %v1055, %v1053
    %v1122 = vpack.c.b16 %v1056, %v1054
    %v1123 = vpack.c.b16 %v1059, %v1057
    %v1124 = vpack.c.b16 %v1060, %v1058
    %1189 = vmatprep.subr.bf16.mxu0 %v1076
    %1190 = vmatpush1.bf16.msra.mxu0 %v1075
    %1191 = vmatprep.subr.bf16.mxu0 %v1074
    %1192 = vmatpush1.bf16.msra.mxu0 %v1073
    %1193 = vmatprep.subr.bf16.mxu0 %v1072
    %1194 = vmatpush1.bf16.msra.mxu0 %v1071
    %1195 = vmatprep.subr.bf16.mxu0 %v1070
    %1196 = vmatpush1.bf16.msra.mxu0 %v1069
    %1197 = vmatprep.subr.bf16.mxu0 %v1068
    %1198 = vmatpush1.bf16.msra.mxu0 %v1067
    %1199 = vmatprep.subr.bf16.mxu0 %v1066
    %1200 = vmatpush1.bf16.msra.mxu0 %v1065
    %1201 = vmatprep.subr.bf16.mxu0 %v1064
    %1202 = vmatpush1.bf16.msra.mxu0 %v1063
    %1203 = vmatprep.subr.bf16.mxu0 %v1062
    %1204 = vmatpush1.bf16.msra.mxu0 %v1061
    %1205 = vmatprep.subr.bf16.mxu0 %v1092
    %1206 = vmatpush2.bf16.msra.mxu0 %v1091
    %1207 = vmatprep.subr.bf16.mxu0 %v1090
    %1208 = vmatpush2.bf16.msra.mxu0 %v1089
    %1209 = vmatprep.subr.bf16.mxu0 %v1088
    %1210 = vmatpush2.bf16.msra.mxu0 %v1087
    %1211 = vmatprep.subr.bf16.mxu0 %v1086
    %1212 = vmatpush2.bf16.msra.mxu0 %v1085
    %1213 = vmatprep.subr.bf16.mxu0 %v1084
    %1214 = vmatpush2.bf16.msra.mxu0 %v1083
    %1215 = vmatprep.subr.bf16.mxu0 %v1082
    %1216 = vmatpush2.bf16.msra.mxu0 %v1081
    %1217 = vmatprep.subr.bf16.mxu0 %v1080
    %1218 = vmatpush2.bf16.msra.mxu0 %v1079
    %1219 = vmatprep.subr.bf16.mxu0 %v1078
    %1220 = vmatpush2.bf16.msra.mxu0 %v1077
    %1221 = vmatprep.mubr.bf16.mxu0 %v762
    %1222 = vmatmul.mubr.bf16.gmra.mxu0 %v761
    %v1223 = vpop.f32.mrf.mxu0
    %v1224 = vadd.f32 %v862, %v1223
    %v1225 = vpop.f32.mrf.mxu0
    %v1226 = vadd.f32 %v866, %v1225
    %v1227 = vpop.f32.mrf.mxu0
    %v1228 = vadd.f32 %v862, %v1227
    %v1229 = vpop.f32.mrf.mxu0
    %v1230 = vadd.f32 %v866, %v1229
    %1231 = vmatprep.mubr.bf16.mxu0 %v766
    %1232 = vmatmul.mubr.bf16.gmra.mxu0 %v765
    %v1233 = vpop.f32.mrf.mxu0
    %v1234 = vadd.f32 %v862, %v1233
    %v1235 = vpop.f32.mrf.mxu0
    %v1236 = vadd.f32 %v866, %v1235
    %v1237 = vpop.f32.mrf.mxu0
    %v1238 = vadd.f32 %v862, %v1237
    %v1239 = vpop.f32.mrf.mxu0
    %v1240 = vadd.f32 %v866, %v1239
    %1241 = vmatprep.mubr.bf16.mxu0 %v770
    %1242 = vmatmul.mubr.bf16.gmra.mxu0 %v769
    %v1243 = vpop.f32.mrf.mxu0
    %v1244 = vadd.f32 %v862, %v1243
    %v1245 = vpop.f32.mrf.mxu0
    %v1246 = vadd.f32 %v866, %v1245
    %v1247 = vpop.f32.mrf.mxu0
    %v1248 = vadd.f32 %v862, %v1247
    %v1249 = vpop.f32.mrf.mxu0
    %v1250 = vadd.f32 %v866, %v1249
    %1251 = vmatprep.mubr.bf16.mxu0 %v774
    %1252 = vmatmul.mubr.bf16.gmra.mxu0 %v773
    %v1253 = vpop.f32.mrf.mxu0
    %v1254 = vadd.f32 %v862, %v1253
    %v1255 = vpop.f32.mrf.mxu0
    %v1256 = vadd.f32 %v866, %v1255
    %v1257 = vpop.f32.mrf.mxu0
    %v1258 = vadd.f32 %v862, %v1257
    %v1259 = vpop.f32.mrf.mxu0
    %v1260 = vadd.f32 %v866, %v1259
    %1261 = vmatprep.mubr.bf16.mxu0 %v778
    %1262 = vmatmul.mubr.bf16.gmra.mxu0 %v777
    %v1263 = vpop.f32.mrf.mxu0
    %v1264 = vadd.f32 %v862, %v1263
    %v1265 = vpop.f32.mrf.mxu0
    %v1266 = vadd.f32 %v866, %v1265
    %v1267 = vpop.f32.mrf.mxu0
    %v1268 = vadd.f32 %v862, %v1267
    %v1269 = vpop.f32.mrf.mxu0
    %v1270 = vadd.f32 %v866, %v1269
    %1271 = vmatprep.mubr.bf16.mxu0 %v782
    %1272 = vmatmul.mubr.bf16.gmra.mxu0 %v781
    %v1273 = vpop.f32.mrf.mxu0
    %v1274 = vadd.f32 %v862, %v1273
    %v1275 = vpop.f32.mrf.mxu0
    %v1276 = vadd.f32 %v866, %v1275
    %v1277 = vpop.f32.mrf.mxu0
    %v1278 = vadd.f32 %v862, %v1277
    %v1279 = vpop.f32.mrf.mxu0
    %v1280 = vadd.f32 %v866, %v1279
    %1281 = vmatprep.mubr.bf16.mxu0 %v786
    %1282 = vmatmul.mubr.bf16.gmra.mxu0 %v785
    %v1283 = vpop.f32.mrf.mxu0
    %v1284 = vadd.f32 %v862, %v1283
    %v1285 = vpop.f32.mrf.mxu0
    %v1286 = vadd.f32 %v866, %v1285
    %v1287 = vpop.f32.mrf.mxu0
    %v1288 = vadd.f32 %v862, %v1287
    %v1289 = vpop.f32.mrf.mxu0
    %v1290 = vadd.f32 %v866, %v1289
    %1291 = vmatprep.mubr.bf16.mxu0 %v790
    %1292 = vmatmul.mubr.bf16.gmra.mxu0 %v789
    %v1293 = vpop.f32.mrf.mxu0
    %v1294 = vadd.f32 %v862, %v1293
    %v1295 = vpop.f32.mrf.mxu0
    %v1296 = vadd.f32 %v866, %v1295
    %v1297 = vpop.f32.mrf.mxu0
    %v1298 = vadd.f32 %v862, %v1297
    %v1299 = vpop.f32.mrf.mxu0
    %v1300 = vadd.f32 %v866, %v1299
    %1301 = vdwg.mxu0
    %1302 = vmatprep.subr.bf16.mxu0 %v1108
    %1303 = vmatpush1.bf16.msra.mxu0 %v1107
    %1304 = vmatprep.subr.bf16.mxu0 %v1106
    %1305 = vmatpush1.bf16.msra.mxu0 %v1105
    %1306 = vmatprep.subr.bf16.mxu0 %v1104
    %1307 = vmatpush1.bf16.msra.mxu0 %v1103
    %1308 = vmatprep.subr.bf16.mxu0 %v1102
    %1309 = vmatpush1.bf16.msra.mxu0 %v1101
    %1310 = vmatprep.subr.bf16.mxu0 %v1100
    %1311 = vmatpush1.bf16.msra.mxu0 %v1099
    %1312 = vmatprep.subr.bf16.mxu0 %v1098
    %1313 = vmatpush1.bf16.msra.mxu0 %v1097
    %1314 = vmatprep.subr.bf16.mxu0 %v1096
    %1315 = vmatpush1.bf16.msra.mxu0 %v1095
    %1316 = vmatprep.subr.bf16.mxu0 %v1094
    %1317 = vmatpush1.bf16.msra.mxu0 %v1093
    %1318 = vmatprep.subr.bf16.mxu0 %v1124
    %1319 = vmatpush2.bf16.msra.mxu0 %v1123
    %1320 = vmatprep.subr.bf16.mxu0 %v1122
    %1321 = vmatpush2.bf16.msra.mxu0 %v1121
    %1322 = vmatprep.subr.bf16.mxu0 %v1120
    %1323 = vmatpush2.bf16.msra.mxu0 %v1119
    %1324 = vmatprep.subr.bf16.mxu0 %v1118
    %1325 = vmatpush2.bf16.msra.mxu0 %v1117
    %1326 = vmatprep.subr.bf16.mxu0 %v1116
    %1327 = vmatpush2.bf16.msra.mxu0 %v1115
    %1328 = vmatprep.subr.bf16.mxu0 %v1114
    %1329 = vmatpush2.bf16.msra.mxu0 %v1113
    %1330 = vmatprep.subr.bf16.mxu0 %v1112
    %1331 = vmatpush2.bf16.msra.mxu0 %v1111
    %1332 = vmatprep.subr.bf16.mxu0 %v1110
    %1333 = vmatpush2.bf16.msra.mxu0 %v1109
    %1334 = vmatprep.mubr.bf16.mxu0 %v764
    %1335 = vmatmul.mubr.bf16.gmra.mxu0 %v763
    %v1336 = vpop.f32.mrf.mxu0
    %v1337 = vadd.f32 %v1224, %v1336
    %v1338 = vpop.f32.mrf.mxu0
    %v1339 = vadd.f32 %v1226, %v1338
    %v1340 = vpop.f32.mrf.mxu0
    %v1341 = vadd.f32 %v1228, %v1340
    %v1342 = vpop.f32.mrf.mxu0
    %v1343 = vadd.f32 %v1230, %v1342
    %1344 = vmatprep.mubr.bf16.mxu0 %v768
    %1345 = vmatmul.mubr.bf16.gmra.mxu0 %v767
    %v1346 = vpop.f32.mrf.mxu0
    %v1347 = vadd.f32 %v1234, %v1346
    %v1348 = vpop.f32.mrf.mxu0
    %v1349 = vadd.f32 %v1236, %v1348
    %v1350 = vpop.f32.mrf.mxu0
    %v1351 = vadd.f32 %v1238, %v1350
    %v1352 = vpop.f32.mrf.mxu0
    %v1353 = vadd.f32 %v1240, %v1352
    %1354 = vmatprep.mubr.bf16.mxu0 %v772
    %1355 = vmatmul.mubr.bf16.gmra.mxu0 %v771
    %v1356 = vpop.f32.mrf.mxu0
    %v1357 = vadd.f32 %v1244, %v1356
    %v1358 = vpop.f32.mrf.mxu0
    %v1359 = vadd.f32 %v1246, %v1358
    %v1360 = vpop.f32.mrf.mxu0
    %v1361 = vadd.f32 %v1248, %v1360
    %v1362 = vpop.f32.mrf.mxu0
    %v1363 = vadd.f32 %v1250, %v1362
    %1364 = vmatprep.mubr.bf16.mxu0 %v776
    %1365 = vmatmul.mubr.bf16.gmra.mxu0 %v775
    %v1366 = vpop.f32.mrf.mxu0
    %v1367 = vadd.f32 %v1254, %v1366
    %v1368 = vpop.f32.mrf.mxu0
    %v1369 = vadd.f32 %v1256, %v1368
    %v1370 = vpop.f32.mrf.mxu0
    %v1371 = vadd.f32 %v1258, %v1370
    %v1372 = vpop.f32.mrf.mxu0
    %v1373 = vadd.f32 %v1260, %v1372
    %1374 = vmatprep.mubr.bf16.mxu0 %v780
    %1375 = vmatmul.mubr.bf16.gmra.mxu0 %v779
    %v1376 = vpop.f32.mrf.mxu0
    %v1377 = vadd.f32 %v1264, %v1376
    %v1378 = vpop.f32.mrf.mxu0
    %v1379 = vadd.f32 %v1266, %v1378
    %v1380 = vpop.f32.mrf.mxu0
    %v1381 = vadd.f32 %v1268, %v1380
    %v1382 = vpop.f32.mrf.mxu0
    %v1383 = vadd.f32 %v1270, %v1382
    %1384 = vmatprep.mubr.bf16.mxu0 %v784
    %1385 = vmatmul.mubr.bf16.gmra.mxu0 %v783
    %v1386 = vpop.f32.mrf.mxu0
    %v1387 = vadd.f32 %v1274, %v1386
    %v1388 = vpop.f32.mrf.mxu0
    %v1389 = vadd.f32 %v1276, %v1388
    %v1390 = vpop.f32.mrf.mxu0
    %v1391 = vadd.f32 %v1278, %v1390
    %v1392 = vpop.f32.mrf.mxu0
    %v1393 = vadd.f32 %v1280, %v1392
    %1394 = vmatprep.mubr.bf16.mxu0 %v788
    %1395 = vmatmul.mubr.bf16.gmra.mxu0 %v787
    %v1396 = vpop.f32.mrf.mxu0
    %v1397 = vadd.f32 %v1284, %v1396
    %v1398 = vpop.f32.mrf.mxu0
    %v1399 = vadd.f32 %v1286, %v1398
    %v1400 = vpop.f32.mrf.mxu0
    %v1401 = vadd.f32 %v1288, %v1400
    %v1402 = vpop.f32.mrf.mxu0
    %v1403 = vadd.f32 %v1290, %v1402
    %1404 = vmatprep.mubr.bf16.mxu0 %v792
    %1405 = vmatmul.mubr.bf16.gmra.mxu0 %v791
    %v1406 = vpop.f32.mrf.mxu0
    %v1407 = vadd.f32 %v1294, %v1406
    %v1408 = vpop.f32.mrf.mxu0
    %v1409 = vadd.f32 %v1296, %v1408
    %v1410 = vpop.f32.mrf.mxu0
    %v1411 = vadd.f32 %v1298, %v1410
    %v1412 = vpop.f32.mrf.mxu0
    %v1413 = vadd.f32 %v1300, %v1412
    %1414 = vdwg.mxu0
    %vm1415 = vcmp.gt.f32.partialorder %v1337, 0.0
    %vm1416 = vcmp.gt.f32.partialorder %v1339, 0.0
    %vm1417 = vcmp.gt.f32.partialorder %v1341, 0.0
    %vm1418 = vcmp.gt.f32.partialorder %v1343, 0.0
    %vm1419 = vcmp.gt.f32.partialorder %v1347, 0.0
    %vm1420 = vcmp.gt.f32.partialorder %v1349, 0.0
    %vm1421 = vcmp.gt.f32.partialorder %v1351, 0.0
    %vm1422 = vcmp.gt.f32.partialorder %v1353, 0.0
    %vm1423 = vcmp.gt.f32.partialorder %v1357, 0.0
    %vm1424 = vcmp.gt.f32.partialorder %v1359, 0.0
    %vm1425 = vcmp.gt.f32.partialorder %v1361, 0.0
    %vm1426 = vcmp.gt.f32.partialorder %v1363, 0.0
    %vm1427 = vcmp.gt.f32.partialorder %v1367, 0.0
    %vm1428 = vcmp.gt.f32.partialorder %v1369, 0.0
    %vm1429 = vcmp.gt.f32.partialorder %v1371, 0.0
    %vm1430 = vcmp.gt.f32.partialorder %v1373, 0.0
    %vm1431 = vcmp.gt.f32.partialorder %v1377, 0.0
    %vm1432 = vcmp.gt.f32.partialorder %v1379, 0.0
    %vm1433 = vcmp.gt.f32.partialorder %v1381, 0.0
    %vm1434 = vcmp.gt.f32.partialorder %v1383, 0.0
    %vm1435 = vcmp.gt.f32.partialorder %v1387, 0.0
    %vm1436 = vcmp.gt.f32.partialorder %v1389, 0.0
    %vm1437 = vcmp.gt.f32.partialorder %v1391, 0.0
    %vm1438 = vcmp.gt.f32.partialorder %v1393, 0.0
    %vm1439 = vcmp.gt.f32.partialorder %v1397, 0.0
    %vm1440 = vcmp.gt.f32.partialorder %v1399, 0.0
    %vm1441 = vcmp.gt.f32.partialorder %v1401, 0.0
    %vm1442 = vcmp.gt.f32.partialorder %v1403, 0.0
    %vm1443 = vcmp.gt.f32.partialorder %v1407, 0.0
    %vm1444 = vcmp.gt.f32.partialorder %v1409, 0.0
    %vm1445 = vcmp.gt.f32.partialorder %v1411, 0.0
    %vm1446 = vcmp.gt.f32.partialorder %v1413, 0.0
    %v1447 = vmul.f32 %v1337, 1.442695
    %v1448 = vpow.pop %v1447
    %v1449 = vmul.f32 %v1339, 1.442695
    %v1450 = vpow.pop %v1449
    %v1451 = vmul.f32 %v1341, 1.442695
    %v1452 = vpow.pop %v1451
    %v1453 = vmul.f32 %v1343, 1.442695
    %v1454 = vpow.pop %v1453
    %v1455 = vmul.f32 %v1347, 1.442695
    %v1456 = vpow.pop %v1455
    %v1457 = vmul.f32 %v1349, 1.442695
    %v1458 = vpow.pop %v1457
    %v1459 = vmul.f32 %v1351, 1.442695
    %v1460 = vpow.pop %v1459
    %v1461 = vmul.f32 %v1353, 1.442695
    %v1462 = vpow.pop %v1461
    %v1463 = vmul.f32 %v1357, 1.442695
    %v1464 = vpow.pop %v1463
    %v1465 = vmul.f32 %v1359, 1.442695
    %v1466 = vpow.pop %v1465
    %v1467 = vmul.f32 %v1361, 1.442695
    %v1468 = vpow.pop %v1467
    %v1469 = vmul.f32 %v1363, 1.442695
    %v1470 = vpow.pop %v1469
    %v1471 = vmul.f32 %v1367, 1.442695
    %v1472 = vpow.pop %v1471
    %v1473 = vmul.f32 %v1369, 1.442695
    %v1474 = vpow.pop %v1473
    %v1475 = vmul.f32 %v1371, 1.442695
    %v1476 = vpow.pop %v1475
    %v1477 = vmul.f32 %v1373, 1.442695
    %v1478 = vpow.pop %v1477
    %v1479 = vmul.f32 %v1377, 1.442695
    %v1480 = vpow.pop %v1479
    %v1481 = vmul.f32 %v1379, 1.442695
    %v1482 = vpow.pop %v1481
    %v1483 = vmul.f32 %v1381, 1.442695
    %v1484 = vpow.pop %v1483
    %v1485 = vmul.f32 %v1383, 1.442695
    %v1486 = vpow.pop %v1485
    %v1487 = vmul.f32 %v1387, 1.442695
    %v1488 = vpow.pop %v1487
    %v1489 = vmul.f32 %v1389, 1.442695
    %v1490 = vpow.pop %v1489
    %v1491 = vmul.f32 %v1391, 1.442695
    %v1492 = vpow.pop %v1491
    %v1493 = vmul.f32 %v1393, 1.442695
    %v1494 = vpow.pop %v1493
    %v1495 = vmul.f32 %v1397, 1.442695
    %v1496 = vpow.pop %v1495
    %v1497 = vmul.f32 %v1399, 1.442695
    %v1498 = vpow.pop %v1497
    %v1499 = vmul.f32 %v1401, 1.442695
    %v1500 = vpow.pop %v1499
    %v1501 = vmul.f32 %v1403, 1.442695
    %v1502 = vpow.pop %v1501
    %v1503 = vmul.f32 %v1407, 1.442695
    %v1504 = vpow.pop %v1503
    %v1505 = vmul.f32 %v1409, 1.442695
    %v1506 = vpow.pop %v1505
    %v1507 = vmul.f32 %v1411, 1.442695
    %v1508 = vpow.pop %v1507
    %v1509 = vmul.f32 %v1413, 1.442695
    %v1510 = vpow.pop %v1509
    %v1511 = vsub.f32 %v1448, 1.0
    %v1512 = vsub.f32 %v1450, 1.0
    %v1513 = vsub.f32 %v1452, 1.0
    %v1514 = vsub.f32 %v1454, 1.0
    %v1515 = vsub.f32 %v1456, 1.0
    %v1516 = vsub.f32 %v1458, 1.0
    %v1517 = vsub.f32 %v1460, 1.0
    %v1518 = vsub.f32 %v1462, 1.0
    %v1519 = vsub.f32 %v1464, 1.0
    %v1520 = vsub.f32 %v1466, 1.0
    %v1521 = vsub.f32 %v1468, 1.0
    %v1522 = vsub.f32 %v1470, 1.0
    %v1523 = vsub.f32 %v1472, 1.0
    %v1524 = vsub.f32 %v1474, 1.0
    %v1525 = vsub.f32 %v1476, 1.0
    %v1526 = vsub.f32 %v1478, 1.0
    %v1527 = vsub.f32 %v1480, 1.0
    %v1528 = vsub.f32 %v1482, 1.0
    %v1529 = vsub.f32 %v1484, 1.0
    %v1530 = vsub.f32 %v1486, 1.0
    %v1531 = vsub.f32 %v1488, 1.0
    %v1532 = vsub.f32 %v1490, 1.0
    %v1533 = vsub.f32 %v1492, 1.0
    %v1534 = vsub.f32 %v1494, 1.0
    %v1535 = vsub.f32 %v1496, 1.0
    %v1536 = vsub.f32 %v1498, 1.0
    %v1537 = vsub.f32 %v1500, 1.0
    %v1538 = vsub.f32 %v1502, 1.0
    %v1539 = vsub.f32 %v1504, 1.0
    %v1540 = vsub.f32 %v1506, 1.0
    %v1541 = vsub.f32 %v1508, 1.0
    %v1542 = vsub.f32 %v1510, 1.0
    %v1543 = vsel %vm1415, %v1337, %v1511
    %v1544 = vsel %vm1416, %v1339, %v1512
    %v1545 = vsel %vm1417, %v1341, %v1513
    %v1546 = vsel %vm1418, %v1343, %v1514
    %v1547 = vsel %vm1419, %v1347, %v1515
    %v1548 = vsel %vm1420, %v1349, %v1516
    %v1549 = vsel %vm1421, %v1351, %v1517
    %v1550 = vsel %vm1422, %v1353, %v1518
    %v1551 = vsel %vm1423, %v1357, %v1519
    %v1552 = vsel %vm1424, %v1359, %v1520
    %v1553 = vsel %vm1425, %v1361, %v1521
    %v1554 = vsel %vm1426, %v1363, %v1522
    %v1555 = vsel %vm1427, %v1367, %v1523
    %v1556 = vsel %vm1428, %v1369, %v1524
    %v1557 = vsel %vm1429, %v1371, %v1525
    %v1558 = vsel %vm1430, %v1373, %v1526
    %v1559 = vsel %vm1431, %v1377, %v1527
    %v1560 = vsel %vm1432, %v1379, %v1528
    %v1561 = vsel %vm1433, %v1381, %v1529
    %v1562 = vsel %vm1434, %v1383, %v1530
    %v1563 = vsel %vm1435, %v1387, %v1531
    %v1564 = vsel %vm1436, %v1389, %v1532
    %v1565 = vsel %vm1437, %v1391, %v1533
    %v1566 = vsel %vm1438, %v1393, %v1534
    %v1567 = vsel %vm1439, %v1397, %v1535
    %v1568 = vsel %vm1440, %v1399, %v1536
    %v1569 = vsel %vm1441, %v1401, %v1537
    %v1570 = vsel %vm1442, %v1403, %v1538
    %v1571 = vsel %vm1443, %v1407, %v1539
    %v1572 = vsel %vm1444, %v1409, %v1540
    %v1573 = vsel %vm1445, %v1411, %v1541
    %v1574 = vsel %vm1446, %v1413, %v1542
    %v1575 = vpack.c.bf16 %v1545, %v1543
    %v1576 = vpack.c.bf16 %v1546, %v1544
    %v1577 = vpack.c.bf16 %v1549, %v1547
    %v1578 = vpack.c.bf16 %v1550, %v1548
    %v1579 = vpack.c.bf16 %v1553, %v1551
    %v1580 = vpack.c.bf16 %v1554, %v1552
    %v1581 = vpack.c.bf16 %v1557, %v1555
    %v1582 = vpack.c.bf16 %v1558, %v1556
    %v1583 = vpack.c.bf16 %v1561, %v1559
    %v1584 = vpack.c.bf16 %v1562, %v1560
    %v1585 = vpack.c.bf16 %v1565, %v1563
    %v1586 = vpack.c.bf16 %v1566, %v1564
    %v1587 = vpack.c.bf16 %v1569, %v1567
    %v1588 = vpack.c.bf16 %v1570, %v1568
    %v1589 = vpack.c.bf16 %v1573, %v1571
    %v1590 = vpack.c.bf16 %v1574, %v1572
    %v1591 = vld [vmem:[#allocation6] sm:$0xf]
    %v1592 = vld [vmem:[#allocation6 + $0x4] sm:$0xf]
    %v1593 = vld [vmem:[#allocation6 + $0x8] sm:$0xf]
    %v1594 = vld [vmem:[#allocation6 + $0xc] sm:$0xf]
    %v1595 = vld [vmem:[#allocation6 + $0x10] sm:$0xf]
    %v1596 = vld [vmem:[#allocation6 + $0x14] sm:$0xf]
    %v1597 = vld [vmem:[#allocation6 + $0x18] sm:$0xf]
    %v1598 = vld [vmem:[#allocation6 + $0x1c] sm:$0xf]
    %v1599 = vld [vmem:[#allocation6 + $0x20] sm:$0xf]
    %v1600 = vld [vmem:[#allocation6 + $0x24] sm:$0xf]
    %v1601 = vld [vmem:[#allocation6 + $0x28] sm:$0xf]
    %v1602 = vld [vmem:[#allocation6 + $0x2c] sm:$0xf]
    %v1603 = vld [vmem:[#allocation6 + $0x30] sm:$0xf]
    %v1604 = vld [vmem:[#allocation6 + $0x34] sm:$0xf]
    %v1605 = vld [vmem:[#allocation6 + $0x38] sm:$0xf]
    %v1606 = vld [vmem:[#allocation6 + $0x3c] sm:$0xf]
    %v1607 = vld [vmem:[#allocation6 + $0x40] sm:$0xf]
    %v1608 = vld [vmem:[#allocation6 + $0x44] sm:$0xf]
    %v1609 = vld [vmem:[#allocation6 + $0x48] sm:$0xf]
    %v1610 = vld [vmem:[#allocation6 + $0x4c] sm:$0xf]
    %v1611 = vld [vmem:[#allocation6 + $0x50] sm:$0xf]
    %v1612 = vld [vmem:[#allocation6 + $0x54] sm:$0xf]
    %v1613 = vld [vmem:[#allocation6 + $0x58] sm:$0xf]
    %v1614 = vld [vmem:[#allocation6 + $0x5c] sm:$0xf]
    %v1615 = vld [vmem:[#allocation6 + $0x60] sm:$0xf]
    %v1616 = vld [vmem:[#allocation6 + $0x64] sm:$0xf]
    %v1617 = vld [vmem:[#allocation6 + $0x68] sm:$0xf]
    %v1618 = vld [vmem:[#allocation6 + $0x6c] sm:$0xf]
    %v1619 = vld [vmem:[#allocation6 + $0x70] sm:$0xf]
    %v1620 = vld [vmem:[#allocation6 + $0x74] sm:$0xf]
    %v1621 = vld [vmem:[#allocation6 + $0x78] sm:$0xf]
    %v1622 = vld [vmem:[#allocation6 + $0x7c] sm:$0xf]
    %v1623 = vld [vmem:[%s6] sm:$0x1]
    %v1625 = vlaneseq
    %v1626 = vshrl.u32 %v1625, 7
    %v1627 = vsub.s32 0, %v1626
    %v1628 = vrot.slane %v1623, %v1627
    %v1662 = vunpack.c.l.b16 %v1591
    %v1663 = vunpack.c.l.b16 %v1592
    %v1664 = vunpack.c.l.b16 %v1593
    %v1665 = vunpack.c.l.b16 %v1594
    %v1666 = vunpack.c.l.b16 %v1595
    %v1667 = vunpack.c.l.b16 %v1596
    %v1668 = vunpack.c.l.b16 %v1597
    %v1669 = vunpack.c.l.b16 %v1598
    %v1670 = vunpack.c.l.b16 %v1599
    %v1671 = vunpack.c.l.b16 %v1600
    %v1672 = vunpack.c.l.b16 %v1601
    %v1673 = vunpack.c.l.b16 %v1602
    %v1674 = vunpack.c.l.b16 %v1603
    %v1675 = vunpack.c.l.b16 %v1604
    %v1676 = vunpack.c.l.b16 %v1605
    %v1677 = vunpack.c.l.b16 %v1606
    %v1678 = vunpack.c.l.b16 %v1607
    %v1679 = vunpack.c.l.b16 %v1608
    %v1680 = vunpack.c.l.b16 %v1609
    %v1681 = vunpack.c.l.b16 %v1610
    %v1682 = vunpack.c.l.b16 %v1611
    %v1683 = vunpack.c.l.b16 %v1612
    %v1684 = vunpack.c.l.b16 %v1613
    %v1685 = vunpack.c.l.b16 %v1614
    %v1686 = vunpack.c.l.b16 %v1615
    %v1687 = vunpack.c.l.b16 %v1616
    %v1688 = vunpack.c.l.b16 %v1617
    %v1689 = vunpack.c.l.b16 %v1618
    %v1690 = vunpack.c.l.b16 %v1619
    %v1691 = vunpack.c.l.b16 %v1620
    %v1692 = vunpack.c.l.b16 %v1621
    %v1693 = vunpack.c.l.b16 %v1622
    %v1694 = vpack.c.b16 %v1663, %v1662
    %v1695 = vpack.c.b16 %v1665, %v1664
    %v1696 = vpack.c.b16 %v1667, %v1666
    %v1697 = vpack.c.b16 %v1669, %v1668
    %v1698 = vpack.c.b16 %v1671, %v1670
    %v1699 = vpack.c.b16 %v1673, %v1672
    %v1700 = vpack.c.b16 %v1675, %v1674
    %v1701 = vpack.c.b16 %v1677, %v1676
    %v1702 = vpack.c.b16 %v1679, %v1678
    %v1703 = vpack.c.b16 %v1681, %v1680
    %v1704 = vpack.c.b16 %v1683, %v1682
    %v1705 = vpack.c.b16 %v1685, %v1684
    %v1706 = vpack.c.b16 %v1687, %v1686
    %v1707 = vpack.c.b16 %v1689, %v1688
    %v1708 = vpack.c.b16 %v1691, %v1690
    %v1709 = vpack.c.b16 %v1693, %v1692
    %1726 = vmatprep.subr.bf16.mxu0 0
    %1727 = vmatpush1.bf16.msra.mxu0 %v1701
    %1728 = vmatprep.subr.bf16.mxu0 0
    %1729 = vmatpush1.bf16.msra.mxu0 %v1700
    %1730 = vmatprep.subr.bf16.mxu0 0
    %1731 = vmatpush1.bf16.msra.mxu0 %v1699
    %1732 = vmatprep.subr.bf16.mxu0 0
    %1733 = vmatpush1.bf16.msra.mxu0 %v1698
    %1734 = vmatprep.subr.bf16.mxu0 0
    %1735 = vmatpush1.bf16.msra.mxu0 %v1697
    %1736 = vmatprep.subr.bf16.mxu0 0
    %1737 = vmatpush1.bf16.msra.mxu0 %v1696
    %1738 = vmatprep.subr.bf16.mxu0 0
    %1739 = vmatpush1.bf16.msra.mxu0 %v1695
    %1740 = vmatprep.subr.bf16.mxu0 0
    %1741 = vmatpush1.bf16.msra.mxu0 %v1694
    %1742 = vmatprep.subr.bf16.mxu0 0
    %1743 = vmatpush2.bf16.msra.mxu0 %v1709
    %1744 = vmatprep.subr.bf16.mxu0 0
    %1745 = vmatpush2.bf16.msra.mxu0 %v1708
    %1746 = vmatprep.subr.bf16.mxu0 0
    %1747 = vmatpush2.bf16.msra.mxu0 %v1707
    %1748 = vmatprep.subr.bf16.mxu0 0
    %1749 = vmatpush2.bf16.msra.mxu0 %v1706
    %1750 = vmatprep.subr.bf16.mxu0 0
    %1751 = vmatpush2.bf16.msra.mxu0 %v1705
    %1752 = vmatprep.subr.bf16.mxu0 0
    %1753 = vmatpush2.bf16.msra.mxu0 %v1704
    %1754 = vmatprep.subr.bf16.mxu0 0
    %1755 = vmatpush2.bf16.msra.mxu0 %v1703
    %1756 = vmatprep.subr.bf16.mxu0 0
    %1757 = vmatpush2.bf16.msra.mxu0 %v1702
    %1758 = vmatprep.mubr.bf16.mxu0 %v1576
    %1759 = vmatmul.mubr.bf16.gmra.mxu0 %v1575
    %v1760 = vpop.f32.mrf.mxu0
    %v1761 = vadd.f32 %v1628, %v1760
    %v1762 = vpop.f32.mrf.mxu0
    %v1763 = vpop.f32.mrf.mxu0
    %v1764 = vadd.f32 %v1628, %v1763
    %v1765 = vpop.f32.mrf.mxu0
    %1766 = vmatprep.mubr.bf16.mxu0 %v1578
    %1767 = vmatmul.mubr.bf16.gmra.mxu0 %v1577
    %v1768 = vpop.f32.mrf.mxu0
    %v1769 = vadd.f32 %v1628, %v1768
    %v1770 = vpop.f32.mrf.mxu0
    %v1771 = vpop.f32.mrf.mxu0
    %v1772 = vadd.f32 %v1628, %v1771
    %v1773 = vpop.f32.mrf.mxu0
    %1774 = vmatprep.mubr.bf16.mxu0 %v1580
    %1775 = vmatmul.mubr.bf16.gmra.mxu0 %v1579
    %v1776 = vpop.f32.mrf.mxu0
    %v1777 = vadd.f32 %v1628, %v1776
    %v1778 = vpop.f32.mrf.mxu0
    %v1779 = vpop.f32.mrf.mxu0
    %v1780 = vadd.f32 %v1628, %v1779
    %v1781 = vpop.f32.mrf.mxu0
    %1782 = vmatprep.mubr.bf16.mxu0 %v1582
    %1783 = vmatmul.mubr.bf16.gmra.mxu0 %v1581
    %v1784 = vpop.f32.mrf.mxu0
    %v1785 = vadd.f32 %v1628, %v1784
    %v1786 = vpop.f32.mrf.mxu0
    %v1787 = vpop.f32.mrf.mxu0
    %v1788 = vadd.f32 %v1628, %v1787
    %v1789 = vpop.f32.mrf.mxu0
    %1790 = vmatprep.mubr.bf16.mxu0 %v1584
    %1791 = vmatmul.mubr.bf16.gmra.mxu0 %v1583
    %v1792 = vpop.f32.mrf.mxu0
    %v1793 = vadd.f32 %v1628, %v1792
    %v1794 = vpop.f32.mrf.mxu0
    %v1795 = vpop.f32.mrf.mxu0
    %v1796 = vadd.f32 %v1628, %v1795
    %v1797 = vpop.f32.mrf.mxu0
    %1798 = vmatprep.mubr.bf16.mxu0 %v1586
    %1799 = vmatmul.mubr.bf16.gmra.mxu0 %v1585
    %v1800 = vpop.f32.mrf.mxu0
    %v1801 = vadd.f32 %v1628, %v1800
    %v1802 = vpop.f32.mrf.mxu0
    %v1803 = vpop.f32.mrf.mxu0
    %v1804 = vadd.f32 %v1628, %v1803
    %v1805 = vpop.f32.mrf.mxu0
    %1806 = vmatprep.mubr.bf16.mxu0 %v1588
    %1807 = vmatmul.mubr.bf16.gmra.mxu0 %v1587
    %v1808 = vpop.f32.mrf.mxu0
    %v1809 = vadd.f32 %v1628, %v1808
    %v1810 = vpop.f32.mrf.mxu0
    %v1811 = vpop.f32.mrf.mxu0
    %v1812 = vadd.f32 %v1628, %v1811
    %v1813 = vpop.f32.mrf.mxu0
    %1814 = vmatprep.mubr.bf16.mxu0 %v1590
    %1815 = vmatmul.mubr.bf16.gmra.mxu0 %v1589
    %v1816 = vpop.f32.mrf.mxu0
    %v1817 = vadd.f32 %v1628, %v1816
    %v1818 = vpop.f32.mrf.mxu0
    %v1819 = vpop.f32.mrf.mxu0
    %v1820 = vadd.f32 %v1628, %v1819
    %v1821 = vpop.f32.mrf.mxu0
    %1822 = vdwg.mxu0
    %vm1823 = vcmp.gt.f32.partialorder %v1761, 0.0
    %vm1824 = vcmp.gt.f32.partialorder %v1764, 0.0
    %vm1825 = vcmp.gt.f32.partialorder %v1769, 0.0
    %vm1826 = vcmp.gt.f32.partialorder %v1772, 0.0
    %vm1827 = vcmp.gt.f32.partialorder %v1777, 0.0
    %vm1828 = vcmp.gt.f32.partialorder %v1780, 0.0
    %vm1829 = vcmp.gt.f32.partialorder %v1785, 0.0
    %vm1830 = vcmp.gt.f32.partialorder %v1788, 0.0
    %vm1831 = vcmp.gt.f32.partialorder %v1793, 0.0
    %vm1832 = vcmp.gt.f32.partialorder %v1796, 0.0
    %vm1833 = vcmp.gt.f32.partialorder %v1801, 0.0
    %vm1834 = vcmp.gt.f32.partialorder %v1804, 0.0
    %vm1835 = vcmp.gt.f32.partialorder %v1809, 0.0
    %vm1836 = vcmp.gt.f32.partialorder %v1812, 0.0
    %vm1837 = vcmp.gt.f32.partialorder %v1817, 0.0
    %vm1838 = vcmp.gt.f32.partialorder %v1820, 0.0
    %v1839 = vmul.f32 %v1761, 1.442695
    %v1840 = vpow.pop %v1839
    %v1841 = vmul.f32 %v1764, 1.442695
    %v1842 = vpow.pop %v1841
    %v1843 = vmul.f32 %v1769, 1.442695
    %v1844 = vpow.pop %v1843
    %v1845 = vmul.f32 %v1772, 1.442695
    %v1846 = vpow.pop %v1845
    %v1847 = vmul.f32 %v1777, 1.442695
    %v1848 = vpow.pop %v1847
    %v1849 = vmul.f32 %v1780, 1.442695
    %v1850 = vpow.pop %v1849
    %v1851 = vmul.f32 %v1785, 1.442695
    %v1852 = vpow.pop %v1851
    %v1853 = vmul.f32 %v1788, 1.442695
    %v1854 = vpow.pop %v1853
    %v1855 = vmul.f32 %v1793, 1.442695
    %v1856 = vpow.pop %v1855
    %v1857 = vmul.f32 %v1796, 1.442695
    %v1858 = vpow.pop %v1857
    %v1859 = vmul.f32 %v1801, 1.442695
    %v1860 = vpow.pop %v1859
    %v1861 = vmul.f32 %v1804, 1.442695
    %v1862 = vpow.pop %v1861
    %v1863 = vmul.f32 %v1809, 1.442695
    %v1864 = vpow.pop %v1863
    %v1865 = vmul.f32 %v1812, 1.442695
    %v1866 = vpow.pop %v1865
    %v1867 = vmul.f32 %v1817, 1.442695
    %v1868 = vpow.pop %v1867
    %v1869 = vmul.f32 %v1820, 1.442695
    %v1870 = vpow.pop %v1869
    %v1871 = vsub.f32 %v1840, 1.0
    %v1872 = vsub.f32 %v1842, 1.0
    %v1873 = vsub.f32 %v1844, 1.0
    %v1874 = vsub.f32 %v1846, 1.0
    %v1875 = vsub.f32 %v1848, 1.0
    %v1876 = vsub.f32 %v1850, 1.0
    %v1877 = vsub.f32 %v1852, 1.0
    %v1878 = vsub.f32 %v1854, 1.0
    %v1879 = vsub.f32 %v1856, 1.0
    %v1880 = vsub.f32 %v1858, 1.0
    %v1881 = vsub.f32 %v1860, 1.0
    %v1882 = vsub.f32 %v1862, 1.0
    %v1883 = vsub.f32 %v1864, 1.0
    %v1884 = vsub.f32 %v1866, 1.0
    %v1885 = vsub.f32 %v1868, 1.0
    %v1886 = vsub.f32 %v1870, 1.0
    %v1887 = vsel %vm1823, %v1761, %v1871
    %v1888 = vsel %vm1824, %v1764, %v1872
    %v1889 = vsel %vm1825, %v1769, %v1873
    %v1890 = vsel %vm1826, %v1772, %v1874
    %v1891 = vsel %vm1827, %v1777, %v1875
    %v1892 = vsel %vm1828, %v1780, %v1876
    %v1893 = vsel %vm1829, %v1785, %v1877
    %v1894 = vsel %vm1830, %v1788, %v1878
    %v1895 = vsel %vm1831, %v1793, %v1879
    %v1896 = vsel %vm1832, %v1796, %v1880
    %v1897 = vsel %vm1833, %v1801, %v1881
    %v1898 = vsel %vm1834, %v1804, %v1882
    %v1899 = vsel %vm1835, %v1809, %v1883
    %v1900 = vsel %vm1836, %v1812, %v1884
    %v1901 = vsel %vm1837, %v1817, %v1885
    %v1902 = vsel %vm1838, %v1820, %v1886
    %v1903 = vpack.c.bf16 %v1888, %v1887
    %v1904 = vpack.c.bf16 %v1890, %v1889
    %v1905 = vpack.c.bf16 %v1892, %v1891
    %v1906 = vpack.c.bf16 %v1894, %v1893
    %v1907 = vpack.c.bf16 %v1896, %v1895
    %v1908 = vpack.c.bf16 %v1898, %v1897
    %v1909 = vpack.c.bf16 %v1900, %v1899
    %v1910 = vpack.c.bf16 %v1902, %v1901
    %v1911 = vld [vmem:[%s7] sm:$0x1]
    %v1912 = vld [vmem:[#allocation2] sm:$0x1]
    %1914 = vset.pattern.permute.xlu0 0
    %1915 = vperm.xlu0 %1914, %v1912
    %v1916 = vpop.permute.xlu0 %1915
    %v1918 = vlaneseq
    %v1919 = vshrl.u32 %v1918, 7
    %v1920 = vsub.s32 0, %v1919
    %v1921 = vrot.slane %v1916, %v1920
    %1922 = vmatprep.subr.bf16.mxu0 0
    %1923 = vmatpush1.bf16.xpose.msra.mxu0 %v1910
    %1924 = vmatprep.subr.bf16.mxu0 0
    %1925 = vmatpush1.bf16.xpose.msra.mxu0 %v1909
    %1926 = vmatprep.subr.bf16.mxu0 0
    %1927 = vmatpush1.bf16.xpose.msra.mxu0 %v1908
    %1928 = vmatprep.subr.bf16.mxu0 0
    %1929 = vmatpush1.bf16.xpose.msra.mxu0 %v1907
    %1930 = vmatprep.subr.bf16.mxu0 0
    %1931 = vmatpush1.bf16.xpose.msra.mxu0 %v1906
    %1932 = vmatprep.subr.bf16.mxu0 0
    %1933 = vmatpush1.bf16.xpose.msra.mxu0 %v1905
    %1934 = vmatprep.subr.bf16.mxu0 0
    %1935 = vmatpush1.bf16.xpose.msra.mxu0 %v1904
    %1936 = vmatprep.subr.bf16.mxu0 0
    %1937 = vmatpush1.bf16.xpose.msra.mxu0 %v1903
    %1938 = vmatprep.subr.bf16.mxu0 0
    %1939 = vmatpush2.bf16.xpose.msra.mxu0 0
    %1940 = vmatprep.subr.bf16.mxu0 0
    %1941 = vmatpush2.bf16.xpose.msra.mxu0 0
    %1942 = vmatprep.subr.bf16.mxu0 0
    %1943 = vmatpush2.bf16.xpose.msra.mxu0 0
    %1944 = vmatprep.subr.bf16.mxu0 0
    %1945 = vmatpush2.bf16.xpose.msra.mxu0 0
    %1946 = vmatprep.subr.bf16.mxu0 0
    %1947 = vmatpush2.bf16.xpose.msra.mxu0 0
    %1948 = vmatprep.subr.bf16.mxu0 0
    %1949 = vmatpush2.bf16.xpose.msra.mxu0 0
    %1950 = vmatprep.subr.bf16.mxu0 0
    %1951 = vmatpush2.bf16.xpose.msra.mxu0 0
    %1952 = vmatprep.subr.bf16.mxu0 0
    %1953 = vmatpush2.bf16.xpose.msra.mxu0 0
    %1954 = vmatprep.mubr.bf16.mxu0 0
    %1955 = vmatmul.mubr.bf16.gmra.mxu0 %v1911
    %v1956 = vpop.f32.mrf.mxu0
    %v1957 = vadd.f32 %v1921, %v1956
    %v1958 = vpop.f32.mrf.mxu0
    %v1959 = vpop.f32.mrf.mxu0
    %v1960 = vpop.f32.mrf.mxu0
    %1961 = vdwg.mxu0
    %vm1962 = vcmp.gt.f32.partialorder %v1957, 20.0
    %v1963 = vmin.f32 %v1957, 20.0
    %v1964 = vmul.f32 %v1963, 1.442695
    %v1965 = vpow.pop %v1964
    %v1966 = vadd.f32 %v1965, 1.0
    %v1967 = vlog2.pop %v1966
    %v1968 = vmul.f32 %v1967, 0.6931472
    %v1969 = vmul.f32 -0.5, %v1965
    %v1970 = vadd.f32 %v1969, 1.0
    %v1971 = vmul.f32 %v1970, %v1965
    %v1972 = vand.u32 2147483647, %v1965
    %vm1973 = vcmp.lt.f32.partialorder %v1972, 0.0004427343
    %v1974 = vsel %vm1973, %v1971, %v1968
    %v1975 = vsel %vm1962, %v1957, %v1974
    %v1976 = vmax.f32 %v1975, 0.0001
    %v1977 = vmin.f32 %v1976, 1000000.0
    %1978 = vst [vmem:[#allocation8] sm:$0x1] %v1977
    // Predicated region
    $region46: #{tpu_custom_call.1} parent=1 // pred_check
      _
    $region47: #{tpu_custom_call.1} parent=1 // pred_check_branch
      %1980 = sbr.rel (0) target = $region49
    $region48: #{tpu_custom_call.1} parent=1 // pred_region
      %s1982 = ssub.s32 16, 16
      %1983 = vsyncadd [#allocation5], %s1982
      %s1985 = sshll.u32 [#allocation8], 4
      %s1986 = int_to_ptr.vmem [resolvable:$true] %s1985
      %1988 = dma.vmem_to_hbm [thread:$0]  %s1986, 16, %s9, [#allocation5]
    $region49: #{tpu_custom_call.1} parent=1 // pred_fallthru
      _
    // Predicated region
    $region50: #{tpu_custom_call.1} parent=1 // pred_check
      _
    $region51: #{tpu_custom_call.1} parent=1 // pred_check_branch
      %1990 = sbr.rel (0) target = $region53
    $region52: #{tpu_custom_call.1} parent=1 // pred_region
      %1991 = dma.done [#allocation5], 16
    $region53: #{tpu_custom_call.1} parent=1 // pred_fallthru
      _
    %1992 = vsyncpa [#allocation4], 1
    %1993 = vsyncpa [#allocation7], 1
    %1994 = vsyncpa [#allocation5], 1

</llo_original>
